<compile_context>
chip_gen: v5e
topology: v5e:2x2
jax: 0.10.0
libtpu: 0.0.40
codegen_flags: <defaults>
</compile_context>

<pallas_src>
import functools

import jax
import jax.numpy as jnp
from jax.experimental import pallas as pl
from jax.experimental.pallas import tpu as pltpu


CFG = dict(
    vocab_size=100,
    hidden=32,
    heads=4,
    head_dim=8,
    intermediate=64,
    layers=2,
    max_pos=16,
    type_vocab=2,
    num_labels=2,
)


# ------------------------------ fused kernel -------------------------------

def _layernorm(x, g, b, eps=1e-12):
    mean = jnp.mean(x, axis=-1, keepdims=True)
    var = jnp.mean((x - mean) ** 2, axis=-1, keepdims=True)
    return (x - mean) * jax.lax.rsqrt(var + eps) * g + b


def _fused_bert_kernel(
    # inputs
    x_ref, bias_ref,
    emb_ln_g_ref, emb_ln_b_ref,
    wqkv_ref, bqkv_ref, wo_ref, bo_ref, ln1_g_ref, ln1_b_ref,
    wi_ref, bi_ref, wo2_ref, bo2_ref, ln2_g_ref, ln2_b_ref,
    pool_w_ref, pool_b_ref, cls_w_ref, cls_b_ref,
    # outputs
    probs_ref,
    # scratch
    ctx_ref, cls_ref,
    *, cfg):
    B, S = cfg["batch"], cfg["seq"]
    H, nH, d, L = cfg["hidden"], cfg["heads"], cfg["head_dim"], cfg["layers"]
    scale = 1.0 / float(d) ** 0.5

    x = x_ref[...]                                   # [B*S, H]  f32
    bias = bias_ref[...]                             # [B, S]    additive mask

    # --- embedding LayerNorm ---
    x = _layernorm(x, emb_ln_g_ref[...], emb_ln_b_ref[...])

    # --- encoder layers, fully unrolled; weights & activations stay in VMEM ---
    for l in range(L):
        # fused QKV projection: [B*S, 3H]
        qkv = (jnp.dot(x, wqkv_ref[l], preferred_element_type=jnp.float32)
               + bqkv_ref[l][None, :])

        # per-(batch, head) attention on [S, d] slices (static unroll)
        for b in range(B):
            brow = bias[b:b + 1, :]                  # [1, S] broadcast over rows
            for h in range(nH):
                qh = qkv[b * S:(b + 1) * S, h * d:(h + 1) * d]
                kh = qkv[b * S:(b + 1) * S, H + h * d:H + (h + 1) * d]
                vh = qkv[b * S:(b + 1) * S, 2 * H + h * d:2 * H + (h + 1) * d]
                s = jax.lax.dot_general(
                    qh, kh, (((1,), (1,)), ((), ())),
                    preferred_element_type=jnp.float32) * scale + brow
                s = s - jnp.max(s, axis=-1, keepdims=True)
                p = jnp.exp(s)
                p = p * pl.reciprocal(jnp.sum(p, axis=-1, keepdims=True),
                                      approx=True)
                ctx_ref[pl.ds(b * S, S), pl.ds(h * d, d)] = jnp.dot(
                    p, vh, preferred_element_type=jnp.float32)

        # attention output projection + residual + LayerNorm
        attn_out = (jnp.dot(ctx_ref[...], wo_ref[l],
                            preferred_element_type=jnp.float32)
                    + bo_ref[l][None, :])
        x = _layernorm(x + attn_out, ln1_g_ref[l], ln1_b_ref[l])

        # feed-forward (GELU) + residual + LayerNorm
        hdn = (jnp.dot(x, wi_ref[l], preferred_element_type=jnp.float32)
               + bi_ref[l][None, :])
        # TODO(synk): HF BERT uses exact erf-GELU; tanh-approx GELU used here
        # for a clean EUP lowering inside the kernel.
        hdn = jax.nn.gelu(hdn, approximate=True)
        hdn = (jnp.dot(hdn, wo2_ref[l], preferred_element_type=jnp.float32)
               + bo2_ref[l][None, :])
        x = _layernorm(x + hdn, ln2_g_ref[l], ln2_b_ref[l])

    # --- pooler on the CLS token of each sequence ---
    for b in range(B):
        cls_ref[pl.ds(b, 1), :] = x[b * S:b * S + 1, :]
    pooled = jnp.tanh(jnp.dot(cls_ref[...], pool_w_ref[...],
                              preferred_element_type=jnp.float32)
                      + pool_b_ref[...])

    # --- classifier head + nn.Softmax(dim=1) ---
    logits = (jnp.dot(pooled, cls_w_ref[...], preferred_element_type=jnp.float32)
              + cls_b_ref[...])
    logits = logits - jnp.max(logits, axis=1, keepdims=True)
    e = jnp.exp(logits)
    probs_ref[...] = (e / jnp.sum(e, axis=1, keepdims=True)).astype(probs_ref.dtype)


def _full_spec(shape):
    zeros = (0,) * len(shape)
    return pl.BlockSpec(shape, lambda i: zeros)


# ----------------------------- model definition ----------------------------

def init_params(key, cfg):
    H, I, L = cfg["hidden"], cfg["intermediate"], cfg["layers"]
    NL = cfg["num_labels"]

    def nrm(k, shape, scale=0.02):
        return (scale * jax.random.normal(k, shape)).astype(jnp.float32)

    keys = iter(jax.random.split(key, 32))
    return {
        "word_emb": nrm(next(keys), (cfg["vocab_size"], H)),
        "pos_emb": nrm(next(keys), (cfg["max_pos"], H)),
        "type_emb": nrm(next(keys), (cfg["type_vocab"], H)),
        "emb_ln_g": jnp.ones((H,), jnp.float32),
        "emb_ln_b": jnp.zeros((H,), jnp.float32),
        # per-layer weights stacked along a leading layer axis; QKV fused [H, 3H]
        "wqkv": nrm(next(keys), (L, H, 3 * H)),
        "bqkv": jnp.zeros((L, 3 * H), jnp.float32),
        "wo": nrm(next(keys), (L, H, H)),
        "bo": jnp.zeros((L, H), jnp.float32),
        "ln1_g": jnp.ones((L, H), jnp.float32),
        "ln1_b": jnp.zeros((L, H), jnp.float32),
        "wi": nrm(next(keys), (L, H, I)),
        "bi": jnp.zeros((L, I), jnp.float32),
        "wo2": nrm(next(keys), (L, I, H)),
        "bo2": jnp.zeros((L, H), jnp.float32),
        "ln2_g": jnp.ones((L, H), jnp.float32),
        "ln2_b": jnp.zeros((L, H), jnp.float32),
        "pool_w": nrm(next(keys), (H, H)),
        "pool_b": jnp.zeros((H,), jnp.float32),
        "cls_w": nrm(next(keys), (H, NL)),
        "cls_b": jnp.zeros((NL,), jnp.float32),
    }


def fine_tune_classifier_forward(params, input_ids, attention_masks, cfg):
    """Equivalent of FineTuneClassifier.forward: softmax(bert(...).logits, dim=1)."""
    B, S = input_ids.shape
    H, NL = cfg["hidden"], cfg["num_labels"]

    # --- embeddings (gather = pure glue, done once in JAX) ---
    tok = jnp.take(params["word_emb"], input_ids, axis=0)          # [B,S,H]
    pos = params["pos_emb"][:S][None, :, :]                        # [1,S,H]
    typ = params["type_emb"][0][None, None, :]                     # token_type_ids == 0
    x = (tok + pos + typ).reshape(B * S, H).astype(jnp.float32)

    # attention mask -> additive bias [B, S]
    bias = (1.0 - attention_masks.astype(jnp.float32)) * -1e9

    kcfg = dict(cfg)
    kcfg["batch"] = B
    kcfg["seq"] = S

    args = (
        x, bias,
        params["emb_ln_g"].reshape(1, H), params["emb_ln_b"].reshape(1, H),
        params["wqkv"], params["bqkv"],
        params["wo"], params["bo"],
        params["ln1_g"], params["ln1_b"],
        params["wi"], params["bi"],
        params["wo2"], params["bo2"],
        params["ln2_g"], params["ln2_b"],
        params["pool_w"], params["pool_b"].reshape(1, H),
        params["cls_w"], params["cls_b"].reshape(1, NL),
    )

    return pl.pallas_call(
        functools.partial(_fused_bert_kernel, cfg=kcfg),
        out_shape=jax.ShapeDtypeStruct((B, NL), jnp.float32),
        grid=(1,),
        in_specs=[_full_spec(a.shape) for a in args],
        out_specs=_full_spec((B, NL)),
        scratch_shapes=[
            pltpu.VMEM((B * S, H), jnp.float32),   # per-layer attention context
            pltpu.VMEM((B, H), jnp.float32),       # CLS rows for the pooler
        ],
        compiler_params=pltpu.CompilerParams(
            dimension_semantics=("arbitrary",)),
    )(*args)


# --------------------------------- driver -----------------------------------

if __name__ == "__main__":
    key = jax.random.PRNGKey(0)
    k_param, k_ids, k_mask = jax.random.split(key, 3)

    B, S = 2, 8
    params = init_params(k_param, CFG)

    input_ids = jax.random.randint(k_ids, (B, S), 0, CFG["vocab_size"], dtype=jnp.int32)
    attention_masks = jnp.ones((B, S), dtype=jnp.int32).at[:, S - 2:].set(0)  # pad last 2

    fwd = jax.jit(functools.partial(fine_tune_classifier_forward, cfg=CFG))
    probs = fwd(params, input_ids, attention_masks)
    probs = jax.block_until_ready(probs)

    assert probs.shape == (B, CFG["num_labels"])
    assert bool(jnp.all(jnp.isfinite(probs)))
    assert bool(jnp.allclose(jnp.sum(probs, axis=1), 1.0, atol=1e-5))
    print("KERNEL_OK")
</pallas_src>

<mosaic_0001>
module attributes {stable_mosaic.version = 11 : i64} {
  func.func @_fused_bert_kernel(%arg0: i32, %arg1: memref<16x32xf32, #tpu.memory_space<vmem>>, %arg2: memref<2x8xf32, #tpu.memory_space<vmem>>, %arg3: memref<1x32xf32, #tpu.memory_space<vmem>>, %arg4: memref<1x32xf32, #tpu.memory_space<vmem>>, %arg5: memref<2x32x96xf32, #tpu.memory_space<vmem>>, %arg6: memref<2x96xf32, #tpu.memory_space<vmem>>, %arg7: memref<2x32x32xf32, #tpu.memory_space<vmem>>, %arg8: memref<2x32xf32, #tpu.memory_space<vmem>>, %arg9: memref<2x32xf32, #tpu.memory_space<vmem>>, %arg10: memref<2x32xf32, #tpu.memory_space<vmem>>, %arg11: memref<2x32x64xf32, #tpu.memory_space<vmem>>, %arg12: memref<2x64xf32, #tpu.memory_space<vmem>>, %arg13: memref<2x64x32xf32, #tpu.memory_space<vmem>>, %arg14: memref<2x32xf32, #tpu.memory_space<vmem>>, %arg15: memref<2x32xf32, #tpu.memory_space<vmem>>, %arg16: memref<2x32xf32, #tpu.memory_space<vmem>>, %arg17: memref<32x32xf32, #tpu.memory_space<vmem>>, %arg18: memref<1x32xf32, #tpu.memory_space<vmem>>, %arg19: memref<32x2xf32, #tpu.memory_space<vmem>>, %arg20: memref<1x2xf32, #tpu.memory_space<vmem>>, %arg21: memref<2x2xf32, #tpu.memory_space<vmem>>, %arg22: memref<16x32xf32, #tpu.memory_space<vmem>>, %arg23: memref<2x32xf32, #tpu.memory_space<vmem>>) attributes {dimension_semantics = [#tpu.dimension_semantics<arbitrary>], iteration_bounds = array<i64: 1>, scalar_prefetch = 0 : i64, scratch_operands = 2 : i64, tpu.core_type = #tpu.core_type<tc>, window_params = [{pipeline_mode = #tpu.pipeline_mode<synchronous>, transform_indices = @transform_0, window_bounds = array<i64: 16, 32>}, {pipeline_mode = #tpu.pipeline_mode<synchronous>, transform_indices = @transform_1, window_bounds = array<i64: 2, 8>}, {pipeline_mode = #tpu.pipeline_mode<synchronous>, transform_indices = @transform_2, window_bounds = array<i64: 1, 32>}, {pipeline_mode = #tpu.pipeline_mode<synchronous>, transform_indices = @transform_3, window_bounds = array<i64: 1, 32>}, {pipeline_mode = #tpu.pipeline_mode<synchronous>, transform_indices = @transform_4, window_bounds = array<i64: 2, 32, 96>}, {pipeline_mode = #tpu.pipeline_mode<synchronous>, transform_indices = @transform_5, window_bounds = array<i64: 2, 96>}, {pipeline_mode = #tpu.pipeline_mode<synchronous>, transform_indices = @transform_6, window_bounds = array<i64: 2, 32, 32>}, {pipeline_mode = #tpu.pipeline_mode<synchronous>, transform_indices = @transform_7, window_bounds = array<i64: 2, 32>}, {pipeline_mode = #tpu.pipeline_mode<synchronous>, transform_indices = @transform_8, window_bounds = array<i64: 2, 32>}, {pipeline_mode = #tpu.pipeline_mode<synchronous>, transform_indices = @transform_9, window_bounds = array<i64: 2, 32>}, {pipeline_mode = #tpu.pipeline_mode<synchronous>, transform_indices = @transform_10, window_bounds = array<i64: 2, 32, 64>}, {pipeline_mode = #tpu.pipeline_mode<synchronous>, transform_indices = @transform_11, window_bounds = array<i64: 2, 64>}, {pipeline_mode = #tpu.pipeline_mode<synchronous>, transform_indices = @transform_12, window_bounds = array<i64: 2, 64, 32>}, {pipeline_mode = #tpu.pipeline_mode<synchronous>, transform_indices = @transform_13, window_bounds = array<i64: 2, 32>}, {pipeline_mode = #tpu.pipeline_mode<synchronous>, transform_indices = @transform_14, window_bounds = array<i64: 2, 32>}, {pipeline_mode = #tpu.pipeline_mode<synchronous>, transform_indices = @transform_15, window_bounds = array<i64: 2, 32>}, {pipeline_mode = #tpu.pipeline_mode<synchronous>, transform_indices = @transform_16, window_bounds = array<i64: 32, 32>}, {pipeline_mode = #tpu.pipeline_mode<synchronous>, transform_indices = @transform_17, window_bounds = array<i64: 1, 32>}, {pipeline_mode = #tpu.pipeline_mode<synchronous>, transform_indices = @transform_18, window_bounds = array<i64: 32, 2>}, {pipeline_mode = #tpu.pipeline_mode<synchronous>, transform_indices = @transform_19, window_bounds = array<i64: 1, 2>}, {pipeline_mode = #tpu.pipeline_mode<synchronous>, transform_indices = @transform_20, window_bounds = array<i64: 2, 2>}]} {
    %c0 = arith.constant 0 : index
    %c0_0 = arith.constant 0 : index
    %0 = vector.load %arg1[%c0, %c0_0] : memref<16x32xf32, #tpu.memory_space<vmem>>, vector<16x32xf32>
    %c0_1 = arith.constant 0 : index
    %c0_2 = arith.constant 0 : index
    %1 = vector.load %arg2[%c0_1, %c0_2] : memref<2x8xf32, #tpu.memory_space<vmem>>, vector<2x8xf32>
    %c0_3 = arith.constant 0 : index
    %c0_4 = arith.constant 0 : index
    %2 = vector.load %arg3[%c0_3, %c0_4] : memref<1x32xf32, #tpu.memory_space<vmem>>, vector<1x32xf32>
    %c0_5 = arith.constant 0 : index
    %c0_6 = arith.constant 0 : index
    %3 = vector.load %arg4[%c0_5, %c0_6] : memref<1x32xf32, #tpu.memory_space<vmem>>, vector<1x32xf32>
    %cst = arith.constant dense<0.000000e+00> : vector<16xf32>
    %4 = vector.multi_reduction <add>, %0, %cst [1] : vector<16x32xf32> to vector<16xf32>
    %5 = vector.shape_cast %4 : vector<16xf32> to vector<16x1xf32>
    %cst_7 = arith.constant 3.200000e+01 : f32
    %6 = vector.broadcast %cst_7 : f32 to vector<16x1xf32>
    %7 = arith.divf %5, %6 : vector<16x1xf32>
    %8 = vector.broadcast %7 : vector<16x1xf32> to vector<16x32xf32>
    %9 = arith.subf %0, %8 : vector<16x32xf32>
    %10 = arith.mulf %9, %9 : vector<16x32xf32>
    %cst_8 = arith.constant dense<0.000000e+00> : vector<16xf32>
    %11 = vector.multi_reduction <add>, %10, %cst_8 [1] : vector<16x32xf32> to vector<16xf32>
    %12 = vector.shape_cast %11 : vector<16xf32> to vector<16x1xf32>
    %cst_9 = arith.constant 3.200000e+01 : f32
    %13 = vector.broadcast %cst_9 : f32 to vector<16x1xf32>
    %14 = arith.divf %12, %13 : vector<16x1xf32>
    %15 = vector.broadcast %7 : vector<16x1xf32> to vector<16x32xf32>
    %16 = arith.subf %0, %15 : vector<16x32xf32>
    %cst_10 = arith.constant 9.99999996E-13 : f32
    %17 = vector.broadcast %cst_10 : f32 to vector<16x1xf32>
    %18 = arith.addf %14, %17 : vector<16x1xf32>
    %19 = math.rsqrt %18 : vector<16x1xf32>
    %20 = vector.broadcast %19 : vector<16x1xf32> to vector<16x32xf32>
    %21 = arith.mulf %16, %20 : vector<16x32xf32>
    %22 = vector.broadcast %2 : vector<1x32xf32> to vector<16x32xf32>
    %23 = arith.mulf %21, %22 : vector<16x32xf32>
    %24 = vector.broadcast %3 : vector<1x32xf32> to vector<16x32xf32>
    %25 = arith.addf %23, %24 : vector<16x32xf32>
    %c0_11 = arith.constant 0 : index
    %c0_12 = arith.constant 0 : index
    %c0_13 = arith.constant 0 : index
    %26 = vector.load %arg5[%c0_11, %c0_12, %c0_13] : memref<2x32x96xf32, #tpu.memory_space<vmem>>, vector<1x32x96xf32>
    %27 = vector.shape_cast %26 : vector<1x32x96xf32> to vector<32x96xf32>
    %cst_14 = arith.constant dense<0.000000e+00> : vector<16x96xf32>
    %28 = tpu.matmul %25, %27, %cst_14 {dimension_numbers = #tpu.dot_dimension_numbers<[1], [0], [0], [1], [0, 0, 1, 1], [], []>} : vector<16x32xf32>, vector<32x96xf32>, vector<16x96xf32> -> vector<16x96xf32>
    %c0_15 = arith.constant 0 : index
    %c0_16 = arith.constant 0 : index
    %29 = vector.load %arg6[%c0_15, %c0_16] : memref<2x96xf32, #tpu.memory_space<vmem>>, vector<1x96xf32>
    %30 = vector.shape_cast %29 : vector<1x96xf32> to vector<96xf32>
    %31 = vector.shape_cast %30 : vector<96xf32> to vector<1x96xf32>
    %32 = vector.broadcast %31 : vector<1x96xf32> to vector<16x96xf32>
    %33 = arith.addf %28, %32 : vector<16x96xf32>
    %34 = vector.extract_strided_slice %1 {offsets = [0, 0], sizes = [1, 8], strides = [1, 1]} : vector<2x8xf32> to vector<1x8xf32>
    %35 = vector.extract_strided_slice %33 {offsets = [0, 0], sizes = [8, 8], strides = [1, 1]} : vector<16x96xf32> to vector<8x8xf32>
    %36 = vector.extract_strided_slice %33 {offsets = [0, 32], sizes = [8, 8], strides = [1, 1]} : vector<16x96xf32> to vector<8x8xf32>
    %37 = vector.extract_strided_slice %33 {offsets = [0, 64], sizes = [8, 8], strides = [1, 1]} : vector<16x96xf32> to vector<8x8xf32>
    %cst_17 = arith.constant dense<0.000000e+00> : vector<8x8xf32>
    %38 = tpu.matmul %35, %36, %cst_17 {dimension_numbers = #tpu.dot_dimension_numbers<[1], [1], [0], [0], [0, 0, 1, 0], [], []>} : vector<8x8xf32>, vector<8x8xf32>, vector<8x8xf32> -> vector<8x8xf32>
    %cst_18 = arith.constant 0.353553385 : f32
    %39 = vector.broadcast %cst_18 : f32 to vector<8x8xf32>
    %40 = arith.mulf %38, %39 : vector<8x8xf32>
    %41 = vector.broadcast %34 : vector<1x8xf32> to vector<8x8xf32>
    %42 = arith.addf %40, %41 : vector<8x8xf32>
    %cst_19 = arith.constant dense<0xFF800000> : vector<8xf32>
    %43 = vector.multi_reduction <maximumf>, %42, %cst_19 [1] : vector<8x8xf32> to vector<8xf32>
    %44 = vector.shape_cast %43 : vector<8xf32> to vector<8x1xf32>
    %45 = vector.broadcast %44 : vector<8x1xf32> to vector<8x8xf32>
    %46 = arith.subf %42, %45 : vector<8x8xf32>
    %47 = math.exp %46 : vector<8x8xf32>
    %cst_20 = arith.constant dense<0.000000e+00> : vector<8xf32>
    %48 = vector.multi_reduction <add>, %47, %cst_20 [1] : vector<8x8xf32> to vector<8xf32>
    %49 = vector.shape_cast %48 : vector<8xf32> to vector<8x1xf32>
    %50 = tpu.reciprocal %49 {approx = true} : vector<8x1xf32> -> vector<8x1xf32>
    %51 = vector.broadcast %50 : vector<8x1xf32> to vector<8x8xf32>
    %52 = arith.mulf %47, %51 : vector<8x8xf32>
    %cst_21 = arith.constant dense<0.000000e+00> : vector<8x8xf32>
    %53 = tpu.matmul %52, %37, %cst_21 {dimension_numbers = #tpu.dot_dimension_numbers<[1], [0], [0], [1], [0, 0, 1, 1], [], []>} : vector<8x8xf32>, vector<8x8xf32>, vector<8x8xf32> -> vector<8x8xf32>
    %c0_22 = arith.constant 0 : index
    %c0_23 = arith.constant 0 : index
    %54 = vector.load %arg22[%c0_22, %c0_23] : memref<16x32xf32, #tpu.memory_space<vmem>>, vector<8x8xf32>
    tpu.vector_store %arg22[%c0_22, %c0_23], %53 {strides = array<i32>} : memref<16x32xf32, #tpu.memory_space<vmem>>, vector<8x8xf32>,
    %55 = vector.extract_strided_slice %33 {offsets = [0, 8], sizes = [8, 8], strides = [1, 1]} : vector<16x96xf32> to vector<8x8xf32>
    %56 = vector.extract_strided_slice %33 {offsets = [0, 40], sizes = [8, 8], strides = [1, 1]} : vector<16x96xf32> to vector<8x8xf32>
    %57 = vector.extract_strided_slice %33 {offsets = [0, 72], sizes = [8, 8], strides = [1, 1]} : vector<16x96xf32> to vector<8x8xf32>
    %cst_24 = arith.constant dense<0.000000e+00> : vector<8x8xf32>
    %58 = tpu.matmul %55, %56, %cst_24 {dimension_numbers = #tpu.dot_dimension_numbers<[1], [1], [0], [0], [0, 0, 1, 0], [], []>} : vector<8x8xf32>, vector<8x8xf32>, vector<8x8xf32> -> vector<8x8xf32>
    %cst_25 = arith.constant 0.353553385 : f32
    %59 = vector.broadcast %cst_25 : f32 to vector<8x8xf32>
    %60 = arith.mulf %58, %59 : vector<8x8xf32>
    %61 = vector.broadcast %34 : vector<1x8xf32> to vector<8x8xf32>
    %62 = arith.addf %60, %61 : vector<8x8xf32>
    %cst_26 = arith.constant dense<0xFF800000> : vector<8xf32>
    %63 = vector.multi_reduction <maximumf>, %62, %cst_26 [1] : vector<8x8xf32> to vector<8xf32>
    %64 = vector.shape_cast %63 : vector<8xf32> to vector<8x1xf32>
    %65 = vector.broadcast %64 : vector<8x1xf32> to vector<8x8xf32>
    %66 = arith.subf %62, %65 : vector<8x8xf32>
    %67 = math.exp %66 : vector<8x8xf32>
    %cst_27 = arith.constant dense<0.000000e+00> : vector<8xf32>
    %68 = vector.multi_reduction <add>, %67, %cst_27 [1] : vector<8x8xf32> to vector<8xf32>
    %69 = vector.shape_cast %68 : vector<8xf32> to vector<8x1xf32>
    %70 = tpu.reciprocal %69 {approx = true} : vector<8x1xf32> -> vector<8x1xf32>
    %71 = vector.broadcast %70 : vector<8x1xf32> to vector<8x8xf32>
    %72 = arith.mulf %67, %71 : vector<8x8xf32>
    %cst_28 = arith.constant dense<0.000000e+00> : vector<8x8xf32>
    %73 = tpu.matmul %72, %57, %cst_28 {dimension_numbers = #tpu.dot_dimension_numbers<[1], [0], [0], [1], [0, 0, 1, 1], [], []>} : vector<8x8xf32>, vector<8x8xf32>, vector<8x8xf32> -> vector<8x8xf32>
    %c0_29 = arith.constant 0 : index
    %c8 = arith.constant 8 : index
    %74 = vector.load %arg22[%c0_29, %c8] : memref<16x32xf32, #tpu.memory_space<vmem>>, vector<8x8xf32>
    tpu.vector_store %arg22[%c0_29, %c8], %73 {strides = array<i32>} : memref<16x32xf32, #tpu.memory_space<vmem>>, vector<8x8xf32>,
    %75 = vector.extract_strided_slice %33 {offsets = [0, 16], sizes = [8, 8], strides = [1, 1]} : vector<16x96xf32> to vector<8x8xf32>
    %76 = vector.extract_strided_slice %33 {offsets = [0, 48], sizes = [8, 8], strides = [1, 1]} : vector<16x96xf32> to vector<8x8xf32>
    %77 = vector.extract_strided_slice %33 {offsets = [0, 80], sizes = [8, 8], strides = [1, 1]} : vector<16x96xf32> to vector<8x8xf32>
    %cst_30 = arith.constant dense<0.000000e+00> : vector<8x8xf32>
    %78 = tpu.matmul %75, %76, %cst_30 {dimension_numbers = #tpu.dot_dimension_numbers<[1], [1], [0], [0], [0, 0, 1, 0], [], []>} : vector<8x8xf32>, vector<8x8xf32>, vector<8x8xf32> -> vector<8x8xf32>
    %cst_31 = arith.constant 0.353553385 : f32
    %79 = vector.broadcast %cst_31 : f32 to vector<8x8xf32>
    %80 = arith.mulf %78, %79 : vector<8x8xf32>
    %81 = vector.broadcast %34 : vector<1x8xf32> to vector<8x8xf32>
    %82 = arith.addf %80, %81 : vector<8x8xf32>
    %cst_32 = arith.constant dense<0xFF800000> : vector<8xf32>
    %83 = vector.multi_reduction <maximumf>, %82, %cst_32 [1] : vector<8x8xf32> to vector<8xf32>
    %84 = vector.shape_cast %83 : vector<8xf32> to vector<8x1xf32>
    %85 = vector.broadcast %84 : vector<8x1xf32> to vector<8x8xf32>
    %86 = arith.subf %82, %85 : vector<8x8xf32>
    %87 = math.exp %86 : vector<8x8xf32>
    %cst_33 = arith.constant dense<0.000000e+00> : vector<8xf32>
    %88 = vector.multi_reduction <add>, %87, %cst_33 [1] : vector<8x8xf32> to vector<8xf32>
    %89 = vector.shape_cast %88 : vector<8xf32> to vector<8x1xf32>
    %90 = tpu.reciprocal %89 {approx = true} : vector<8x1xf32> -> vector<8x1xf32>
    %91 = vector.broadcast %90 : vector<8x1xf32> to vector<8x8xf32>
    %92 = arith.mulf %87, %91 : vector<8x8xf32>
    %cst_34 = arith.constant dense<0.000000e+00> : vector<8x8xf32>
    %93 = tpu.matmul %92, %77, %cst_34 {dimension_numbers = #tpu.dot_dimension_numbers<[1], [0], [0], [1], [0, 0, 1, 1], [], []>} : vector<8x8xf32>, vector<8x8xf32>, vector<8x8xf32> -> vector<8x8xf32>
    %c0_35 = arith.constant 0 : index
    %c16 = arith.constant 16 : index
    %94 = vector.load %arg22[%c0_35, %c16] : memref<16x32xf32, #tpu.memory_space<vmem>>, vector<8x8xf32>
    tpu.vector_store %arg22[%c0_35, %c16], %93 {strides = array<i32>} : memref<16x32xf32, #tpu.memory_space<vmem>>, vector<8x8xf32>,
    %95 = vector.extract_strided_slice %33 {offsets = [0, 24], sizes = [8, 8], strides = [1, 1]} : vector<16x96xf32> to vector<8x8xf32>
    %96 = vector.extract_strided_slice %33 {offsets = [0, 56], sizes = [8, 8], strides = [1, 1]} : vector<16x96xf32> to vector<8x8xf32>
    %97 = vector.extract_strided_slice %33 {offsets = [0, 88], sizes = [8, 8], strides = [1, 1]} : vector<16x96xf32> to vector<8x8xf32>
    %cst_36 = arith.constant dense<0.000000e+00> : vector<8x8xf32>
    %98 = tpu.matmul %95, %96, %cst_36 {dimension_numbers = #tpu.dot_dimension_numbers<[1], [1], [0], [0], [0, 0, 1, 0], [], []>} : vector<8x8xf32>, vector<8x8xf32>, vector<8x8xf32> -> vector<8x8xf32>
    %cst_37 = arith.constant 0.353553385 : f32
    %99 = vector.broadcast %cst_37 : f32 to vector<8x8xf32>
    %100 = arith.mulf %98, %99 : vector<8x8xf32>
    %101 = vector.broadcast %34 : vector<1x8xf32> to vector<8x8xf32>
    %102 = arith.addf %100, %101 : vector<8x8xf32>
    %cst_38 = arith.constant dense<0xFF800000> : vector<8xf32>
    %103 = vector.multi_reduction <maximumf>, %102, %cst_38 [1] : vector<8x8xf32> to vector<8xf32>
    %104 = vector.shape_cast %103 : vector<8xf32> to vector<8x1xf32>
    %105 = vector.broadcast %104 : vector<8x1xf32> to vector<8x8xf32>
    %106 = arith.subf %102, %105 : vector<8x8xf32>
    %107 = math.exp %106 : vector<8x8xf32>
    %cst_39 = arith.constant dense<0.000000e+00> : vector<8xf32>
    %108 = vector.multi_reduction <add>, %107, %cst_39 [1] : vector<8x8xf32> to vector<8xf32>
    %109 = vector.shape_cast %108 : vector<8xf32> to vector<8x1xf32>
    %110 = tpu.reciprocal %109 {approx = true} : vector<8x1xf32> -> vector<8x1xf32>
    %111 = vector.broadcast %110 : vector<8x1xf32> to vector<8x8xf32>
    %112 = arith.mulf %107, %111 : vector<8x8xf32>
    %cst_40 = arith.constant dense<0.000000e+00> : vector<8x8xf32>
    %113 = tpu.matmul %112, %97, %cst_40 {dimension_numbers = #tpu.dot_dimension_numbers<[1], [0], [0], [1], [0, 0, 1, 1], [], []>} : vector<8x8xf32>, vector<8x8xf32>, vector<8x8xf32> -> vector<8x8xf32>
    %c0_41 = arith.constant 0 : index
    %c24 = arith.constant 24 : index
    %114 = vector.load %arg22[%c0_41, %c24] : memref<16x32xf32, #tpu.memory_space<vmem>>, vector<8x8xf32>
    tpu.vector_store %arg22[%c0_41, %c24], %113 {strides = array<i32>} : memref<16x32xf32, #tpu.memory_space<vmem>>, vector<8x8xf32>,
    %115 = vector.extract_strided_slice %1 {offsets = [1, 0], sizes = [1, 8], strides = [1, 1]} : vector<2x8xf32> to vector<1x8xf32>
    %116 = vector.extract_strided_slice %33 {offsets = [8, 0], sizes = [8, 8], strides = [1, 1]} : vector<16x96xf32> to vector<8x8xf32>
    %117 = vector.extract_strided_slice %33 {offsets = [8, 32], sizes = [8, 8], strides = [1, 1]} : vector<16x96xf32> to vector<8x8xf32>
    %118 = vector.extract_strided_slice %33 {offsets = [8, 64], sizes = [8, 8], strides = [1, 1]} : vector<16x96xf32> to vector<8x8xf32>
    %cst_42 = arith.constant dense<0.000000e+00> : vector<8x8xf32>
    %119 = tpu.matmul %116, %117, %cst_42 {dimension_numbers = #tpu.dot_dimension_numbers<[1], [1], [0], [0], [0, 0, 1, 0], [], []>} : vector<8x8xf32>, vector<8x8xf32>, vector<8x8xf32> -> vector<8x8xf32>
    %cst_43 = arith.constant 0.353553385 : f32
    %120 = vector.broadcast %cst_43 : f32 to vector<8x8xf32>
    %121 = arith.mulf %119, %120 : vector<8x8xf32>
    %122 = vector.broadcast %115 : vector<1x8xf32> to vector<8x8xf32>
    %123 = arith.addf %121, %122 : vector<8x8xf32>
    %cst_44 = arith.constant dense<0xFF800000> : vector<8xf32>
    %124 = vector.multi_reduction <maximumf>, %123, %cst_44 [1] : vector<8x8xf32> to vector<8xf32>
    %125 = vector.shape_cast %124 : vector<8xf32> to vector<8x1xf32>
    %126 = vector.broadcast %125 : vector<8x1xf32> to vector<8x8xf32>
    %127 = arith.subf %123, %126 : vector<8x8xf32>
    %128 = math.exp %127 : vector<8x8xf32>
    %cst_45 = arith.constant dense<0.000000e+00> : vector<8xf32>
    %129 = vector.multi_reduction <add>, %128, %cst_45 [1] : vector<8x8xf32> to vector<8xf32>
    %130 = vector.shape_cast %129 : vector<8xf32> to vector<8x1xf32>
    %131 = tpu.reciprocal %130 {approx = true} : vector<8x1xf32> -> vector<8x1xf32>
    %132 = vector.broadcast %131 : vector<8x1xf32> to vector<8x8xf32>
    %133 = arith.mulf %128, %132 : vector<8x8xf32>
    %cst_46 = arith.constant dense<0.000000e+00> : vector<8x8xf32>
    %134 = tpu.matmul %133, %118, %cst_46 {dimension_numbers = #tpu.dot_dimension_numbers<[1], [0], [0], [1], [0, 0, 1, 1], [], []>} : vector<8x8xf32>, vector<8x8xf32>, vector<8x8xf32> -> vector<8x8xf32>
    %c8_47 = arith.constant 8 : index
    %c0_48 = arith.constant 0 : index
    %135 = vector.load %arg22[%c8_47, %c0_48] : memref<16x32xf32, #tpu.memory_space<vmem>>, vector<8x8xf32>
    tpu.vector_store %arg22[%c8_47, %c0_48], %134 {strides = array<i32>} : memref<16x32xf32, #tpu.memory_space<vmem>>, vector<8x8xf32>,
    %136 = vector.extract_strided_slice %33 {offsets = [8, 8], sizes = [8, 8], strides = [1, 1]} : vector<16x96xf32> to vector<8x8xf32>
    %137 = vector.extract_strided_slice %33 {offsets = [8, 40], sizes = [8, 8], strides = [1, 1]} : vector<16x96xf32> to vector<8x8xf32>
    %138 = vector.extract_strided_slice %33 {offsets = [8, 72], sizes = [8, 8], strides = [1, 1]} : vector<16x96xf32> to vector<8x8xf32>
    %cst_49 = arith.constant dense<0.000000e+00> : vector<8x8xf32>
    %139 = tpu.matmul %136, %137, %cst_49 {dimension_numbers = #tpu.dot_dimension_numbers<[1], [1], [0], [0], [0, 0, 1, 0], [], []>} : vector<8x8xf32>, vector<8x8xf32>, vector<8x8xf32> -> vector<8x8xf32>
    %cst_50 = arith.constant 0.353553385 : f32
    %140 = vector.broadcast %cst_50 : f32 to vector<8x8xf32>
    %141 = arith.mulf %139, %140 : vector<8x8xf32>
    %142 = vector.broadcast %115 : vector<1x8xf32> to vector<8x8xf32>
    %143 = arith.addf %141, %142 : vector<8x8xf32>
    %cst_51 = arith.constant dense<0xFF800000> : vector<8xf32>
    %144 = vector.multi_reduction <maximumf>, %143, %cst_51 [1] : vector<8x8xf32> to vector<8xf32>
    %145 = vector.shape_cast %144 : vector<8xf32> to vector<8x1xf32>
    %146 = vector.broadcast %145 : vector<8x1xf32> to vector<8x8xf32>
    %147 = arith.subf %143, %146 : vector<8x8xf32>
    %148 = math.exp %147 : vector<8x8xf32>
    %cst_52 = arith.constant dense<0.000000e+00> : vector<8xf32>
    %149 = vector.multi_reduction <add>, %148, %cst_52 [1] : vector<8x8xf32> to vector<8xf32>
    %150 = vector.shape_cast %149 : vector<8xf32> to vector<8x1xf32>
    %151 = tpu.reciprocal %150 {approx = true} : vector<8x1xf32> -> vector<8x1xf32>
    %152 = vector.broadcast %151 : vector<8x1xf32> to vector<8x8xf32>
    %153 = arith.mulf %148, %152 : vector<8x8xf32>
    %cst_53 = arith.constant dense<0.000000e+00> : vector<8x8xf32>
    %154 = tpu.matmul %153, %138, %cst_53 {dimension_numbers = #tpu.dot_dimension_numbers<[1], [0], [0], [1], [0, 0, 1, 1], [], []>} : vector<8x8xf32>, vector<8x8xf32>, vector<8x8xf32> -> vector<8x8xf32>
    %c8_54 = arith.constant 8 : index
    %c8_55 = arith.constant 8 : index
    %155 = vector.load %arg22[%c8_54, %c8_55] : memref<16x32xf32, #tpu.memory_space<vmem>>, vector<8x8xf32>
    tpu.vector_store %arg22[%c8_54, %c8_55], %154 {strides = array<i32>} : memref<16x32xf32, #tpu.memory_space<vmem>>, vector<8x8xf32>,
    %156 = vector.extract_strided_slice %33 {offsets = [8, 16], sizes = [8, 8], strides = [1, 1]} : vector<16x96xf32> to vector<8x8xf32>
    %157 = vector.extract_strided_slice %33 {offsets = [8, 48], sizes = [8, 8], strides = [1, 1]} : vector<16x96xf32> to vector<8x8xf32>
    %158 = vector.extract_strided_slice %33 {offsets = [8, 80], sizes = [8, 8], strides = [1, 1]} : vector<16x96xf32> to vector<8x8xf32>
    %cst_56 = arith.constant dense<0.000000e+00> : vector<8x8xf32>
    %159 = tpu.matmul %156, %157, %cst_56 {dimension_numbers = #tpu.dot_dimension_numbers<[1], [1], [0], [0], [0, 0, 1, 0], [], []>} : vector<8x8xf32>, vector<8x8xf32>, vector<8x8xf32> -> vector<8x8xf32>
    %cst_57 = arith.constant 0.353553385 : f32
    %160 = vector.broadcast %cst_57 : f32 to vector<8x8xf32>
    %161 = arith.mulf %159, %160 : vector<8x8xf32>
    %162 = vector.broadcast %115 : vector<1x8xf32> to vector<8x8xf32>
    %163 = arith.addf %161, %162 : vector<8x8xf32>
    %cst_58 = arith.constant dense<0xFF800000> : vector<8xf32>
    %164 = vector.multi_reduction <maximumf>, %163, %cst_58 [1] : vector<8x8xf32> to vector<8xf32>
    %165 = vector.shape_cast %164 : vector<8xf32> to vector<8x1xf32>
    %166 = vector.broadcast %165 : vector<8x1xf32> to vector<8x8xf32>
    %167 = arith.subf %163, %166 : vector<8x8xf32>
    %168 = math.exp %167 : vector<8x8xf32>
    %cst_59 = arith.constant dense<0.000000e+00> : vector<8xf32>
    %169 = vector.multi_reduction <add>, %168, %cst_59 [1] : vector<8x8xf32> to vector<8xf32>
    %170 = vector.shape_cast %169 : vector<8xf32> to vector<8x1xf32>
    %171 = tpu.reciprocal %170 {approx = true} : vector<8x1xf32> -> vector<8x1xf32>
    %172 = vector.broadcast %171 : vector<8x1xf32> to vector<8x8xf32>
    %173 = arith.mulf %168, %172 : vector<8x8xf32>
    %cst_60 = arith.constant dense<0.000000e+00> : vector<8x8xf32>
    %174 = tpu.matmul %173, %158, %cst_60 {dimension_numbers = #tpu.dot_dimension_numbers<[1], [0], [0], [1], [0, 0, 1, 1], [], []>} : vector<8x8xf32>, vector<8x8xf32>, vector<8x8xf32> -> vector<8x8xf32>
    %c8_61 = arith.constant 8 : index
    %c16_62 = arith.constant 16 : index
    %175 = vector.load %arg22[%c8_61, %c16_62] : memref<16x32xf32, #tpu.memory_space<vmem>>, vector<8x8xf32>
    tpu.vector_store %arg22[%c8_61, %c16_62], %174 {strides = array<i32>} : memref<16x32xf32, #tpu.memory_space<vmem>>, vector<8x8xf32>,
    %176 = vector.extract_strided_slice %33 {offsets = [8, 24], sizes = [8, 8], strides = [1, 1]} : vector<16x96xf32> to vector<8x8xf32>
    %177 = vector.extract_strided_slice %33 {offsets = [8, 56], sizes = [8, 8], strides = [1, 1]} : vector<16x96xf32> to vector<8x8xf32>
    %178 = vector.extract_strided_slice %33 {offsets = [8, 88], sizes = [8, 8], strides = [1, 1]} : vector<16x96xf32> to vector<8x8xf32>
    %cst_63 = arith.constant dense<0.000000e+00> : vector<8x8xf32>
    %179 = tpu.matmul %176, %177, %cst_63 {dimension_numbers = #tpu.dot_dimension_numbers<[1], [1], [0], [0], [0, 0, 1, 0], [], []>} : vector<8x8xf32>, vector<8x8xf32>, vector<8x8xf32> -> vector<8x8xf32>
    %cst_64 = arith.constant 0.353553385 : f32
    %180 = vector.broadcast %cst_64 : f32 to vector<8x8xf32>
    %181 = arith.mulf %179, %180 : vector<8x8xf32>
    %182 = vector.broadcast %115 : vector<1x8xf32> to vector<8x8xf32>
    %183 = arith.addf %181, %182 : vector<8x8xf32>
    %cst_65 = arith.constant dense<0xFF800000> : vector<8xf32>
    %184 = vector.multi_reduction <maximumf>, %183, %cst_65 [1] : vector<8x8xf32> to vector<8xf32>
    %185 = vector.shape_cast %184 : vector<8xf32> to vector<8x1xf32>
    %186 = vector.broadcast %185 : vector<8x1xf32> to vector<8x8xf32>
    %187 = arith.subf %183, %186 : vector<8x8xf32>
    %188 = math.exp %187 : vector<8x8xf32>
    %cst_66 = arith.constant dense<0.000000e+00> : vector<8xf32>
    %189 = vector.multi_reduction <add>, %188, %cst_66 [1] : vector<8x8xf32> to vector<8xf32>
    %190 = vector.shape_cast %189 : vector<8xf32> to vector<8x1xf32>
    %191 = tpu.reciprocal %190 {approx = true} : vector<8x1xf32> -> vector<8x1xf32>
    %192 = vector.broadcast %191 : vector<8x1xf32> to vector<8x8xf32>
    %193 = arith.mulf %188, %192 : vector<8x8xf32>
    %cst_67 = arith.constant dense<0.000000e+00> : vector<8x8xf32>
    %194 = tpu.matmul %193, %178, %cst_67 {dimension_numbers = #tpu.dot_dimension_numbers<[1], [0], [0], [1], [0, 0, 1, 1], [], []>} : vector<8x8xf32>, vector<8x8xf32>, vector<8x8xf32> -> vector<8x8xf32>
    %c8_68 = arith.constant 8 : index
    %c24_69 = arith.constant 24 : index
    %195 = vector.load %arg22[%c8_68, %c24_69] : memref<16x32xf32, #tpu.memory_space<vmem>>, vector<8x8xf32>
    tpu.vector_store %arg22[%c8_68, %c24_69], %194 {strides = array<i32>} : memref<16x32xf32, #tpu.memory_space<vmem>>, vector<8x8xf32>,
    %c0_70 = arith.constant 0 : index
    %c0_71 = arith.constant 0 : index
    %196 = vector.load %arg22[%c0_70, %c0_71] : memref<16x32xf32, #tpu.memory_space<vmem>>, vector<16x32xf32>
    %c0_72 = arith.constant 0 : index
    %c0_73 = arith.constant 0 : index
    %c0_74 = arith.constant 0 : index
    %197 = vector.load %arg7[%c0_72, %c0_73, %c0_74] : memref<2x32x32xf32, #tpu.memory_space<vmem>>, vector<1x32x32xf32>
    %198 = vector.shape_cast %197 : vector<1x32x32xf32> to vector<32x32xf32>
    %cst_75 = arith.constant dense<0.000000e+00> : vector<16x32xf32>
    %199 = tpu.matmul %196, %198, %cst_75 {dimension_numbers = #tpu.dot_dimension_numbers<[1], [0], [0], [1], [0, 0, 1, 1], [], []>} : vector<16x32xf32>, vector<32x32xf32>, vector<16x32xf32> -> vector<16x32xf32>
    %c0_76 = arith.constant 0 : index
    %c0_77 = arith.constant 0 : index
    %200 = vector.load %arg8[%c0_76, %c0_77] : memref<2x32xf32, #tpu.memory_space<vmem>>, vector<1x32xf32>
    %201 = vector.shape_cast %200 : vector<1x32xf32> to vector<32xf32>
    %202 = vector.shape_cast %201 : vector<32xf32> to vector<1x32xf32>
    %203 = vector.broadcast %202 : vector<1x32xf32> to vector<16x32xf32>
    %204 = arith.addf %199, %203 : vector<16x32xf32>
    %205 = arith.addf %25, %204 : vector<16x32xf32>
    %c0_78 = arith.constant 0 : index
    %c0_79 = arith.constant 0 : index
    %206 = vector.load %arg9[%c0_78, %c0_79] : memref<2x32xf32, #tpu.memory_space<vmem>>, vector<1x32xf32>
    %207 = vector.shape_cast %206 : vector<1x32xf32> to vector<32xf32>
    %c0_80 = arith.constant 0 : index
    %c0_81 = arith.constant 0 : index
    %208 = vector.load %arg10[%c0_80, %c0_81] : memref<2x32xf32, #tpu.memory_space<vmem>>, vector<1x32xf32>
    %209 = vector.shape_cast %208 : vector<1x32xf32> to vector<32xf32>
    %cst_82 = arith.constant dense<0.000000e+00> : vector<16xf32>
    %210 = vector.multi_reduction <add>, %205, %cst_82 [1] : vector<16x32xf32> to vector<16xf32>
    %211 = vector.shape_cast %210 : vector<16xf32> to vector<16x1xf32>
    %cst_83 = arith.constant 3.200000e+01 : f32
    %212 = vector.broadcast %cst_83 : f32 to vector<16x1xf32>
    %213 = arith.divf %211, %212 : vector<16x1xf32>
    %214 = vector.broadcast %213 : vector<16x1xf32> to vector<16x32xf32>
    %215 = arith.subf %205, %214 : vector<16x32xf32>
    %216 = arith.mulf %215, %215 : vector<16x32xf32>
    %cst_84 = arith.constant dense<0.000000e+00> : vector<16xf32>
    %217 = vector.multi_reduction <add>, %216, %cst_84 [1] : vector<16x32xf32> to vector<16xf32>
    %218 = vector.shape_cast %217 : vector<16xf32> to vector<16x1xf32>
    %cst_85 = arith.constant 3.200000e+01 : f32
    %219 = vector.broadcast %cst_85 : f32 to vector<16x1xf32>
    %220 = arith.divf %218, %219 : vector<16x1xf32>
    %221 = vector.broadcast %213 : vector<16x1xf32> to vector<16x32xf32>
    %222 = arith.subf %205, %221 : vector<16x32xf32>
    %cst_86 = arith.constant 9.99999996E-13 : f32
    %223 = vector.broadcast %cst_86 : f32 to vector<16x1xf32>
    %224 = arith.addf %220, %223 : vector<16x1xf32>
    %225 = math.rsqrt %224 : vector<16x1xf32>
    %226 = vector.broadcast %225 : vector<16x1xf32> to vector<16x32xf32>
    %227 = arith.mulf %222, %226 : vector<16x32xf32>
    %228 = vector.shape_cast %207 : vector<32xf32> to vector<1x32xf32>
    %229 = vector.broadcast %228 : vector<1x32xf32> to vector<16x32xf32>
    %230 = arith.mulf %227, %229 : vector<16x32xf32>
    %231 = vector.shape_cast %209 : vector<32xf32> to vector<1x32xf32>
    %232 = vector.broadcast %231 : vector<1x32xf32> to vector<16x32xf32>
    %233 = arith.addf %230, %232 : vector<16x32xf32>
    %c0_87 = arith.constant 0 : index
    %c0_88 = arith.constant 0 : index
    %c0_89 = arith.constant 0 : index
    %234 = vector.load %arg11[%c0_87, %c0_88, %c0_89] : memref<2x32x64xf32, #tpu.memory_space<vmem>>, vector<1x32x64xf32>
    %235 = vector.shape_cast %234 : vector<1x32x64xf32> to vector<32x64xf32>
    %cst_90 = arith.constant dense<0.000000e+00> : vector<16x64xf32>
    %236 = tpu.matmul %233, %235, %cst_90 {dimension_numbers = #tpu.dot_dimension_numbers<[1], [0], [0], [1], [0, 0, 1, 1], [], []>} : vector<16x32xf32>, vector<32x64xf32>, vector<16x64xf32> -> vector<16x64xf32>
    %c0_91 = arith.constant 0 : index
    %c0_92 = arith.constant 0 : index
    %237 = vector.load %arg12[%c0_91, %c0_92] : memref<2x64xf32, #tpu.memory_space<vmem>>, vector<1x64xf32>
    %238 = vector.shape_cast %237 : vector<1x64xf32> to vector<64xf32>
    %239 = vector.shape_cast %238 : vector<64xf32> to vector<1x64xf32>
    %240 = vector.broadcast %239 : vector<1x64xf32> to vector<16x64xf32>
    %241 = arith.addf %236, %240 : vector<16x64xf32>
    %242 = arith.mulf %241, %241 : vector<16x64xf32>
    %243 = arith.mulf %241, %242 : vector<16x64xf32>
    %cst_93 = arith.constant 4.471500e-02 : f32
    %244 = vector.broadcast %cst_93 : f32 to vector<16x64xf32>
    %245 = arith.mulf %244, %243 : vector<16x64xf32>
    %246 = arith.addf %241, %245 : vector<16x64xf32>
    %cst_94 = arith.constant 0.797884583 : f32
    %247 = vector.broadcast %cst_94 : f32 to vector<16x64xf32>
    %248 = arith.mulf %247, %246 : vector<16x64xf32>
    %249 = math.tanh %248 : vector<16x64xf32>
    %cst_95 = arith.constant 1.000000e+00 : f32
    %250 = vector.broadcast %cst_95 : f32 to vector<16x64xf32>
    %251 = arith.addf %250, %249 : vector<16x64xf32>
    %cst_96 = arith.constant 5.000000e-01 : f32
    %252 = vector.broadcast %cst_96 : f32 to vector<16x64xf32>
    %253 = arith.mulf %252, %251 : vector<16x64xf32>
    %254 = arith.mulf %241, %253 : vector<16x64xf32>
    %c0_97 = arith.constant 0 : index
    %c0_98 = arith.constant 0 : index
    %c0_99 = arith.constant 0 : index
    %255 = vector.load %arg13[%c0_97, %c0_98, %c0_99] : memref<2x64x32xf32, #tpu.memory_space<vmem>>, vector<1x64x32xf32>
    %256 = vector.shape_cast %255 : vector<1x64x32xf32> to vector<64x32xf32>
    %cst_100 = arith.constant dense<0.000000e+00> : vector<16x32xf32>
    %257 = tpu.matmul %254, %256, %cst_100 {dimension_numbers = #tpu.dot_dimension_numbers<[1], [0], [0], [1], [0, 0, 1, 1], [], []>} : vector<16x64xf32>, vector<64x32xf32>, vector<16x32xf32> -> vector<16x32xf32>
    %c0_101 = arith.constant 0 : index
    %c0_102 = arith.constant 0 : index
    %258 = vector.load %arg14[%c0_101, %c0_102] : memref<2x32xf32, #tpu.memory_space<vmem>>, vector<1x32xf32>
    %259 = vector.shape_cast %258 : vector<1x32xf32> to vector<32xf32>
    %260 = vector.shape_cast %259 : vector<32xf32> to vector<1x32xf32>
    %261 = vector.broadcast %260 : vector<1x32xf32> to vector<16x32xf32>
    %262 = arith.addf %257, %261 : vector<16x32xf32>
    %263 = arith.addf %233, %262 : vector<16x32xf32>
    %c0_103 = arith.constant 0 : index
    %c0_104 = arith.constant 0 : index
    %264 = vector.load %arg15[%c0_103, %c0_104] : memref<2x32xf32, #tpu.memory_space<vmem>>, vector<1x32xf32>
    %265 = vector.shape_cast %264 : vector<1x32xf32> to vector<32xf32>
    %c0_105 = arith.constant 0 : index
    %c0_106 = arith.constant 0 : index
    %266 = vector.load %arg16[%c0_105, %c0_106] : memref<2x32xf32, #tpu.memory_space<vmem>>, vector<1x32xf32>
    %267 = vector.shape_cast %266 : vector<1x32xf32> to vector<32xf32>
    %cst_107 = arith.constant dense<0.000000e+00> : vector<16xf32>
    %268 = vector.multi_reduction <add>, %263, %cst_107 [1] : vector<16x32xf32> to vector<16xf32>
    %269 = vector.shape_cast %268 : vector<16xf32> to vector<16x1xf32>
    %cst_108 = arith.constant 3.200000e+01 : f32
    %270 = vector.broadcast %cst_108 : f32 to vector<16x1xf32>
    %271 = arith.divf %269, %270 : vector<16x1xf32>
    %272 = vector.broadcast %271 : vector<16x1xf32> to vector<16x32xf32>
    %273 = arith.subf %263, %272 : vector<16x32xf32>
    %274 = arith.mulf %273, %273 : vector<16x32xf32>
    %cst_109 = arith.constant dense<0.000000e+00> : vector<16xf32>
    %275 = vector.multi_reduction <add>, %274, %cst_109 [1] : vector<16x32xf32> to vector<16xf32>
    %276 = vector.shape_cast %275 : vector<16xf32> to vector<16x1xf32>
    %cst_110 = arith.constant 3.200000e+01 : f32
    %277 = vector.broadcast %cst_110 : f32 to vector<16x1xf32>
    %278 = arith.divf %276, %277 : vector<16x1xf32>
    %279 = vector.broadcast %271 : vector<16x1xf32> to vector<16x32xf32>
    %280 = arith.subf %263, %279 : vector<16x32xf32>
    %cst_111 = arith.constant 9.99999996E-13 : f32
    %281 = vector.broadcast %cst_111 : f32 to vector<16x1xf32>
    %282 = arith.addf %278, %281 : vector<16x1xf32>
    %283 = math.rsqrt %282 : vector<16x1xf32>
    %284 = vector.broadcast %283 : vector<16x1xf32> to vector<16x32xf32>
    %285 = arith.mulf %280, %284 : vector<16x32xf32>
    %286 = vector.shape_cast %265 : vector<32xf32> to vector<1x32xf32>
    %287 = vector.broadcast %286 : vector<1x32xf32> to vector<16x32xf32>
    %288 = arith.mulf %285, %287 : vector<16x32xf32>
    %289 = vector.shape_cast %267 : vector<32xf32> to vector<1x32xf32>
    %290 = vector.broadcast %289 : vector<1x32xf32> to vector<16x32xf32>
    %291 = arith.addf %288, %290 : vector<16x32xf32>
    %c1 = arith.constant 1 : index
    %c0_112 = arith.constant 0 : index
    %c0_113 = arith.constant 0 : index
    %292 = vector.load %arg5[%c1, %c0_112, %c0_113] : memref<2x32x96xf32, #tpu.memory_space<vmem>>, vector<1x32x96xf32>
    %293 = vector.shape_cast %292 : vector<1x32x96xf32> to vector<32x96xf32>
    %cst_114 = arith.constant dense<0.000000e+00> : vector<16x96xf32>
    %294 = tpu.matmul %291, %293, %cst_114 {dimension_numbers = #tpu.dot_dimension_numbers<[1], [0], [0], [1], [0, 0, 1, 1], [], []>} : vector<16x32xf32>, vector<32x96xf32>, vector<16x96xf32> -> vector<16x96xf32>
    %c1_115 = arith.constant 1 : index
    %c0_116 = arith.constant 0 : index
    %295 = vector.load %arg6[%c1_115, %c0_116] : memref<2x96xf32, #tpu.memory_space<vmem>>, vector<1x96xf32>
    %296 = vector.shape_cast %295 : vector<1x96xf32> to vector<96xf32>
    %297 = vector.shape_cast %296 : vector<96xf32> to vector<1x96xf32>
    %298 = vector.broadcast %297 : vector<1x96xf32> to vector<16x96xf32>
    %299 = arith.addf %294, %298 : vector<16x96xf32>
    %300 = vector.extract_strided_slice %1 {offsets = [0, 0], sizes = [1, 8], strides = [1, 1]} : vector<2x8xf32> to vector<1x8xf32>
    %301 = vector.extract_strided_slice %299 {offsets = [0, 0], sizes = [8, 8], strides = [1, 1]} : vector<16x96xf32> to vector<8x8xf32>
    %302 = vector.extract_strided_slice %299 {offsets = [0, 32], sizes = [8, 8], strides = [1, 1]} : vector<16x96xf32> to vector<8x8xf32>
    %303 = vector.extract_strided_slice %299 {offsets = [0, 64], sizes = [8, 8], strides = [1, 1]} : vector<16x96xf32> to vector<8x8xf32>
    %cst_117 = arith.constant dense<0.000000e+00> : vector<8x8xf32>
    %304 = tpu.matmul %301, %302, %cst_117 {dimension_numbers = #tpu.dot_dimension_numbers<[1], [1], [0], [0], [0, 0, 1, 0], [], []>} : vector<8x8xf32>, vector<8x8xf32>, vector<8x8xf32> -> vector<8x8xf32>
    %cst_118 = arith.constant 0.353553385 : f32
    %305 = vector.broadcast %cst_118 : f32 to vector<8x8xf32>
    %306 = arith.mulf %304, %305 : vector<8x8xf32>
    %307 = vector.broadcast %300 : vector<1x8xf32> to vector<8x8xf32>
    %308 = arith.addf %306, %307 : vector<8x8xf32>
    %cst_119 = arith.constant dense<0xFF800000> : vector<8xf32>
    %309 = vector.multi_reduction <maximumf>, %308, %cst_119 [1] : vector<8x8xf32> to vector<8xf32>
    %310 = vector.shape_cast %309 : vector<8xf32> to vector<8x1xf32>
    %311 = vector.broadcast %310 : vector<8x1xf32> to vector<8x8xf32>
    %312 = arith.subf %308, %311 : vector<8x8xf32>
    %313 = math.exp %312 : vector<8x8xf32>
    %cst_120 = arith.constant dense<0.000000e+00> : vector<8xf32>
    %314 = vector.multi_reduction <add>, %313, %cst_120 [1] : vector<8x8xf32> to vector<8xf32>
    %315 = vector.shape_cast %314 : vector<8xf32> to vector<8x1xf32>
    %316 = tpu.reciprocal %315 {approx = true} : vector<8x1xf32> -> vector<8x1xf32>
    %317 = vector.broadcast %316 : vector<8x1xf32> to vector<8x8xf32>
    %318 = arith.mulf %313, %317 : vector<8x8xf32>
    %cst_121 = arith.constant dense<0.000000e+00> : vector<8x8xf32>
    %319 = tpu.matmul %318, %303, %cst_121 {dimension_numbers = #tpu.dot_dimension_numbers<[1], [0], [0], [1], [0, 0, 1, 1], [], []>} : vector<8x8xf32>, vector<8x8xf32>, vector<8x8xf32> -> vector<8x8xf32>
    %c0_122 = arith.constant 0 : index
    %c0_123 = arith.constant 0 : index
    %320 = vector.load %arg22[%c0_122, %c0_123] : memref<16x32xf32, #tpu.memory_space<vmem>>, vector<8x8xf32>
    tpu.vector_store %arg22[%c0_122, %c0_123], %319 {strides = array<i32>} : memref<16x32xf32, #tpu.memory_space<vmem>>, vector<8x8xf32>,
    %321 = vector.extract_strided_slice %299 {offsets = [0, 8], sizes = [8, 8], strides = [1, 1]} : vector<16x96xf32> to vector<8x8xf32>
    %322 = vector.extract_strided_slice %299 {offsets = [0, 40], sizes = [8, 8], strides = [1, 1]} : vector<16x96xf32> to vector<8x8xf32>
    %323 = vector.extract_strided_slice %299 {offsets = [0, 72], sizes = [8, 8], strides = [1, 1]} : vector<16x96xf32> to vector<8x8xf32>
    %cst_124 = arith.constant dense<0.000000e+00> : vector<8x8xf32>
    %324 = tpu.matmul %321, %322, %cst_124 {dimension_numbers = #tpu.dot_dimension_numbers<[1], [1], [0], [0], [0, 0, 1, 0], [], []>} : vector<8x8xf32>, vector<8x8xf32>, vector<8x8xf32> -> vector<8x8xf32>
    %cst_125 = arith.constant 0.353553385 : f32
    %325 = vector.broadcast %cst_125 : f32 to vector<8x8xf32>
    %326 = arith.mulf %324, %325 : vector<8x8xf32>
    %327 = vector.broadcast %300 : vector<1x8xf32> to vector<8x8xf32>
    %328 = arith.addf %326, %327 : vector<8x8xf32>
    %cst_126 = arith.constant dense<0xFF800000> : vector<8xf32>
    %329 = vector.multi_reduction <maximumf>, %328, %cst_126 [1] : vector<8x8xf32> to vector<8xf32>
    %330 = vector.shape_cast %329 : vector<8xf32> to vector<8x1xf32>
    %331 = vector.broadcast %330 : vector<8x1xf32> to vector<8x8xf32>
    %332 = arith.subf %328, %331 : vector<8x8xf32>
    %333 = math.exp %332 : vector<8x8xf32>
    %cst_127 = arith.constant dense<0.000000e+00> : vector<8xf32>
    %334 = vector.multi_reduction <add>, %333, %cst_127 [1] : vector<8x8xf32> to vector<8xf32>
    %335 = vector.shape_cast %334 : vector<8xf32> to vector<8x1xf32>
    %336 = tpu.reciprocal %335 {approx = true} : vector<8x1xf32> -> vector<8x1xf32>
    %337 = vector.broadcast %336 : vector<8x1xf32> to vector<8x8xf32>
    %338 = arith.mulf %333, %337 : vector<8x8xf32>
    %cst_128 = arith.constant dense<0.000000e+00> : vector<8x8xf32>
    %339 = tpu.matmul %338, %323, %cst_128 {dimension_numbers = #tpu.dot_dimension_numbers<[1], [0], [0], [1], [0, 0, 1, 1], [], []>} : vector<8x8xf32>, vector<8x8xf32>, vector<8x8xf32> -> vector<8x8xf32>
    %c0_129 = arith.constant 0 : index
    %c8_130 = arith.constant 8 : index
    %340 = vector.load %arg22[%c0_129, %c8_130] : memref<16x32xf32, #tpu.memory_space<vmem>>, vector<8x8xf32>
    tpu.vector_store %arg22[%c0_129, %c8_130], %339 {strides = array<i32>} : memref<16x32xf32, #tpu.memory_space<vmem>>, vector<8x8xf32>,
    %341 = vector.extract_strided_slice %299 {offsets = [0, 16], sizes = [8, 8], strides = [1, 1]} : vector<16x96xf32> to vector<8x8xf32>
    %342 = vector.extract_strided_slice %299 {offsets = [0, 48], sizes = [8, 8], strides = [1, 1]} : vector<16x96xf32> to vector<8x8xf32>
    %343 = vector.extract_strided_slice %299 {offsets = [0, 80], sizes = [8, 8], strides = [1, 1]} : vector<16x96xf32> to vector<8x8xf32>
    %cst_131 = arith.constant dense<0.000000e+00> : vector<8x8xf32>
    %344 = tpu.matmul %341, %342, %cst_131 {dimension_numbers = #tpu.dot_dimension_numbers<[1], [1], [0], [0], [0, 0, 1, 0], [], []>} : vector<8x8xf32>, vector<8x8xf32>, vector<8x8xf32> -> vector<8x8xf32>
    %cst_132 = arith.constant 0.353553385 : f32
    %345 = vector.broadcast %cst_132 : f32 to vector<8x8xf32>
    %346 = arith.mulf %344, %345 : vector<8x8xf32>
    %347 = vector.broadcast %300 : vector<1x8xf32> to vector<8x8xf32>
    %348 = arith.addf %346, %347 : vector<8x8xf32>
    %cst_133 = arith.constant dense<0xFF800000> : vector<8xf32>
    %349 = vector.multi_reduction <maximumf>, %348, %cst_133 [1] : vector<8x8xf32> to vector<8xf32>
    %350 = vector.shape_cast %349 : vector<8xf32> to vector<8x1xf32>
    %351 = vector.broadcast %350 : vector<8x1xf32> to vector<8x8xf32>
    %352 = arith.subf %348, %351 : vector<8x8xf32>
    %353 = math.exp %352 : vector<8x8xf32>
    %cst_134 = arith.constant dense<0.000000e+00> : vector<8xf32>
    %354 = vector.multi_reduction <add>, %353, %cst_134 [1] : vector<8x8xf32> to vector<8xf32>
    %355 = vector.shape_cast %354 : vector<8xf32> to vector<8x1xf32>
    %356 = tpu.reciprocal %355 {approx = true} : vector<8x1xf32> -> vector<8x1xf32>
    %357 = vector.broadcast %356 : vector<8x1xf32> to vector<8x8xf32>
    %358 = arith.mulf %353, %357 : vector<8x8xf32>
    %cst_135 = arith.constant dense<0.000000e+00> : vector<8x8xf32>
    %359 = tpu.matmul %358, %343, %cst_135 {dimension_numbers = #tpu.dot_dimension_numbers<[1], [0], [0], [1], [0, 0, 1, 1], [], []>} : vector<8x8xf32>, vector<8x8xf32>, vector<8x8xf32> -> vector<8x8xf32>
    %c0_136 = arith.constant 0 : index
    %c16_137 = arith.constant 16 : index
    %360 = vector.load %arg22[%c0_136, %c16_137] : memref<16x32xf32, #tpu.memory_space<vmem>>, vector<8x8xf32>
    tpu.vector_store %arg22[%c0_136, %c16_137], %359 {strides = array<i32>} : memref<16x32xf32, #tpu.memory_space<vmem>>, vector<8x8xf32>,
    %361 = vector.extract_strided_slice %299 {offsets = [0, 24], sizes = [8, 8], strides = [1, 1]} : vector<16x96xf32> to vector<8x8xf32>
    %362 = vector.extract_strided_slice %299 {offsets = [0, 56], sizes = [8, 8], strides = [1, 1]} : vector<16x96xf32> to vector<8x8xf32>
    %363 = vector.extract_strided_slice %299 {offsets = [0, 88], sizes = [8, 8], strides = [1, 1]} : vector<16x96xf32> to vector<8x8xf32>
    %cst_138 = arith.constant dense<0.000000e+00> : vector<8x8xf32>
    %364 = tpu.matmul %361, %362, %cst_138 {dimension_numbers = #tpu.dot_dimension_numbers<[1], [1], [0], [0], [0, 0, 1, 0], [], []>} : vector<8x8xf32>, vector<8x8xf32>, vector<8x8xf32> -> vector<8x8xf32>
    %cst_139 = arith.constant 0.353553385 : f32
    %365 = vector.broadcast %cst_139 : f32 to vector<8x8xf32>
    %366 = arith.mulf %364, %365 : vector<8x8xf32>
    %367 = vector.broadcast %300 : vector<1x8xf32> to vector<8x8xf32>
    %368 = arith.addf %366, %367 : vector<8x8xf32>
    %cst_140 = arith.constant dense<0xFF800000> : vector<8xf32>
    %369 = vector.multi_reduction <maximumf>, %368, %cst_140 [1] : vector<8x8xf32> to vector<8xf32>
    %370 = vector.shape_cast %369 : vector<8xf32> to vector<8x1xf32>
    %371 = vector.broadcast %370 : vector<8x1xf32> to vector<8x8xf32>
    %372 = arith.subf %368, %371 : vector<8x8xf32>
    %373 = math.exp %372 : vector<8x8xf32>
    %cst_141 = arith.constant dense<0.000000e+00> : vector<8xf32>
    %374 = vector.multi_reduction <add>, %373, %cst_141 [1] : vector<8x8xf32> to vector<8xf32>
    %375 = vector.shape_cast %374 : vector<8xf32> to vector<8x1xf32>
    %376 = tpu.reciprocal %375 {approx = true} : vector<8x1xf32> -> vector<8x1xf32>
    %377 = vector.broadcast %376 : vector<8x1xf32> to vector<8x8xf32>
    %378 = arith.mulf %373, %377 : vector<8x8xf32>
    %cst_142 = arith.constant dense<0.000000e+00> : vector<8x8xf32>
    %379 = tpu.matmul %378, %363, %cst_142 {dimension_numbers = #tpu.dot_dimension_numbers<[1], [0], [0], [1], [0, 0, 1, 1], [], []>} : vector<8x8xf32>, vector<8x8xf32>, vector<8x8xf32> -> vector<8x8xf32>
    %c0_143 = arith.constant 0 : index
    %c24_144 = arith.constant 24 : index
    %380 = vector.load %arg22[%c0_143, %c24_144] : memref<16x32xf32, #tpu.memory_space<vmem>>, vector<8x8xf32>
    tpu.vector_store %arg22[%c0_143, %c24_144], %379 {strides = array<i32>} : memref<16x32xf32, #tpu.memory_space<vmem>>, vector<8x8xf32>,
    %381 = vector.extract_strided_slice %1 {offsets = [1, 0], sizes = [1, 8], strides = [1, 1]} : vector<2x8xf32> to vector<1x8xf32>
    %382 = vector.extract_strided_slice %299 {offsets = [8, 0], sizes = [8, 8], strides = [1, 1]} : vector<16x96xf32> to vector<8x8xf32>
    %383 = vector.extract_strided_slice %299 {offsets = [8, 32], sizes = [8, 8], strides = [1, 1]} : vector<16x96xf32> to vector<8x8xf32>
    %384 = vector.extract_strided_slice %299 {offsets = [8, 64], sizes = [8, 8], strides = [1, 1]} : vector<16x96xf32> to vector<8x8xf32>
    %cst_145 = arith.constant dense<0.000000e+00> : vector<8x8xf32>
    %385 = tpu.matmul %382, %383, %cst_145 {dimension_numbers = #tpu.dot_dimension_numbers<[1], [1], [0], [0], [0, 0, 1, 0], [], []>} : vector<8x8xf32>, vector<8x8xf32>, vector<8x8xf32> -> vector<8x8xf32>
    %cst_146 = arith.constant 0.353553385 : f32
    %386 = vector.broadcast %cst_146 : f32 to vector<8x8xf32>
    %387 = arith.mulf %385, %386 : vector<8x8xf32>
    %388 = vector.broadcast %381 : vector<1x8xf32> to vector<8x8xf32>
    %389 = arith.addf %387, %388 : vector<8x8xf32>
    %cst_147 = arith.constant dense<0xFF800000> : vector<8xf32>
    %390 = vector.multi_reduction <maximumf>, %389, %cst_147 [1] : vector<8x8xf32> to vector<8xf32>
    %391 = vector.shape_cast %390 : vector<8xf32> to vector<8x1xf32>
    %392 = vector.broadcast %391 : vector<8x1xf32> to vector<8x8xf32>
    %393 = arith.subf %389, %392 : vector<8x8xf32>
    %394 = math.exp %393 : vector<8x8xf32>
    %cst_148 = arith.constant dense<0.000000e+00> : vector<8xf32>
    %395 = vector.multi_reduction <add>, %394, %cst_148 [1] : vector<8x8xf32> to vector<8xf32>
    %396 = vector.shape_cast %395 : vector<8xf32> to vector<8x1xf32>
    %397 = tpu.reciprocal %396 {approx = true} : vector<8x1xf32> -> vector<8x1xf32>
    %398 = vector.broadcast %397 : vector<8x1xf32> to vector<8x8xf32>
    %399 = arith.mulf %394, %398 : vector<8x8xf32>
    %cst_149 = arith.constant dense<0.000000e+00> : vector<8x8xf32>
    %400 = tpu.matmul %399, %384, %cst_149 {dimension_numbers = #tpu.dot_dimension_numbers<[1], [0], [0], [1], [0, 0, 1, 1], [], []>} : vector<8x8xf32>, vector<8x8xf32>, vector<8x8xf32> -> vector<8x8xf32>
    %c8_150 = arith.constant 8 : index
    %c0_151 = arith.constant 0 : index
    %401 = vector.load %arg22[%c8_150, %c0_151] : memref<16x32xf32, #tpu.memory_space<vmem>>, vector<8x8xf32>
    tpu.vector_store %arg22[%c8_150, %c0_151], %400 {strides = array<i32>} : memref<16x32xf32, #tpu.memory_space<vmem>>, vector<8x8xf32>,
    %402 = vector.extract_strided_slice %299 {offsets = [8, 8], sizes = [8, 8], strides = [1, 1]} : vector<16x96xf32> to vector<8x8xf32>
    %403 = vector.extract_strided_slice %299 {offsets = [8, 40], sizes = [8, 8], strides = [1, 1]} : vector<16x96xf32> to vector<8x8xf32>
    %404 = vector.extract_strided_slice %299 {offsets = [8, 72], sizes = [8, 8], strides = [1, 1]} : vector<16x96xf32> to vector<8x8xf32>
    %cst_152 = arith.constant dense<0.000000e+00> : vector<8x8xf32>
    %405 = tpu.matmul %402, %403, %cst_152 {dimension_numbers = #tpu.dot_dimension_numbers<[1], [1], [0], [0], [0, 0, 1, 0], [], []>} : vector<8x8xf32>, vector<8x8xf32>, vector<8x8xf32> -> vector<8x8xf32>
    %cst_153 = arith.constant 0.353553385 : f32
    %406 = vector.broadcast %cst_153 : f32 to vector<8x8xf32>
    %407 = arith.mulf %405, %406 : vector<8x8xf32>
    %408 = vector.broadcast %381 : vector<1x8xf32> to vector<8x8xf32>
    %409 = arith.addf %407, %408 : vector<8x8xf32>
    %cst_154 = arith.constant dense<0xFF800000> : vector<8xf32>
    %410 = vector.multi_reduction <maximumf>, %409, %cst_154 [1] : vector<8x8xf32> to vector<8xf32>
    %411 = vector.shape_cast %410 : vector<8xf32> to vector<8x1xf32>
    %412 = vector.broadcast %411 : vector<8x1xf32> to vector<8x8xf32>
    %413 = arith.subf %409, %412 : vector<8x8xf32>
    %414 = math.exp %413 : vector<8x8xf32>
    %cst_155 = arith.constant dense<0.000000e+00> : vector<8xf32>
    %415 = vector.multi_reduction <add>, %414, %cst_155 [1] : vector<8x8xf32> to vector<8xf32>
    %416 = vector.shape_cast %415 : vector<8xf32> to vector<8x1xf32>
    %417 = tpu.reciprocal %416 {approx = true} : vector<8x1xf32> -> vector<8x1xf32>
    %418 = vector.broadcast %417 : vector<8x1xf32> to vector<8x8xf32>
    %419 = arith.mulf %414, %418 : vector<8x8xf32>
    %cst_156 = arith.constant dense<0.000000e+00> : vector<8x8xf32>
    %420 = tpu.matmul %419, %404, %cst_156 {dimension_numbers = #tpu.dot_dimension_numbers<[1], [0], [0], [1], [0, 0, 1, 1], [], []>} : vector<8x8xf32>, vector<8x8xf32>, vector<8x8xf32> -> vector<8x8xf32>
    %c8_157 = arith.constant 8 : index
    %c8_158 = arith.constant 8 : index
    %421 = vector.load %arg22[%c8_157, %c8_158] : memref<16x32xf32, #tpu.memory_space<vmem>>, vector<8x8xf32>
    tpu.vector_store %arg22[%c8_157, %c8_158], %420 {strides = array<i32>} : memref<16x32xf32, #tpu.memory_space<vmem>>, vector<8x8xf32>,
    %422 = vector.extract_strided_slice %299 {offsets = [8, 16], sizes = [8, 8], strides = [1, 1]} : vector<16x96xf32> to vector<8x8xf32>
    %423 = vector.extract_strided_slice %299 {offsets = [8, 48], sizes = [8, 8], strides = [1, 1]} : vector<16x96xf32> to vector<8x8xf32>
    %424 = vector.extract_strided_slice %299 {offsets = [8, 80], sizes = [8, 8], strides = [1, 1]} : vector<16x96xf32> to vector<8x8xf32>
    %cst_159 = arith.constant dense<0.000000e+00> : vector<8x8xf32>
    %425 = tpu.matmul %422, %423, %cst_159 {dimension_numbers = #tpu.dot_dimension_numbers<[1], [1], [0], [0], [0, 0, 1, 0], [], []>} : vector<8x8xf32>, vector<8x8xf32>, vector<8x8xf32> -> vector<8x8xf32>
    %cst_160 = arith.constant 0.353553385 : f32
    %426 = vector.broadcast %cst_160 : f32 to vector<8x8xf32>
    %427 = arith.mulf %425, %426 : vector<8x8xf32>
    %428 = vector.broadcast %381 : vector<1x8xf32> to vector<8x8xf32>
    %429 = arith.addf %427, %428 : vector<8x8xf32>
    %cst_161 = arith.constant dense<0xFF800000> : vector<8xf32>
    %430 = vector.multi_reduction <maximumf>, %429, %cst_161 [1] : vector<8x8xf32> to vector<8xf32>
    %431 = vector.shape_cast %430 : vector<8xf32> to vector<8x1xf32>
    %432 = vector.broadcast %431 : vector<8x1xf32> to vector<8x8xf32>
    %433 = arith.subf %429, %432 : vector<8x8xf32>
    %434 = math.exp %433 : vector<8x8xf32>
    %cst_162 = arith.constant dense<0.000000e+00> : vector<8xf32>
    %435 = vector.multi_reduction <add>, %434, %cst_162 [1] : vector<8x8xf32> to vector<8xf32>
    %436 = vector.shape_cast %435 : vector<8xf32> to vector<8x1xf32>
    %437 = tpu.reciprocal %436 {approx = true} : vector<8x1xf32> -> vector<8x1xf32>
    %438 = vector.broadcast %437 : vector<8x1xf32> to vector<8x8xf32>
    %439 = arith.mulf %434, %438 : vector<8x8xf32>
    %cst_163 = arith.constant dense<0.000000e+00> : vector<8x8xf32>
    %440 = tpu.matmul %439, %424, %cst_163 {dimension_numbers = #tpu.dot_dimension_numbers<[1], [0], [0], [1], [0, 0, 1, 1], [], []>} : vector<8x8xf32>, vector<8x8xf32>, vector<8x8xf32> -> vector<8x8xf32>
    %c8_164 = arith.constant 8 : index
    %c16_165 = arith.constant 16 : index
    %441 = vector.load %arg22[%c8_164, %c16_165] : memref<16x32xf32, #tpu.memory_space<vmem>>, vector<8x8xf32>
    tpu.vector_store %arg22[%c8_164, %c16_165], %440 {strides = array<i32>} : memref<16x32xf32, #tpu.memory_space<vmem>>, vector<8x8xf32>,
    %442 = vector.extract_strided_slice %299 {offsets = [8, 24], sizes = [8, 8], strides = [1, 1]} : vector<16x96xf32> to vector<8x8xf32>
    %443 = vector.extract_strided_slice %299 {offsets = [8, 56], sizes = [8, 8], strides = [1, 1]} : vector<16x96xf32> to vector<8x8xf32>
    %444 = vector.extract_strided_slice %299 {offsets = [8, 88], sizes = [8, 8], strides = [1, 1]} : vector<16x96xf32> to vector<8x8xf32>
    %cst_166 = arith.constant dense<0.000000e+00> : vector<8x8xf32>
    %445 = tpu.matmul %442, %443, %cst_166 {dimension_numbers = #tpu.dot_dimension_numbers<[1], [1], [0], [0], [0, 0, 1, 0], [], []>} : vector<8x8xf32>, vector<8x8xf32>, vector<8x8xf32> -> vector<8x8xf32>
    %cst_167 = arith.constant 0.353553385 : f32
    %446 = vector.broadcast %cst_167 : f32 to vector<8x8xf32>
    %447 = arith.mulf %445, %446 : vector<8x8xf32>
    %448 = vector.broadcast %381 : vector<1x8xf32> to vector<8x8xf32>
    %449 = arith.addf %447, %448 : vector<8x8xf32>
    %cst_168 = arith.constant dense<0xFF800000> : vector<8xf32>
    %450 = vector.multi_reduction <maximumf>, %449, %cst_168 [1] : vector<8x8xf32> to vector<8xf32>
    %451 = vector.shape_cast %450 : vector<8xf32> to vector<8x1xf32>
    %452 = vector.broadcast %451 : vector<8x1xf32> to vector<8x8xf32>
    %453 = arith.subf %449, %452 : vector<8x8xf32>
    %454 = math.exp %453 : vector<8x8xf32>
    %cst_169 = arith.constant dense<0.000000e+00> : vector<8xf32>
    %455 = vector.multi_reduction <add>, %454, %cst_169 [1] : vector<8x8xf32> to vector<8xf32>
    %456 = vector.shape_cast %455 : vector<8xf32> to vector<8x1xf32>
    %457 = tpu.reciprocal %456 {approx = true} : vector<8x1xf32> -> vector<8x1xf32>
    %458 = vector.broadcast %457 : vector<8x1xf32> to vector<8x8xf32>
    %459 = arith.mulf %454, %458 : vector<8x8xf32>
    %cst_170 = arith.constant dense<0.000000e+00> : vector<8x8xf32>
    %460 = tpu.matmul %459, %444, %cst_170 {dimension_numbers = #tpu.dot_dimension_numbers<[1], [0], [0], [1], [0, 0, 1, 1], [], []>} : vector<8x8xf32>, vector<8x8xf32>, vector<8x8xf32> -> vector<8x8xf32>
    %c8_171 = arith.constant 8 : index
    %c24_172 = arith.constant 24 : index
    %461 = vector.load %arg22[%c8_171, %c24_172] : memref<16x32xf32, #tpu.memory_space<vmem>>, vector<8x8xf32>
    tpu.vector_store %arg22[%c8_171, %c24_172], %460 {strides = array<i32>} : memref<16x32xf32, #tpu.memory_space<vmem>>, vector<8x8xf32>,
    %c0_173 = arith.constant 0 : index
    %c0_174 = arith.constant 0 : index
    %462 = vector.load %arg22[%c0_173, %c0_174] : memref<16x32xf32, #tpu.memory_space<vmem>>, vector<16x32xf32>
    %c1_175 = arith.constant 1 : index
    %c0_176 = arith.constant 0 : index
    %c0_177 = arith.constant 0 : index
    %463 = vector.load %arg7[%c1_175, %c0_176, %c0_177] : memref<2x32x32xf32, #tpu.memory_space<vmem>>, vector<1x32x32xf32>
    %464 = vector.shape_cast %463 : vector<1x32x32xf32> to vector<32x32xf32>
    %cst_178 = arith.constant dense<0.000000e+00> : vector<16x32xf32>
    %465 = tpu.matmul %462, %464, %cst_178 {dimension_numbers = #tpu.dot_dimension_numbers<[1], [0], [0], [1], [0, 0, 1, 1], [], []>} : vector<16x32xf32>, vector<32x32xf32>, vector<16x32xf32> -> vector<16x32xf32>
    %c1_179 = arith.constant 1 : index
    %c0_180 = arith.constant 0 : index
    %466 = vector.load %arg8[%c1_179, %c0_180] : memref<2x32xf32, #tpu.memory_space<vmem>>, vector<1x32xf32>
    %467 = vector.shape_cast %466 : vector<1x32xf32> to vector<32xf32>
    %468 = vector.shape_cast %467 : vector<32xf32> to vector<1x32xf32>
    %469 = vector.broadcast %468 : vector<1x32xf32> to vector<16x32xf32>
    %470 = arith.addf %465, %469 : vector<16x32xf32>
    %471 = arith.addf %291, %470 : vector<16x32xf32>
    %c1_181 = arith.constant 1 : index
    %c0_182 = arith.constant 0 : index
    %472 = vector.load %arg9[%c1_181, %c0_182] : memref<2x32xf32, #tpu.memory_space<vmem>>, vector<1x32xf32>
    %473 = vector.shape_cast %472 : vector<1x32xf32> to vector<32xf32>
    %c1_183 = arith.constant 1 : index
    %c0_184 = arith.constant 0 : index
    %474 = vector.load %arg10[%c1_183, %c0_184] : memref<2x32xf32, #tpu.memory_space<vmem>>, vector<1x32xf32>
    %475 = vector.shape_cast %474 : vector<1x32xf32> to vector<32xf32>
    %cst_185 = arith.constant dense<0.000000e+00> : vector<16xf32>
    %476 = vector.multi_reduction <add>, %471, %cst_185 [1] : vector<16x32xf32> to vector<16xf32>
    %477 = vector.shape_cast %476 : vector<16xf32> to vector<16x1xf32>
    %cst_186 = arith.constant 3.200000e+01 : f32
    %478 = vector.broadcast %cst_186 : f32 to vector<16x1xf32>
    %479 = arith.divf %477, %478 : vector<16x1xf32>
    %480 = vector.broadcast %479 : vector<16x1xf32> to vector<16x32xf32>
    %481 = arith.subf %471, %480 : vector<16x32xf32>
    %482 = arith.mulf %481, %481 : vector<16x32xf32>
    %cst_187 = arith.constant dense<0.000000e+00> : vector<16xf32>
    %483 = vector.multi_reduction <add>, %482, %cst_187 [1] : vector<16x32xf32> to vector<16xf32>
    %484 = vector.shape_cast %483 : vector<16xf32> to vector<16x1xf32>
    %cst_188 = arith.constant 3.200000e+01 : f32
    %485 = vector.broadcast %cst_188 : f32 to vector<16x1xf32>
    %486 = arith.divf %484, %485 : vector<16x1xf32>
    %487 = vector.broadcast %479 : vector<16x1xf32> to vector<16x32xf32>
    %488 = arith.subf %471, %487 : vector<16x32xf32>
    %cst_189 = arith.constant 9.99999996E-13 : f32
    %489 = vector.broadcast %cst_189 : f32 to vector<16x1xf32>
    %490 = arith.addf %486, %489 : vector<16x1xf32>
    %491 = math.rsqrt %490 : vector<16x1xf32>
    %492 = vector.broadcast %491 : vector<16x1xf32> to vector<16x32xf32>
    %493 = arith.mulf %488, %492 : vector<16x32xf32>
    %494 = vector.shape_cast %473 : vector<32xf32> to vector<1x32xf32>
    %495 = vector.broadcast %494 : vector<1x32xf32> to vector<16x32xf32>
    %496 = arith.mulf %493, %495 : vector<16x32xf32>
    %497 = vector.shape_cast %475 : vector<32xf32> to vector<1x32xf32>
    %498 = vector.broadcast %497 : vector<1x32xf32> to vector<16x32xf32>
    %499 = arith.addf %496, %498 : vector<16x32xf32>
    %c1_190 = arith.constant 1 : index
    %c0_191 = arith.constant 0 : index
    %c0_192 = arith.constant 0 : index
    %500 = vector.load %arg11[%c1_190, %c0_191, %c0_192] : memref<2x32x64xf32, #tpu.memory_space<vmem>>, vector<1x32x64xf32>
    %501 = vector.shape_cast %500 : vector<1x32x64xf32> to vector<32x64xf32>
    %cst_193 = arith.constant dense<0.000000e+00> : vector<16x64xf32>
    %502 = tpu.matmul %499, %501, %cst_193 {dimension_numbers = #tpu.dot_dimension_numbers<[1], [0], [0], [1], [0, 0, 1, 1], [], []>} : vector<16x32xf32>, vector<32x64xf32>, vector<16x64xf32> -> vector<16x64xf32>
    %c1_194 = arith.constant 1 : index
    %c0_195 = arith.constant 0 : index
    %503 = vector.load %arg12[%c1_194, %c0_195] : memref<2x64xf32, #tpu.memory_space<vmem>>, vector<1x64xf32>
    %504 = vector.shape_cast %503 : vector<1x64xf32> to vector<64xf32>
    %505 = vector.shape_cast %504 : vector<64xf32> to vector<1x64xf32>
    %506 = vector.broadcast %505 : vector<1x64xf32> to vector<16x64xf32>
    %507 = arith.addf %502, %506 : vector<16x64xf32>
    %508 = arith.mulf %507, %507 : vector<16x64xf32>
    %509 = arith.mulf %507, %508 : vector<16x64xf32>
    %cst_196 = arith.constant 4.471500e-02 : f32
    %510 = vector.broadcast %cst_196 : f32 to vector<16x64xf32>
    %511 = arith.mulf %510, %509 : vector<16x64xf32>
    %512 = arith.addf %507, %511 : vector<16x64xf32>
    %cst_197 = arith.constant 0.797884583 : f32
    %513 = vector.broadcast %cst_197 : f32 to vector<16x64xf32>
    %514 = arith.mulf %513, %512 : vector<16x64xf32>
    %515 = math.tanh %514 : vector<16x64xf32>
    %cst_198 = arith.constant 1.000000e+00 : f32
    %516 = vector.broadcast %cst_198 : f32 to vector<16x64xf32>
    %517 = arith.addf %516, %515 : vector<16x64xf32>
    %cst_199 = arith.constant 5.000000e-01 : f32
    %518 = vector.broadcast %cst_199 : f32 to vector<16x64xf32>
    %519 = arith.mulf %518, %517 : vector<16x64xf32>
    %520 = arith.mulf %507, %519 : vector<16x64xf32>
    %c1_200 = arith.constant 1 : index
    %c0_201 = arith.constant 0 : index
    %c0_202 = arith.constant 0 : index
    %521 = vector.load %arg13[%c1_200, %c0_201, %c0_202] : memref<2x64x32xf32, #tpu.memory_space<vmem>>, vector<1x64x32xf32>
    %522 = vector.shape_cast %521 : vector<1x64x32xf32> to vector<64x32xf32>
    %cst_203 = arith.constant dense<0.000000e+00> : vector<16x32xf32>
    %523 = tpu.matmul %520, %522, %cst_203 {dimension_numbers = #tpu.dot_dimension_numbers<[1], [0], [0], [1], [0, 0, 1, 1], [], []>} : vector<16x64xf32>, vector<64x32xf32>, vector<16x32xf32> -> vector<16x32xf32>
    %c1_204 = arith.constant 1 : index
    %c0_205 = arith.constant 0 : index
    %524 = vector.load %arg14[%c1_204, %c0_205] : memref<2x32xf32, #tpu.memory_space<vmem>>, vector<1x32xf32>
    %525 = vector.shape_cast %524 : vector<1x32xf32> to vector<32xf32>
    %526 = vector.shape_cast %525 : vector<32xf32> to vector<1x32xf32>
    %527 = vector.broadcast %526 : vector<1x32xf32> to vector<16x32xf32>
    %528 = arith.addf %523, %527 : vector<16x32xf32>
    %529 = arith.addf %499, %528 : vector<16x32xf32>
    %c1_206 = arith.constant 1 : index
    %c0_207 = arith.constant 0 : index
    %530 = vector.load %arg15[%c1_206, %c0_207] : memref<2x32xf32, #tpu.memory_space<vmem>>, vector<1x32xf32>
    %531 = vector.shape_cast %530 : vector<1x32xf32> to vector<32xf32>
    %c1_208 = arith.constant 1 : index
    %c0_209 = arith.constant 0 : index
    %532 = vector.load %arg16[%c1_208, %c0_209] : memref<2x32xf32, #tpu.memory_space<vmem>>, vector<1x32xf32>
    %533 = vector.shape_cast %532 : vector<1x32xf32> to vector<32xf32>
    %cst_210 = arith.constant dense<0.000000e+00> : vector<16xf32>
    %534 = vector.multi_reduction <add>, %529, %cst_210 [1] : vector<16x32xf32> to vector<16xf32>
    %535 = vector.shape_cast %534 : vector<16xf32> to vector<16x1xf32>
    %cst_211 = arith.constant 3.200000e+01 : f32
    %536 = vector.broadcast %cst_211 : f32 to vector<16x1xf32>
    %537 = arith.divf %535, %536 : vector<16x1xf32>
    %538 = vector.broadcast %537 : vector<16x1xf32> to vector<16x32xf32>
    %539 = arith.subf %529, %538 : vector<16x32xf32>
    %540 = arith.mulf %539, %539 : vector<16x32xf32>
    %cst_212 = arith.constant dense<0.000000e+00> : vector<16xf32>
    %541 = vector.multi_reduction <add>, %540, %cst_212 [1] : vector<16x32xf32> to vector<16xf32>
    %542 = vector.shape_cast %541 : vector<16xf32> to vector<16x1xf32>
    %cst_213 = arith.constant 3.200000e+01 : f32
    %543 = vector.broadcast %cst_213 : f32 to vector<16x1xf32>
    %544 = arith.divf %542, %543 : vector<16x1xf32>
    %545 = vector.broadcast %537 : vector<16x1xf32> to vector<16x32xf32>
    %546 = arith.subf %529, %545 : vector<16x32xf32>
    %cst_214 = arith.constant 9.99999996E-13 : f32
    %547 = vector.broadcast %cst_214 : f32 to vector<16x1xf32>
    %548 = arith.addf %544, %547 : vector<16x1xf32>
    %549 = math.rsqrt %548 : vector<16x1xf32>
    %550 = vector.broadcast %549 : vector<16x1xf32> to vector<16x32xf32>
    %551 = arith.mulf %546, %550 : vector<16x32xf32>
    %552 = vector.shape_cast %531 : vector<32xf32> to vector<1x32xf32>
    %553 = vector.broadcast %552 : vector<1x32xf32> to vector<16x32xf32>
    %554 = arith.mulf %551, %553 : vector<16x32xf32>
    %555 = vector.shape_cast %533 : vector<32xf32> to vector<1x32xf32>
    %556 = vector.broadcast %555 : vector<1x32xf32> to vector<16x32xf32>
    %557 = arith.addf %554, %556 : vector<16x32xf32>
    %558 = vector.extract_strided_slice %557 {offsets = [0, 0], sizes = [1, 32], strides = [1, 1]} : vector<16x32xf32> to vector<1x32xf32>
    %c0_215 = arith.constant 0 : index
    %c0_216 = arith.constant 0 : index
    %559 = vector.load %arg23[%c0_215, %c0_216] : memref<2x32xf32, #tpu.memory_space<vmem>>, vector<1x32xf32>
    tpu.vector_store %arg23[%c0_215, %c0_216], %558 {strides = array<i32>} : memref<2x32xf32, #tpu.memory_space<vmem>>, vector<1x32xf32>,
    %560 = vector.extract_strided_slice %557 {offsets = [8, 0], sizes = [1, 32], strides = [1, 1]} : vector<16x32xf32> to vector<1x32xf32>
    %c1_217 = arith.constant 1 : index
    %c0_218 = arith.constant 0 : index
    %561 = vector.load %arg23[%c1_217, %c0_218] : memref<2x32xf32, #tpu.memory_space<vmem>>, vector<1x32xf32>
    tpu.vector_store %arg23[%c1_217, %c0_218], %560 {strides = array<i32>} : memref<2x32xf32, #tpu.memory_space<vmem>>, vector<1x32xf32>,
    %c0_219 = arith.constant 0 : index
    %c0_220 = arith.constant 0 : index
    %562 = vector.load %arg23[%c0_219, %c0_220] : memref<2x32xf32, #tpu.memory_space<vmem>>, vector<2x32xf32>
    %c0_221 = arith.constant 0 : index
    %c0_222 = arith.constant 0 : index
    %563 = vector.load %arg17[%c0_221, %c0_222] : memref<32x32xf32, #tpu.memory_space<vmem>>, vector<32x32xf32>
    %cst_223 = arith.constant dense<0.000000e+00> : vector<2x32xf32>
    %564 = tpu.matmul %562, %563, %cst_223 {dimension_numbers = #tpu.dot_dimension_numbers<[1], [0], [0], [1], [0, 0, 1, 1], [], []>} : vector<2x32xf32>, vector<32x32xf32>, vector<2x32xf32> -> vector<2x32xf32>
    %c0_224 = arith.constant 0 : index
    %c0_225 = arith.constant 0 : index
    %565 = vector.load %arg18[%c0_224, %c0_225] : memref<1x32xf32, #tpu.memory_space<vmem>>, vector<1x32xf32>
    %566 = vector.broadcast %565 : vector<1x32xf32> to vector<2x32xf32>
    %567 = arith.addf %564, %566 : vector<2x32xf32>
    %568 = math.tanh %567 : vector<2x32xf32>
    %c0_226 = arith.constant 0 : index
    %c0_227 = arith.constant 0 : index
    %569 = vector.load %arg19[%c0_226, %c0_227] : memref<32x2xf32, #tpu.memory_space<vmem>>, vector<32x2xf32>
    %cst_228 = arith.constant dense<0.000000e+00> : vector<2x2xf32>
    %570 = tpu.matmul %568, %569, %cst_228 {dimension_numbers = #tpu.dot_dimension_numbers<[1], [0], [0], [1], [0, 0, 1, 1], [], []>} : vector<2x32xf32>, vector<32x2xf32>, vector<2x2xf32> -> vector<2x2xf32>
    %c0_229 = arith.constant 0 : index
    %c0_230 = arith.constant 0 : index
    %571 = vector.load %arg20[%c0_229, %c0_230] : memref<1x2xf32, #tpu.memory_space<vmem>>, vector<1x2xf32>
    %572 = vector.broadcast %571 : vector<1x2xf32> to vector<2x2xf32>
    %573 = arith.addf %570, %572 : vector<2x2xf32>
    %cst_231 = arith.constant dense<0xFF800000> : vector<2xf32>
    %574 = vector.multi_reduction <maximumf>, %573, %cst_231 [1] : vector<2x2xf32> to vector<2xf32>
    %575 = vector.shape_cast %574 : vector<2xf32> to vector<2x1xf32>
    %576 = vector.broadcast %575 : vector<2x1xf32> to vector<2x2xf32>
    %577 = arith.subf %573, %576 : vector<2x2xf32>
    %578 = math.exp %577 : vector<2x2xf32>
    %cst_232 = arith.constant dense<0.000000e+00> : vector<2xf32>
    %579 = vector.multi_reduction <add>, %578, %cst_232 [1] : vector<2x2xf32> to vector<2xf32>
    %580 = vector.shape_cast %579 : vector<2xf32> to vector<2x1xf32>
    %581 = vector.broadcast %580 : vector<2x1xf32> to vector<2x2xf32>
    %582 = arith.divf %578, %581 : vector<2x2xf32>
    %c0_233 = arith.constant 0 : index
    %c0_234 = arith.constant 0 : index
    %583 = vector.load %arg21[%c0_233, %c0_234] : memref<2x2xf32, #tpu.memory_space<vmem>>, vector<2x2xf32>
    tpu.vector_store %arg21[%c0_233, %c0_234], %582 {strides = array<i32>} : memref<2x2xf32, #tpu.memory_space<vmem>>, vector<2x2xf32>,
    return
  }
  func.func @transform_0(%arg0: i32) -> (i32, i32) {
    %c0_i32 = arith.constant 0 : i32
    %c0_i32_0 = arith.constant 0 : i32
    %c0_i32_1 = arith.constant 0 : i32
    return %c0_i32, %c0_i32_0 : i32, i32
  }
  func.func @transform_1(%arg0: i32) -> (i32, i32) {
    %c0_i32 = arith.constant 0 : i32
    %c0_i32_0 = arith.constant 0 : i32
    %c0_i32_1 = arith.constant 0 : i32
    return %c0_i32, %c0_i32_0 : i32, i32
  }
  func.func @transform_2(%arg0: i32) -> (i32, i32) {
    %c0_i32 = arith.constant 0 : i32
    %c0_i32_0 = arith.constant 0 : i32
    %c0_i32_1 = arith.constant 0 : i32
    return %c0_i32, %c0_i32_0 : i32, i32
  }
  func.func @transform_3(%arg0: i32) -> (i32, i32) {
    %c0_i32 = arith.constant 0 : i32
    %c0_i32_0 = arith.constant 0 : i32
    %c0_i32_1 = arith.constant 0 : i32
    return %c0_i32, %c0_i32_0 : i32, i32
  }
  func.func @transform_4(%arg0: i32) -> (i32, i32, i32) {
    %c0_i32 = arith.constant 0 : i32
    %c0_i32_0 = arith.constant 0 : i32
    %c0_i32_1 = arith.constant 0 : i32
    %c0_i32_2 = arith.constant 0 : i32
    return %c0_i32, %c0_i32_0, %c0_i32_1 : i32, i32, i32
  }
  func.func @transform_5(%arg0: i32) -> (i32, i32) {
    %c0_i32 = arith.constant 0 : i32
    %c0_i32_0 = arith.constant 0 : i32
    %c0_i32_1 = arith.constant 0 : i32
    return %c0_i32, %c0_i32_0 : i32, i32
  }
  func.func @transform_6(%arg0: i32) -> (i32, i32, i32) {
    %c0_i32 = arith.constant 0 : i32
    %c0_i32_0 = arith.constant 0 : i32
    %c0_i32_1 = arith.constant 0 : i32
    %c0_i32_2 = arith.constant 0 : i32
    return %c0_i32, %c0_i32_0, %c0_i32_1 : i32, i32, i32
  }
  func.func @transform_7(%arg0: i32) -> (i32, i32) {
    %c0_i32 = arith.constant 0 : i32
    %c0_i32_0 = arith.constant 0 : i32
    %c0_i32_1 = arith.constant 0 : i32
    return %c0_i32, %c0_i32_0 : i32, i32
  }
  func.func @transform_8(%arg0: i32) -> (i32, i32) {
    %c0_i32 = arith.constant 0 : i32
    %c0_i32_0 = arith.constant 0 : i32
    %c0_i32_1 = arith.constant 0 : i32
    return %c0_i32, %c0_i32_0 : i32, i32
  }
  func.func @transform_9(%arg0: i32) -> (i32, i32) {
    %c0_i32 = arith.constant 0 : i32
    %c0_i32_0 = arith.constant 0 : i32
    %c0_i32_1 = arith.constant 0 : i32
    return %c0_i32, %c0_i32_0 : i32, i32
  }
  func.func @transform_10(%arg0: i32) -> (i32, i32, i32) {
    %c0_i32 = arith.constant 0 : i32
    %c0_i32_0 = arith.constant 0 : i32
    %c0_i32_1 = arith.constant 0 : i32
    %c0_i32_2 = arith.constant 0 : i32
    return %c0_i32, %c0_i32_0, %c0_i32_1 : i32, i32, i32
  }
  func.func @transform_11(%arg0: i32) -> (i32, i32) {
    %c0_i32 = arith.constant 0 : i32
    %c0_i32_0 = arith.constant 0 : i32
    %c0_i32_1 = arith.constant 0 : i32
    return %c0_i32, %c0_i32_0 : i32, i32
  }
  func.func @transform_12(%arg0: i32) -> (i32, i32, i32) {
    %c0_i32 = arith.constant 0 : i32
    %c0_i32_0 = arith.constant 0 : i32
    %c0_i32_1 = arith.constant 0 : i32
    %c0_i32_2 = arith.constant 0 : i32
    return %c0_i32, %c0_i32_0, %c0_i32_1 : i32, i32, i32
  }
  func.func @transform_13(%arg0: i32) -> (i32, i32) {
    %c0_i32 = arith.constant 0 : i32
    %c0_i32_0 = arith.constant 0 : i32
    %c0_i32_1 = arith.constant 0 : i32
    return %c0_i32, %c0_i32_0 : i32, i32
  }
  func.func @transform_14(%arg0: i32) -> (i32, i32) {
    %c0_i32 = arith.constant 0 : i32
    %c0_i32_0 = arith.constant 0 : i32
    %c0_i32_1 = arith.constant 0 : i32
    return %c0_i32, %c0_i32_0 : i32, i32
  }
  func.func @transform_15(%arg0: i32) -> (i32, i32) {
    %c0_i32 = arith.constant 0 : i32
    %c0_i32_0 = arith.constant 0 : i32
    %c0_i32_1 = arith.constant 0 : i32
    return %c0_i32, %c0_i32_0 : i32, i32
  }
  func.func @transform_16(%arg0: i32) -> (i32, i32) {
    %c0_i32 = arith.constant 0 : i32
    %c0_i32_0 = arith.constant 0 : i32
    %c0_i32_1 = arith.constant 0 : i32
    return %c0_i32, %c0_i32_0 : i32, i32
  }
  func.func @transform_17(%arg0: i32) -> (i32, i32) {
    %c0_i32 = arith.constant 0 : i32
    %c0_i32_0 = arith.constant 0 : i32
    %c0_i32_1 = arith.constant 0 : i32
    return %c0_i32, %c0_i32_0 : i32, i32
  }
  func.func @transform_18(%arg0: i32) -> (i32, i32) {
    %c0_i32 = arith.constant 0 : i32
    %c0_i32_0 = arith.constant 0 : i32
    %c0_i32_1 = arith.constant 0 : i32
    return %c0_i32, %c0_i32_0 : i32, i32
  }
  func.func @transform_19(%arg0: i32) -> (i32, i32) {
    %c0_i32 = arith.constant 0 : i32
    %c0_i32_0 = arith.constant 0 : i32
    %c0_i32_1 = arith.constant 0 : i32
    return %c0_i32, %c0_i32_0 : i32, i32
  }
  func.func @transform_20(%arg0: i32) -> (i32, i32) {
    %c0_i32 = arith.constant 0 : i32
    %c0_i32_0 = arith.constant 0 : i32
    %c0_i32_1 = arith.constant 0 : i32
    return %c0_i32, %c0_i32_0 : i32, i32
  }
}

</mosaic_0001>

<llo_original>
// kernel: fine_tune_classifier_forward.1
$region0: #{fine_tune_classifier_forward.1}
  #allocation0 [shape = 'u32[]', space=smem, size = 0x4, offset = 0x4, fixed_abs, tag = 'smem constant byte address 0x4 - core index']
  #allocation1 [shape = 'u32[72,128]{1,0:T(1,128)}', space=vmem, size = 0x9000, scoped, tag = 'internal scratch']
  #allocation2 [shape = 'f32[16,32]{1,0:T(8,128)}', space=vmem, size = 0x2000, scoped, tag = 'scratch operand']
  #allocation3 [shape = 'f32[2,32]{1,0:T(2,128)}', space=vmem, size = 0x400, scoped, tag = 'scratch operand']
  %s0 = inlined_call_operand.vmem [shape: f32[16,32], index: 0, kind: input, shape index: {}]
  %s1 = inlined_call_operand.vmem [shape: f32[2,8], index: 1, kind: input, shape index: {}]
  %s2 = inlined_call_operand.vmem [shape: f32[1,32], index: 2, kind: input, shape index: {}]
  %s3 = inlined_call_operand.vmem [shape: f32[1,32], index: 3, kind: input, shape index: {}]
  %s4 = inlined_call_operand.vmem [shape: f32[2,32,96], index: 4, kind: input, shape index: {}]
  %s5 = inlined_call_operand.vmem [shape: f32[2,96], index: 5, kind: input, shape index: {}]
  %s6 = inlined_call_operand.vmem [shape: f32[2,32,32], index: 6, kind: input, shape index: {}]
  %s7 = inlined_call_operand.vmem [shape: f32[2,32], index: 7, kind: input, shape index: {}]
  %s8 = inlined_call_operand.vmem [shape: f32[2,32], index: 8, kind: input, shape index: {}]
  %s9 = inlined_call_operand.vmem [shape: f32[2,32], index: 9, kind: input, shape index: {}]
  %s10 = inlined_call_operand.vmem [shape: f32[2,32,64], index: 10, kind: input, shape index: {}]
  %s11 = inlined_call_operand.vmem [shape: f32[2,64], index: 11, kind: input, shape index: {}]
  %s12 = inlined_call_operand.vmem [shape: f32[2,64,32], index: 12, kind: input, shape index: {}]
  %s13 = inlined_call_operand.vmem [shape: f32[2,32], index: 13, kind: input, shape index: {}]
  %s14 = inlined_call_operand.vmem [shape: f32[2,32], index: 14, kind: input, shape index: {}]
  %s15 = inlined_call_operand.vmem [shape: f32[2,32], index: 15, kind: input, shape index: {}]
  %s16 = inlined_call_operand.vmem [shape: f32[32,32], index: 16, kind: input, shape index: {}]
  %s17 = inlined_call_operand.vmem [shape: f32[1,32], index: 17, kind: input, shape index: {}]
  %s18 = inlined_call_operand.vmem [shape: f32[32,2], index: 18, kind: input, shape index: {}]
  %s19 = inlined_call_operand.vmem [shape: f32[1,2], index: 19, kind: input, shape index: {}]
  %s20 = inlined_call_operand.hbm [shape: f32[2,2], index: 20, kind: output, shape index: {}]
  %s21 = sld [smem:[#allocation0]]
  $region90: #{fine_tune_classifier_forward.1} parent=0
    _
  %s23 = ssub.s32 1, %s21
  %s24 = scalar_select 0, %s23, %s21
  $region1: #{fine_tune_classifier_forward.1} parent=0
    #allocation4 [shape = 'u8[1024]{0}', space=vmem, size = 0x400, scoped, tag = 'output window, operand 0, single buffered']
    #allocation5 [shape = 's32[1]{0}', space=sflag, size = 0x4, scoped, tag = 'scoped memory for fine_tune_classifier_forward.1']
    %25 = vsyncpa [#allocation5], 0
    // Predicated region
    $region2: #{fine_tune_classifier_forward.1} parent=1 // pred_check
      _
    $region3: #{fine_tune_classifier_forward.1} parent=1 // pred_check_branch
      %27 = sbr.rel (0) target = $region5
    $region4: #{fine_tune_classifier_forward.1} parent=1 // pred_region
      _
    $region5: #{fine_tune_classifier_forward.1} parent=1 // pred_fallthru
      _
    // Predicated region
    $region6: #{fine_tune_classifier_forward.1} parent=1 // pred_check
      _
    $region7: #{fine_tune_classifier_forward.1} parent=1 // pred_check_branch
      %29 = sbr.rel (0) target = $region9
    $region8: #{fine_tune_classifier_forward.1} parent=1 // pred_region
      _
    $region9: #{fine_tune_classifier_forward.1} parent=1 // pred_fallthru
      _
    // Predicated region
    $region10: #{fine_tune_classifier_forward.1} parent=1 // pred_check
      _
    $region11: #{fine_tune_classifier_forward.1} parent=1 // pred_check_branch
      %31 = sbr.rel (0) target = $region13
    $region12: #{fine_tune_classifier_forward.1} parent=1 // pred_region
      _
    $region13: #{fine_tune_classifier_forward.1} parent=1 // pred_fallthru
      _
    // Predicated region
    $region14: #{fine_tune_classifier_forward.1} parent=1 // pred_check
      _
    $region15: #{fine_tune_classifier_forward.1} parent=1 // pred_check_branch
      %33 = sbr.rel (0) target = $region17
    $region16: #{fine_tune_classifier_forward.1} parent=1 // pred_region
      _
    $region17: #{fine_tune_classifier_forward.1} parent=1 // pred_fallthru
      _
    // Predicated region
    $region18: #{fine_tune_classifier_forward.1} parent=1 // pred_check
      _
    $region19: #{fine_tune_classifier_forward.1} parent=1 // pred_check_branch
      %35 = sbr.rel (0) target = $region21
    $region20: #{fine_tune_classifier_forward.1} parent=1 // pred_region
      _
    $region21: #{fine_tune_classifier_forward.1} parent=1 // pred_fallthru
      _
    // Predicated region
    $region22: #{fine_tune_classifier_forward.1} parent=1 // pred_check
      _
    $region23: #{fine_tune_classifier_forward.1} parent=1 // pred_check_branch
      %37 = sbr.rel (0) target = $region25
    $region24: #{fine_tune_classifier_forward.1} parent=1 // pred_region
      _
    $region25: #{fine_tune_classifier_forward.1} parent=1 // pred_fallthru
      _
    // Predicated region
    $region26: #{fine_tune_classifier_forward.1} parent=1 // pred_check
      _
    $region27: #{fine_tune_classifier_forward.1} parent=1 // pred_check_branch
      %39 = sbr.rel (0) target = $region29
    $region28: #{fine_tune_classifier_forward.1} parent=1 // pred_region
      _
    $region29: #{fine_tune_classifier_forward.1} parent=1 // pred_fallthru
      _
    // Predicated region
    $region30: #{fine_tune_classifier_forward.1} parent=1 // pred_check
      _
    $region31: #{fine_tune_classifier_forward.1} parent=1 // pred_check_branch
      %41 = sbr.rel (0) target = $region33
    $region32: #{fine_tune_classifier_forward.1} parent=1 // pred_region
      _
    $region33: #{fine_tune_classifier_forward.1} parent=1 // pred_fallthru
      _
    // Predicated region
    $region34: #{fine_tune_classifier_forward.1} parent=1 // pred_check
      _
    $region35: #{fine_tune_classifier_forward.1} parent=1 // pred_check_branch
      %43 = sbr.rel (0) target = $region37
    $region36: #{fine_tune_classifier_forward.1} parent=1 // pred_region
      _
    $region37: #{fine_tune_classifier_forward.1} parent=1 // pred_fallthru
      _
    // Predicated region
    $region38: #{fine_tune_classifier_forward.1} parent=1 // pred_check
      _
    $region39: #{fine_tune_classifier_forward.1} parent=1 // pred_check_branch
      %45 = sbr.rel (0) target = $region41
    $region40: #{fine_tune_classifier_forward.1} parent=1 // pred_region
      _
    $region41: #{fine_tune_classifier_forward.1} parent=1 // pred_fallthru
      _
    // Predicated region
    $region42: #{fine_tune_classifier_forward.1} parent=1 // pred_check
      _
    $region43: #{fine_tune_classifier_forward.1} parent=1 // pred_check_branch
      %47 = sbr.rel (0) target = $region45
    $region44: #{fine_tune_classifier_forward.1} parent=1 // pred_region
      _
    $region45: #{fine_tune_classifier_forward.1} parent=1 // pred_fallthru
      _
    // Predicated region
    $region46: #{fine_tune_classifier_forward.1} parent=1 // pred_check
      _
    $region47: #{fine_tune_classifier_forward.1} parent=1 // pred_check_branch
      %49 = sbr.rel (0) target = $region49
    $region48: #{fine_tune_classifier_forward.1} parent=1 // pred_region
      _
    $region49: #{fine_tune_classifier_forward.1} parent=1 // pred_fallthru
      _
    // Predicated region
    $region50: #{fine_tune_classifier_forward.1} parent=1 // pred_check
      _
    $region51: #{fine_tune_classifier_forward.1} parent=1 // pred_check_branch
      %51 = sbr.rel (0) target = $region53
    $region52: #{fine_tune_classifier_forward.1} parent=1 // pred_region
      _
    $region53: #{fine_tune_classifier_forward.1} parent=1 // pred_fallthru
      _
    // Predicated region
    $region54: #{fine_tune_classifier_forward.1} parent=1 // pred_check
      _
    $region55: #{fine_tune_classifier_forward.1} parent=1 // pred_check_branch
      %53 = sbr.rel (0) target = $region57
    $region56: #{fine_tune_classifier_forward.1} parent=1 // pred_region
      _
    $region57: #{fine_tune_classifier_forward.1} parent=1 // pred_fallthru
      _
    // Predicated region
    $region58: #{fine_tune_classifier_forward.1} parent=1 // pred_check
      _
    $region59: #{fine_tune_classifier_forward.1} parent=1 // pred_check_branch
      %55 = sbr.rel (0) target = $region61
    $region60: #{fine_tune_classifier_forward.1} parent=1 // pred_region
      _
    $region61: #{fine_tune_classifier_forward.1} parent=1 // pred_fallthru
      _
    // Predicated region
    $region62: #{fine_tune_classifier_forward.1} parent=1 // pred_check
      _
    $region63: #{fine_tune_classifier_forward.1} parent=1 // pred_check_branch
      %57 = sbr.rel (0) target = $region65
    $region64: #{fine_tune_classifier_forward.1} parent=1 // pred_region
      _
    $region65: #{fine_tune_classifier_forward.1} parent=1 // pred_fallthru
      _
    // Predicated region
    $region66: #{fine_tune_classifier_forward.1} parent=1 // pred_check
      _
    $region67: #{fine_tune_classifier_forward.1} parent=1 // pred_check_branch
      %59 = sbr.rel (0) target = $region69
    $region68: #{fine_tune_classifier_forward.1} parent=1 // pred_region
      _
    $region69: #{fine_tune_classifier_forward.1} parent=1 // pred_fallthru
      _
    // Predicated region
    $region70: #{fine_tune_classifier_forward.1} parent=1 // pred_check
      _
    $region71: #{fine_tune_classifier_forward.1} parent=1 // pred_check_branch
      %61 = sbr.rel (0) target = $region73
    $region72: #{fine_tune_classifier_forward.1} parent=1 // pred_region
      _
    $region73: #{fine_tune_classifier_forward.1} parent=1 // pred_fallthru
      _
    // Predicated region
    $region74: #{fine_tune_classifier_forward.1} parent=1 // pred_check
      _
    $region75: #{fine_tune_classifier_forward.1} parent=1 // pred_check_branch
      %63 = sbr.rel (0) target = $region77
    $region76: #{fine_tune_classifier_forward.1} parent=1 // pred_region
      _
    $region77: #{fine_tune_classifier_forward.1} parent=1 // pred_fallthru
      _
    // Predicated region
    $region78: #{fine_tune_classifier_forward.1} parent=1 // pred_check
      _
    $region79: #{fine_tune_classifier_forward.1} parent=1 // pred_check_branch
      %65 = sbr.rel (0) target = $region81
    $region80: #{fine_tune_classifier_forward.1} parent=1 // pred_region
      _
    $region81: #{fine_tune_classifier_forward.1} parent=1 // pred_fallthru
      _
    %v66 = vld [vmem:[%s0] sm:$0xff]
    %v67 = vld [vmem:[%s0 + $0x8] sm:$0xff]
    %v68 = vld [vmem:[%s1] sm:$0x3]
    %v69 = vld [vmem:[%s2] sm:$0x1]
    %v70 = vld [vmem:[%s3] sm:$0x1]
    %vm71 = vcmask 261120
    %v72 = vsel %vm71, %v66, 0.0
    %73 = vadd.xlane.f32.xlu0 %v72
    %v74 = vpop.xlane.xlu0 %73
    %v75 = vsel %vm71, %v67, 0.0
    %76 = vadd.xlane.f32.xlu0 %v75
    %v77 = vpop.xlane.xlu0 %76
    %v78 = vrcp.pop 32.0
    %v79 = vmul.f32 32.0, %v78
    %v80 = vsub.f32 1.0, %v79
    %v81 = vmul.f32 %v78, %v80
    %v82 = vadd.f32 %v78, %v81
    %vm83 = vweird.f32 %v78
    %v84 = vsel %vm83, %v78, %v82
    %v85 = vmul.f32 %v74, %v84
    %v86 = vmul.f32 %v77, %v84
    %v87 = vsub.f32 %v66, %v85
    %v88 = vsub.f32 %v67, %v86
    %v89 = vmul.f32 %v87, %v87
    %v90 = vmul.f32 %v88, %v88
    %v91 = vsel %vm71, %v89, 0.0
    %92 = vadd.xlane.f32.xlu0 %v91
    %v93 = vpop.xlane.xlu0 %92
    %v94 = vsel %vm71, %v90, 0.0
    %95 = vadd.xlane.f32.xlu0 %v94
    %v96 = vpop.xlane.xlu0 %95
    %v97 = vmul.f32 %v93, %v84
    %v98 = vmul.f32 %v96, %v84
    %v99 = vadd.f32 %v97, 1e-12
    %v100 = vadd.f32 %v98, 1e-12
    %v101 = vrsqrt.pop %v99
    %v102 = vmul.f32 %v101, %v99
    %v103 = vmul.f32 %v102, %v101
    %v104 = vmul.f32 0.5, %v103
    %v105 = vsub.f32 1.5, %v104
    %v106 = vmul.f32 %v101, %v105
    %vm107 = vweird.f32 %v99
    %vm108 = vweird.f32 %v101
    %vm109 = vmor %vm107, %vm108
    %v110 = vsel %vm109, %v101, %v106
    %v111 = vrsqrt.pop %v100
    %v112 = vmul.f32 %v111, %v100
    %v113 = vmul.f32 %v112, %v111
    %v114 = vmul.f32 0.5, %v113
    %v115 = vsub.f32 1.5, %v114
    %v116 = vmul.f32 %v111, %v115
    %vm117 = vweird.f32 %v100
    %vm118 = vweird.f32 %v111
    %vm119 = vmor %vm117, %vm118
    %v120 = vsel %vm119, %v111, %v116
    %v121 = vmul.f32 %v87, %v110
    %v122 = vmul.f32 %v88, %v120
    %v124 = vperm.slane %v69, 0
    %v126 = vmul.f32 %v121, %v124
    %v127 = vmul.f32 %v122, %v124
    %v129 = vperm.slane %v70, 0
    %v131 = vadd.f32 %v126, %v129
    %v132 = vadd.f32 %v127, %v129
    %v133 = vld [vmem:[%s4] sm:$0xff]
    %v134 = vld [vmem:[%s4 + $0x8] sm:$0xff]
    %v135 = vld [vmem:[%s4 + $0x10] sm:$0xff]
    %v136 = vld [vmem:[%s4 + $0x18] sm:$0xff]
    %v137 = vld [vmem:[%s5] sm:$0x1]
    %v138 = vperm.slane %v137, 0
    %v140 = vsel %vm71, %v131, 0
    %v143 = vsel %vm71, %v132, 0
    %145 = vmatpush.msra.mxu0 0.0
    %146 = vmatpush.msra.mxu0 0.0
    %147 = vmatpush.msra.mxu0 0.0
    %148 = vmatpush.msra.mxu0 0.0
    %149 = vmatpush.msra.mxu0 0.0
    %150 = vmatpush.msra.mxu0 0.0
    %151 = vmatpush.msra.mxu0 0.0
    %152 = vmatpush.msra.mxu0 0.0
    %153 = vmatpush.msra.mxu0 0.0
    %154 = vmatpush.msra.mxu0 0.0
    %155 = vmatpush.msra.mxu0 0.0
    %156 = vmatpush.msra.mxu0 0.0
    %157 = vmatpush.msra.mxu0 %v136
    %158 = vmatpush.msra.mxu0 %v135
    %159 = vmatpush.msra.mxu0 %v134
    %160 = vmatpush.msra.mxu0 %v133
    %161 = vmatmul.f32.gmra.mxu0 %v140
    %v162 = vpop.f32.mrf.mxu0
    %v163 = vadd.f32 %v138, %v162
    %164 = vmatmul.f32.gmra.mxu0 %v143
    %v165 = vpop.f32.mrf.mxu0
    %v166 = vadd.f32 %v138, %v165
    %167 = vdwg.mxu0
    %169 = vrot.lane.b32.xlu0 %v163, 96
    %v170 = vpop.permute.xlu0 %169
    %vm171 = vcmask 64512
    %v172 = vsel %vm171, %v163, 0
    %v174 = vsel %vm171, %v170, 0
    %176 = vmatpush.xpose.msra.mxu0 0.0
    %177 = vmatpush.xpose.msra.mxu0 0.0
    %178 = vmatpush.xpose.msra.mxu0 0.0
    %179 = vmatpush.xpose.msra.mxu0 0.0
    %180 = vmatpush.xpose.msra.mxu0 0.0
    %181 = vmatpush.xpose.msra.mxu0 0.0
    %182 = vmatpush.xpose.msra.mxu0 0.0
    %183 = vmatpush.xpose.msra.mxu0 0.0
    %184 = vmatpush.xpose.msra.mxu0 0.0
    %185 = vmatpush.xpose.msra.mxu0 0.0
    %186 = vmatpush.xpose.msra.mxu0 0.0
    %187 = vmatpush.xpose.msra.mxu0 0.0
    %188 = vmatpush.xpose.msra.mxu0 0.0
    %189 = vmatpush.xpose.msra.mxu0 0.0
    %190 = vmatpush.xpose.msra.mxu0 0.0
    %191 = vmatpush.xpose.msra.mxu0 %v174
    %192 = vmatmul.f32.gmra.mxu0 %v172
    %v193 = vpop.f32.mrf.mxu0
    %v194 = vadd.f32 0.0, %v193
    %195 = vdwg.mxu0
    %v196 = vmul.f32 %v194, 0.35355338
    %v197 = vperm.slane %v68, 0
    %v198 = vadd.f32 %v196, %v197
    %v199 = vsel %vm171, %v198, -inf
    %200 = vmax.xlane.f32.xlu0 %v199
    %v201 = vpop.xlane.xlu0 %200
    %v202 = vsub.f32 %v198, %v201
    %v203 = vmul.f32 %v202, 1.442695
    %v204 = vpow.pop %v203
    %v205 = vsel %vm171, %v204, 0.0
    %206 = vadd.xlane.f32.xlu0 %v205
    %v207 = vpop.xlane.xlu0 %206
    %v208 = vrcp.pop %v207
    %v209 = vmul.f32 %v204, %v208
    %210 = vrot.lane.b32.xlu0 %v163, 64
    %v211 = vpop.permute.xlu0 %210
    %v214 = vsel %vm171, %v209, 0
    %216 = vmatpush.msra.mxu0 0.0
    %217 = vmatpush.msra.mxu0 0.0
    %218 = vmatpush.msra.mxu0 0.0
    %219 = vmatpush.msra.mxu0 0.0
    %220 = vmatpush.msra.mxu0 0.0
    %221 = vmatpush.msra.mxu0 0.0
    %222 = vmatpush.msra.mxu0 0.0
    %223 = vmatpush.msra.mxu0 0.0
    %224 = vmatpush.msra.mxu0 0.0
    %225 = vmatpush.msra.mxu0 0.0
    %226 = vmatpush.msra.mxu0 0.0
    %227 = vmatpush.msra.mxu0 0.0
    %228 = vmatpush.msra.mxu0 0.0
    %229 = vmatpush.msra.mxu0 0.0
    %230 = vmatpush.msra.mxu0 0.0
    %231 = vmatpush.msra.mxu0 %v211
    %232 = vmatmul.f32.gmra.mxu0 %v214
    %v233 = vpop.f32.mrf.mxu0
    %v234 = vadd.f32 0.0, %v233
    %235 = vdwg.mxu0
    %236 = vst.msk [vmem:[#allocation2] sm:$0xff] %vm171, %v234
    %237 = vrot.lane.b32.xlu0 %v163, 120
    %v238 = vpop.permute.xlu0 %237
    %239 = vrot.lane.b32.xlu0 %v163, 88
    %v240 = vpop.permute.xlu0 %239
    %v241 = vsel %vm171, %v238, 0
    %v243 = vsel %vm171, %v240, 0
    %245 = vmatpush.xpose.msra.mxu0 0.0
    %246 = vmatpush.xpose.msra.mxu0 0.0
    %247 = vmatpush.xpose.msra.mxu0 0.0
    %248 = vmatpush.xpose.msra.mxu0 0.0
    %249 = vmatpush.xpose.msra.mxu0 0.0
    %250 = vmatpush.xpose.msra.mxu0 0.0
    %251 = vmatpush.xpose.msra.mxu0 0.0
    %252 = vmatpush.xpose.msra.mxu0 0.0
    %253 = vmatpush.xpose.msra.mxu0 0.0
    %254 = vmatpush.xpose.msra.mxu0 0.0
    %255 = vmatpush.xpose.msra.mxu0 0.0
    %256 = vmatpush.xpose.msra.mxu0 0.0
    %257 = vmatpush.xpose.msra.mxu0 0.0
    %258 = vmatpush.xpose.msra.mxu0 0.0
    %259 = vmatpush.xpose.msra.mxu0 0.0
    %260 = vmatpush.xpose.msra.mxu0 %v243
    %261 = vmatmul.f32.gmra.mxu0 %v241
    %v262 = vpop.f32.mrf.mxu0
    %v263 = vadd.f32 0.0, %v262
    %264 = vdwg.mxu0
    %v265 = vmul.f32 %v263, 0.35355338
    %v266 = vadd.f32 %v265, %v197
    %v267 = vsel %vm171, %v266, -inf
    %268 = vmax.xlane.f32.xlu0 %v267
    %v269 = vpop.xlane.xlu0 %268
    %v270 = vsub.f32 %v266, %v269
    %v271 = vmul.f32 %v270, 1.442695
    %v272 = vpow.pop %v271
    %v273 = vsel %vm171, %v272, 0.0
    %274 = vadd.xlane.f32.xlu0 %v273
    %v275 = vpop.xlane.xlu0 %274
    %v276 = vrcp.pop %v275
    %v277 = vmul.f32 %v272, %v276
    %278 = vrot.lane.b32.xlu0 %v163, 56
    %v279 = vpop.permute.xlu0 %278
    %v282 = vsel %vm171, %v277, 0
    %284 = vmatpush.msra.mxu0 0.0
    %285 = vmatpush.msra.mxu0 0.0
    %286 = vmatpush.msra.mxu0 0.0
    %287 = vmatpush.msra.mxu0 0.0
    %288 = vmatpush.msra.mxu0 0.0
    %289 = vmatpush.msra.mxu0 0.0
    %290 = vmatpush.msra.mxu0 0.0
    %291 = vmatpush.msra.mxu0 0.0
    %292 = vmatpush.msra.mxu0 0.0
    %293 = vmatpush.msra.mxu0 0.0
    %294 = vmatpush.msra.mxu0 0.0
    %295 = vmatpush.msra.mxu0 0.0
    %296 = vmatpush.msra.mxu0 0.0
    %297 = vmatpush.msra.mxu0 0.0
    %298 = vmatpush.msra.mxu0 0.0
    %299 = vmatpush.msra.mxu0 %v279
    %300 = vmatmul.f32.gmra.mxu0 %v282
    %v301 = vpop.f32.mrf.mxu0
    %v302 = vadd.f32 0.0, %v301
    %303 = vdwg.mxu0
    %305 = vrot.lane.b32.xlu0 %v302, 8
    %v306 = vpop.permute.xlu0 %305
    %vm308 = vcmask 130112
    %309 = vst.msk [vmem:[#allocation2] sm:$0xff] %vm308, %v306
    %310 = vrot.lane.b32.xlu0 %v163, 112
    %v311 = vpop.permute.xlu0 %310
    %312 = vrot.lane.b32.xlu0 %v163, 80
    %v313 = vpop.permute.xlu0 %312
    %v314 = vsel %vm171, %v311, 0
    %v316 = vsel %vm171, %v313, 0
    %318 = vmatpush.xpose.msra.mxu0 0.0
    %319 = vmatpush.xpose.msra.mxu0 0.0
    %320 = vmatpush.xpose.msra.mxu0 0.0
    %321 = vmatpush.xpose.msra.mxu0 0.0
    %322 = vmatpush.xpose.msra.mxu0 0.0
    %323 = vmatpush.xpose.msra.mxu0 0.0
    %324 = vmatpush.xpose.msra.mxu0 0.0
    %325 = vmatpush.xpose.msra.mxu0 0.0
    %326 = vmatpush.xpose.msra.mxu0 0.0
    %327 = vmatpush.xpose.msra.mxu0 0.0
    %328 = vmatpush.xpose.msra.mxu0 0.0
    %329 = vmatpush.xpose.msra.mxu0 0.0
    %330 = vmatpush.xpose.msra.mxu0 0.0
    %331 = vmatpush.xpose.msra.mxu0 0.0
    %332 = vmatpush.xpose.msra.mxu0 0.0
    %333 = vmatpush.xpose.msra.mxu0 %v316
    %334 = vmatmul.f32.gmra.mxu0 %v314
    %v335 = vpop.f32.mrf.mxu0
    %v336 = vadd.f32 0.0, %v335
    %337 = vdwg.mxu0
    %v338 = vmul.f32 %v336, 0.35355338
    %v339 = vadd.f32 %v338, %v197
    %v340 = vsel %vm171, %v339, -inf
    %341 = vmax.xlane.f32.xlu0 %v340
    %v342 = vpop.xlane.xlu0 %341
    %v343 = vsub.f32 %v339, %v342
    %v344 = vmul.f32 %v343, 1.442695
    %v345 = vpow.pop %v344
    %v346 = vsel %vm171, %v345, 0.0
    %347 = vadd.xlane.f32.xlu0 %v346
    %v348 = vpop.xlane.xlu0 %347
    %v349 = vrcp.pop %v348
    %v350 = vmul.f32 %v345, %v349
    %351 = vrot.lane.b32.xlu0 %v163, 48
    %v352 = vpop.permute.xlu0 %351
    %v355 = vsel %vm171, %v350, 0
    %357 = vmatpush.msra.mxu0 0.0
    %358 = vmatpush.msra.mxu0 0.0
    %359 = vmatpush.msra.mxu0 0.0
    %360 = vmatpush.msra.mxu0 0.0
    %361 = vmatpush.msra.mxu0 0.0
    %362 = vmatpush.msra.mxu0 0.0
    %363 = vmatpush.msra.mxu0 0.0
    %364 = vmatpush.msra.mxu0 0.0
    %365 = vmatpush.msra.mxu0 0.0
    %366 = vmatpush.msra.mxu0 0.0
    %367 = vmatpush.msra.mxu0 0.0
    %368 = vmatpush.msra.mxu0 0.0
    %369 = vmatpush.msra.mxu0 0.0
    %370 = vmatpush.msra.mxu0 0.0
    %371 = vmatpush.msra.mxu0 0.0
    %372 = vmatpush.msra.mxu0 %v352
    %373 = vmatmul.f32.gmra.mxu0 %v355
    %v374 = vpop.f32.mrf.mxu0
    %v375 = vadd.f32 0.0, %v374
    %376 = vdwg.mxu0
    %378 = vrot.lane.b32.xlu0 %v375, 16
    %v379 = vpop.permute.xlu0 %378
    %vm381 = vcmask 195712
    %382 = vst.msk [vmem:[#allocation2] sm:$0xff] %vm381, %v379
    %383 = vrot.lane.b32.xlu0 %v163, 104
    %v384 = vpop.permute.xlu0 %383
    %385 = vrot.lane.b32.xlu0 %v163, 72
    %v386 = vpop.permute.xlu0 %385
    %v387 = vsel %vm171, %v384, 0
    %v389 = vsel %vm171, %v386, 0
    %391 = vmatpush.xpose.msra.mxu0 0.0
    %392 = vmatpush.xpose.msra.mxu0 0.0
    %393 = vmatpush.xpose.msra.mxu0 0.0
    %394 = vmatpush.xpose.msra.mxu0 0.0
    %395 = vmatpush.xpose.msra.mxu0 0.0
    %396 = vmatpush.xpose.msra.mxu0 0.0
    %397 = vmatpush.xpose.msra.mxu0 0.0
    %398 = vmatpush.xpose.msra.mxu0 0.0
    %399 = vmatpush.xpose.msra.mxu0 0.0
    %400 = vmatpush.xpose.msra.mxu0 0.0
    %401 = vmatpush.xpose.msra.mxu0 0.0
    %402 = vmatpush.xpose.msra.mxu0 0.0
    %403 = vmatpush.xpose.msra.mxu0 0.0
    %404 = vmatpush.xpose.msra.mxu0 0.0
    %405 = vmatpush.xpose.msra.mxu0 0.0
    %406 = vmatpush.xpose.msra.mxu0 %v389
    %407 = vmatmul.f32.gmra.mxu0 %v387
    %v408 = vpop.f32.mrf.mxu0
    %v409 = vadd.f32 0.0, %v408
    %410 = vdwg.mxu0
    %v411 = vmul.f32 %v409, 0.35355338
    %v412 = vadd.f32 %v411, %v197
    %v413 = vsel %vm171, %v412, -inf
    %414 = vmax.xlane.f32.xlu0 %v413
    %v415 = vpop.xlane.xlu0 %414
    %v416 = vsub.f32 %v412, %v415
    %v417 = vmul.f32 %v416, 1.442695
    %v418 = vpow.pop %v417
    %v419 = vsel %vm171, %v418, 0.0
    %420 = vadd.xlane.f32.xlu0 %v419
    %v421 = vpop.xlane.xlu0 %420
    %v422 = vrcp.pop %v421
    %v423 = vmul.f32 %v418, %v422
    %424 = vrot.lane.b32.xlu0 %v163, 40
    %v425 = vpop.permute.xlu0 %424
    %v428 = vsel %vm171, %v423, 0
    %430 = vmatpush.msra.mxu0 0.0
    %431 = vmatpush.msra.mxu0 0.0
    %432 = vmatpush.msra.mxu0 0.0
    %433 = vmatpush.msra.mxu0 0.0
    %434 = vmatpush.msra.mxu0 0.0
    %435 = vmatpush.msra.mxu0 0.0
    %436 = vmatpush.msra.mxu0 0.0
    %437 = vmatpush.msra.mxu0 0.0
    %438 = vmatpush.msra.mxu0 0.0
    %439 = vmatpush.msra.mxu0 0.0
    %440 = vmatpush.msra.mxu0 0.0
    %441 = vmatpush.msra.mxu0 0.0
    %442 = vmatpush.msra.mxu0 0.0
    %443 = vmatpush.msra.mxu0 0.0
    %444 = vmatpush.msra.mxu0 0.0
    %445 = vmatpush.msra.mxu0 %v425
    %446 = vmatmul.f32.gmra.mxu0 %v428
    %v447 = vpop.f32.mrf.mxu0
    %v448 = vadd.f32 0.0, %v447
    %449 = vdwg.mxu0
    %451 = vrot.lane.b32.xlu0 %v448, 24
    %v452 = vpop.permute.xlu0 %451
    %vm454 = vcmask 261312
    %455 = vst.msk [vmem:[#allocation2] sm:$0xff] %vm454, %v452
    %457 = vrot.lane.b32.xlu0 %v166, 96
    %v458 = vpop.permute.xlu0 %457
    %v459 = vsel %vm171, %v166, 0
    %v461 = vsel %vm171, %v458, 0
    %463 = vmatpush.xpose.msra.mxu0 0.0
    %464 = vmatpush.xpose.msra.mxu0 0.0
    %465 = vmatpush.xpose.msra.mxu0 0.0
    %466 = vmatpush.xpose.msra.mxu0 0.0
    %467 = vmatpush.xpose.msra.mxu0 0.0
    %468 = vmatpush.xpose.msra.mxu0 0.0
    %469 = vmatpush.xpose.msra.mxu0 0.0
    %470 = vmatpush.xpose.msra.mxu0 0.0
    %471 = vmatpush.xpose.msra.mxu0 0.0
    %472 = vmatpush.xpose.msra.mxu0 0.0
    %473 = vmatpush.xpose.msra.mxu0 0.0
    %474 = vmatpush.xpose.msra.mxu0 0.0
    %475 = vmatpush.xpose.msra.mxu0 0.0
    %476 = vmatpush.xpose.msra.mxu0 0.0
    %477 = vmatpush.xpose.msra.mxu0 0.0
    %478 = vmatpush.xpose.msra.mxu0 %v461
    %479 = vmatmul.f32.gmra.mxu0 %v459
    %v480 = vpop.f32.mrf.mxu0
    %v481 = vadd.f32 0.0, %v480
    %482 = vdwg.mxu0
    %v483 = vmul.f32 %v481, 0.35355338
    %v484 = vperm.slane %v68, 1
    %v485 = vadd.f32 %v483, %v484
    %v486 = vsel %vm171, %v485, -inf
    %487 = vmax.xlane.f32.xlu0 %v486
    %v488 = vpop.xlane.xlu0 %487
    %v489 = vsub.f32 %v485, %v488
    %v490 = vmul.f32 %v489, 1.442695
    %v491 = vpow.pop %v490
    %v492 = vsel %vm171, %v491, 0.0
    %493 = vadd.xlane.f32.xlu0 %v492
    %v494 = vpop.xlane.xlu0 %493
    %v495 = vrcp.pop %v494
    %v496 = vmul.f32 %v491, %v495
    %497 = vrot.lane.b32.xlu0 %v166, 64
    %v498 = vpop.permute.xlu0 %497
    %v501 = vsel %vm171, %v496, 0
    %503 = vmatpush.msra.mxu0 0.0
    %504 = vmatpush.msra.mxu0 0.0
    %505 = vmatpush.msra.mxu0 0.0
    %506 = vmatpush.msra.mxu0 0.0
    %507 = vmatpush.msra.mxu0 0.0
    %508 = vmatpush.msra.mxu0 0.0
    %509 = vmatpush.msra.mxu0 0.0
    %510 = vmatpush.msra.mxu0 0.0
    %511 = vmatpush.msra.mxu0 0.0
    %512 = vmatpush.msra.mxu0 0.0
    %513 = vmatpush.msra.mxu0 0.0
    %514 = vmatpush.msra.mxu0 0.0
    %515 = vmatpush.msra.mxu0 0.0
    %516 = vmatpush.msra.mxu0 0.0
    %517 = vmatpush.msra.mxu0 0.0
    %518 = vmatpush.msra.mxu0 %v498
    %519 = vmatmul.f32.gmra.mxu0 %v501
    %v520 = vpop.f32.mrf.mxu0
    %v521 = vadd.f32 0.0, %v520
    %522 = vdwg.mxu0
    %523 = vst.msk [vmem:[#allocation2 + $0x8] sm:$0xff] %vm171, %v521
    %524 = vrot.lane.b32.xlu0 %v166, 120
    %v525 = vpop.permute.xlu0 %524
    %526 = vrot.lane.b32.xlu0 %v166, 88
    %v527 = vpop.permute.xlu0 %526
    %v528 = vsel %vm171, %v525, 0
    %v530 = vsel %vm171, %v527, 0
    %532 = vmatpush.xpose.msra.mxu0 0.0
    %533 = vmatpush.xpose.msra.mxu0 0.0
    %534 = vmatpush.xpose.msra.mxu0 0.0
    %535 = vmatpush.xpose.msra.mxu0 0.0
    %536 = vmatpush.xpose.msra.mxu0 0.0
    %537 = vmatpush.xpose.msra.mxu0 0.0
    %538 = vmatpush.xpose.msra.mxu0 0.0
    %539 = vmatpush.xpose.msra.mxu0 0.0
    %540 = vmatpush.xpose.msra.mxu0 0.0
    %541 = vmatpush.xpose.msra.mxu0 0.0
    %542 = vmatpush.xpose.msra.mxu0 0.0
    %543 = vmatpush.xpose.msra.mxu0 0.0
    %544 = vmatpush.xpose.msra.mxu0 0.0
    %545 = vmatpush.xpose.msra.mxu0 0.0
    %546 = vmatpush.xpose.msra.mxu0 0.0
    %547 = vmatpush.xpose.msra.mxu0 %v530
    %548 = vmatmul.f32.gmra.mxu0 %v528
    %v549 = vpop.f32.mrf.mxu0
    %v550 = vadd.f32 0.0, %v549
    %551 = vdwg.mxu0
    %v552 = vmul.f32 %v550, 0.35355338
    %v553 = vadd.f32 %v552, %v484
    %v554 = vsel %vm171, %v553, -inf
    %555 = vmax.xlane.f32.xlu0 %v554
    %v556 = vpop.xlane.xlu0 %555
    %v557 = vsub.f32 %v553, %v556
    %v558 = vmul.f32 %v557, 1.442695
    %v559 = vpow.pop %v558
    %v560 = vsel %vm171, %v559, 0.0
    %561 = vadd.xlane.f32.xlu0 %v560
    %v562 = vpop.xlane.xlu0 %561
    %v563 = vrcp.pop %v562
    %v564 = vmul.f32 %v559, %v563
    %565 = vrot.lane.b32.xlu0 %v166, 56
    %v566 = vpop.permute.xlu0 %565
    %v569 = vsel %vm171, %v564, 0
    %571 = vmatpush.msra.mxu0 0.0
    %572 = vmatpush.msra.mxu0 0.0
    %573 = vmatpush.msra.mxu0 0.0
    %574 = vmatpush.msra.mxu0 0.0
    %575 = vmatpush.msra.mxu0 0.0
    %576 = vmatpush.msra.mxu0 0.0
    %577 = vmatpush.msra.mxu0 0.0
    %578 = vmatpush.msra.mxu0 0.0
    %579 = vmatpush.msra.mxu0 0.0
    %580 = vmatpush.msra.mxu0 0.0
    %581 = vmatpush.msra.mxu0 0.0
    %582 = vmatpush.msra.mxu0 0.0
    %583 = vmatpush.msra.mxu0 0.0
    %584 = vmatpush.msra.mxu0 0.0
    %585 = vmatpush.msra.mxu0 0.0
    %586 = vmatpush.msra.mxu0 %v566
    %587 = vmatmul.f32.gmra.mxu0 %v569
    %v588 = vpop.f32.mrf.mxu0
    %v589 = vadd.f32 0.0, %v588
    %590 = vdwg.mxu0
    %592 = vrot.lane.b32.xlu0 %v589, 8
    %v593 = vpop.permute.xlu0 %592
    %595 = vst.msk [vmem:[#allocation2 + $0x8] sm:$0xff] %vm308, %v593
    %596 = vrot.lane.b32.xlu0 %v166, 112
    %v597 = vpop.permute.xlu0 %596
    %598 = vrot.lane.b32.xlu0 %v166, 80
    %v599 = vpop.permute.xlu0 %598
    %v600 = vsel %vm171, %v597, 0
    %v602 = vsel %vm171, %v599, 0
    %604 = vmatpush.xpose.msra.mxu0 0.0
    %605 = vmatpush.xpose.msra.mxu0 0.0
    %606 = vmatpush.xpose.msra.mxu0 0.0
    %607 = vmatpush.xpose.msra.mxu0 0.0
    %608 = vmatpush.xpose.msra.mxu0 0.0
    %609 = vmatpush.xpose.msra.mxu0 0.0
    %610 = vmatpush.xpose.msra.mxu0 0.0
    %611 = vmatpush.xpose.msra.mxu0 0.0
    %612 = vmatpush.xpose.msra.mxu0 0.0
    %613 = vmatpush.xpose.msra.mxu0 0.0
    %614 = vmatpush.xpose.msra.mxu0 0.0
    %615 = vmatpush.xpose.msra.mxu0 0.0
    %616 = vmatpush.xpose.msra.mxu0 0.0
    %617 = vmatpush.xpose.msra.mxu0 0.0
    %618 = vmatpush.xpose.msra.mxu0 0.0
    %619 = vmatpush.xpose.msra.mxu0 %v602
    %620 = vmatmul.f32.gmra.mxu0 %v600
    %v621 = vpop.f32.mrf.mxu0
    %v622 = vadd.f32 0.0, %v621
    %623 = vdwg.mxu0
    %v624 = vmul.f32 %v622, 0.35355338
    %v625 = vadd.f32 %v624, %v484
    %v626 = vsel %vm171, %v625, -inf
    %627 = vmax.xlane.f32.xlu0 %v626
    %v628 = vpop.xlane.xlu0 %627
    %v629 = vsub.f32 %v625, %v628
    %v630 = vmul.f32 %v629, 1.442695
    %v631 = vpow.pop %v630
    %v632 = vsel %vm171, %v631, 0.0
    %633 = vadd.xlane.f32.xlu0 %v632
    %v634 = vpop.xlane.xlu0 %633
    %v635 = vrcp.pop %v634
    %v636 = vmul.f32 %v631, %v635
    %637 = vrot.lane.b32.xlu0 %v166, 48
    %v638 = vpop.permute.xlu0 %637
    %v641 = vsel %vm171, %v636, 0
    %643 = vmatpush.msra.mxu0 0.0
    %644 = vmatpush.msra.mxu0 0.0
    %645 = vmatpush.msra.mxu0 0.0
    %646 = vmatpush.msra.mxu0 0.0
    %647 = vmatpush.msra.mxu0 0.0
    %648 = vmatpush.msra.mxu0 0.0
    %649 = vmatpush.msra.mxu0 0.0
    %650 = vmatpush.msra.mxu0 0.0
    %651 = vmatpush.msra.mxu0 0.0
    %652 = vmatpush.msra.mxu0 0.0
    %653 = vmatpush.msra.mxu0 0.0
    %654 = vmatpush.msra.mxu0 0.0
    %655 = vmatpush.msra.mxu0 0.0
    %656 = vmatpush.msra.mxu0 0.0
    %657 = vmatpush.msra.mxu0 0.0
    %658 = vmatpush.msra.mxu0 %v638
    %659 = vmatmul.f32.gmra.mxu0 %v641
    %v660 = vpop.f32.mrf.mxu0
    %v661 = vadd.f32 0.0, %v660
    %662 = vdwg.mxu0
    %664 = vrot.lane.b32.xlu0 %v661, 16
    %v665 = vpop.permute.xlu0 %664
    %667 = vst.msk [vmem:[#allocation2 + $0x8] sm:$0xff] %vm381, %v665
    %668 = vrot.lane.b32.xlu0 %v166, 104
    %v669 = vpop.permute.xlu0 %668
    %670 = vrot.lane.b32.xlu0 %v166, 72
    %v671 = vpop.permute.xlu0 %670
    %v672 = vsel %vm171, %v669, 0
    %v674 = vsel %vm171, %v671, 0
    %676 = vmatpush.xpose.msra.mxu0 0.0
    %677 = vmatpush.xpose.msra.mxu0 0.0
    %678 = vmatpush.xpose.msra.mxu0 0.0
    %679 = vmatpush.xpose.msra.mxu0 0.0
    %680 = vmatpush.xpose.msra.mxu0 0.0
    %681 = vmatpush.xpose.msra.mxu0 0.0
    %682 = vmatpush.xpose.msra.mxu0 0.0
    %683 = vmatpush.xpose.msra.mxu0 0.0
    %684 = vmatpush.xpose.msra.mxu0 0.0
    %685 = vmatpush.xpose.msra.mxu0 0.0
    %686 = vmatpush.xpose.msra.mxu0 0.0
    %687 = vmatpush.xpose.msra.mxu0 0.0
    %688 = vmatpush.xpose.msra.mxu0 0.0
    %689 = vmatpush.xpose.msra.mxu0 0.0
    %690 = vmatpush.xpose.msra.mxu0 0.0
    %691 = vmatpush.xpose.msra.mxu0 %v674
    %692 = vmatmul.f32.gmra.mxu0 %v672
    %v693 = vpop.f32.mrf.mxu0
    %v694 = vadd.f32 0.0, %v693
    %695 = vdwg.mxu0
    %v696 = vmul.f32 %v694, 0.35355338
    %v697 = vadd.f32 %v696, %v484
    %v698 = vsel %vm171, %v697, -inf
    %699 = vmax.xlane.f32.xlu0 %v698
    %v700 = vpop.xlane.xlu0 %699
    %v701 = vsub.f32 %v697, %v700
    %v702 = vmul.f32 %v701, 1.442695
    %v703 = vpow.pop %v702
    %v704 = vsel %vm171, %v703, 0.0
    %705 = vadd.xlane.f32.xlu0 %v704
    %v706 = vpop.xlane.xlu0 %705
    %v707 = vrcp.pop %v706
    %v708 = vmul.f32 %v703, %v707
    %709 = vrot.lane.b32.xlu0 %v166, 40
    %v710 = vpop.permute.xlu0 %709
    %v713 = vsel %vm171, %v708, 0
    %715 = vmatpush.msra.mxu0 0.0
    %716 = vmatpush.msra.mxu0 0.0
    %717 = vmatpush.msra.mxu0 0.0
    %718 = vmatpush.msra.mxu0 0.0
    %719 = vmatpush.msra.mxu0 0.0
    %720 = vmatpush.msra.mxu0 0.0
    %721 = vmatpush.msra.mxu0 0.0
    %722 = vmatpush.msra.mxu0 0.0
    %723 = vmatpush.msra.mxu0 0.0
    %724 = vmatpush.msra.mxu0 0.0
    %725 = vmatpush.msra.mxu0 0.0
    %726 = vmatpush.msra.mxu0 0.0
    %727 = vmatpush.msra.mxu0 0.0
    %728 = vmatpush.msra.mxu0 0.0
    %729 = vmatpush.msra.mxu0 0.0
    %730 = vmatpush.msra.mxu0 %v710
    %731 = vmatmul.f32.gmra.mxu0 %v713
    %v732 = vpop.f32.mrf.mxu0
    %v733 = vadd.f32 0.0, %v732
    %734 = vdwg.mxu0
    %736 = vrot.lane.b32.xlu0 %v733, 24
    %v737 = vpop.permute.xlu0 %736
    %739 = vst.msk [vmem:[#allocation2 + $0x8] sm:$0xff] %vm454, %v737
    %v740 = vld [vmem:[#allocation2] sm:$0xff]
    %v741 = vld [vmem:[#allocation2 + $0x8] sm:$0xff]
    %v742 = vld [vmem:[%s6] sm:$0xff]
    %v743 = vld [vmem:[%s6 + $0x8] sm:$0xff]
    %v744 = vld [vmem:[%s6 + $0x10] sm:$0xff]
    %v745 = vld [vmem:[%s6 + $0x18] sm:$0xff]
    %v746 = vld [vmem:[%s7] sm:$0x1]
    %v747 = vperm.slane %v746, 0
    %v749 = vsel %vm71, %v740, 0
    %v752 = vsel %vm71, %v741, 0
    %754 = vmatpush.msra.mxu0 0.0
    %755 = vmatpush.msra.mxu0 0.0
    %756 = vmatpush.msra.mxu0 0.0
    %757 = vmatpush.msra.mxu0 0.0
    %758 = vmatpush.msra.mxu0 0.0
    %759 = vmatpush.msra.mxu0 0.0
    %760 = vmatpush.msra.mxu0 0.0
    %761 = vmatpush.msra.mxu0 0.0
    %762 = vmatpush.msra.mxu0 0.0
    %763 = vmatpush.msra.mxu0 0.0
    %764 = vmatpush.msra.mxu0 0.0
    %765 = vmatpush.msra.mxu0 0.0
    %766 = vmatpush.msra.mxu0 %v745
    %767 = vmatpush.msra.mxu0 %v744
    %768 = vmatpush.msra.mxu0 %v743
    %769 = vmatpush.msra.mxu0 %v742
    %770 = vmatmul.f32.gmra.mxu0 %v749
    %v771 = vpop.f32.mrf.mxu0
    %v772 = vadd.f32 %v747, %v771
    %773 = vmatmul.f32.gmra.mxu0 %v752
    %v774 = vpop.f32.mrf.mxu0
    %v775 = vadd.f32 %v747, %v774
    %776 = vdwg.mxu0
    %v777 = vadd.f32 %v131, %v772
    %v778 = vadd.f32 %v132, %v775
    %v779 = vld [vmem:[%s8] sm:$0x1]
    %v780 = vld [vmem:[%s9] sm:$0x1]
    %v781 = vsel %vm71, %v777, 0.0
    %782 = vadd.xlane.f32.xlu0 %v781
    %v783 = vpop.xlane.xlu0 %782
    %v784 = vsel %vm71, %v778, 0.0
    %785 = vadd.xlane.f32.xlu0 %v784
    %v786 = vpop.xlane.xlu0 %785
    %v787 = vmul.f32 %v783, %v84
    %v788 = vmul.f32 %v786, %v84
    %v789 = vsub.f32 %v777, %v787
    %v790 = vsub.f32 %v778, %v788
    %v791 = vmul.f32 %v789, %v789
    %v792 = vmul.f32 %v790, %v790
    %v793 = vsel %vm71, %v791, 0.0
    %794 = vadd.xlane.f32.xlu0 %v793
    %v795 = vpop.xlane.xlu0 %794
    %v796 = vsel %vm71, %v792, 0.0
    %797 = vadd.xlane.f32.xlu0 %v796
    %v798 = vpop.xlane.xlu0 %797
    %v799 = vmul.f32 %v795, %v84
    %v800 = vmul.f32 %v798, %v84
    %v801 = vadd.f32 %v799, 1e-12
    %v802 = vadd.f32 %v800, 1e-12
    %v803 = vrsqrt.pop %v801
    %v804 = vmul.f32 %v803, %v801
    %v805 = vmul.f32 %v804, %v803
    %v806 = vmul.f32 0.5, %v805
    %v807 = vsub.f32 1.5, %v806
    %v808 = vmul.f32 %v803, %v807
    %vm809 = vweird.f32 %v801
    %vm810 = vweird.f32 %v803
    %vm811 = vmor %vm809, %vm810
    %v812 = vsel %vm811, %v803, %v808
    %v813 = vrsqrt.pop %v802
    %v814 = vmul.f32 %v813, %v802
    %v815 = vmul.f32 %v814, %v813
    %v816 = vmul.f32 0.5, %v815
    %v817 = vsub.f32 1.5, %v816
    %v818 = vmul.f32 %v813, %v817
    %vm819 = vweird.f32 %v802
    %vm820 = vweird.f32 %v813
    %vm821 = vmor %vm819, %vm820
    %v822 = vsel %vm821, %v813, %v818
    %v823 = vmul.f32 %v789, %v812
    %v824 = vmul.f32 %v790, %v822
    %v825 = vperm.slane %v779, 0
    %v826 = vmul.f32 %v823, %v825
    %v827 = vmul.f32 %v824, %v825
    %v828 = vperm.slane %v780, 0
    %v829 = vadd.f32 %v826, %v828
    %v830 = vadd.f32 %v827, %v828
    %v831 = vld [vmem:[%s10] sm:$0xff]
    %v832 = vld [vmem:[%s10 + $0x8] sm:$0xff]
    %v833 = vld [vmem:[%s10 + $0x10] sm:$0xff]
    %v834 = vld [vmem:[%s10 + $0x18] sm:$0xff]
    %v835 = vld [vmem:[%s11] sm:$0x1]
    %v836 = vperm.slane %v835, 0
    %v838 = vsel %vm71, %v829, 0
    %v841 = vsel %vm71, %v830, 0
    %843 = vmatpush.msra.mxu0 0.0
    %844 = vmatpush.msra.mxu0 0.0
    %845 = vmatpush.msra.mxu0 0.0
    %846 = vmatpush.msra.mxu0 0.0
    %847 = vmatpush.msra.mxu0 0.0
    %848 = vmatpush.msra.mxu0 0.0
    %849 = vmatpush.msra.mxu0 0.0
    %850 = vmatpush.msra.mxu0 0.0
    %851 = vmatpush.msra.mxu0 0.0
    %852 = vmatpush.msra.mxu0 0.0
    %853 = vmatpush.msra.mxu0 0.0
    %854 = vmatpush.msra.mxu0 0.0
    %855 = vmatpush.msra.mxu0 %v834
    %856 = vmatpush.msra.mxu0 %v833
    %857 = vmatpush.msra.mxu0 %v832
    %858 = vmatpush.msra.mxu0 %v831
    %859 = vmatmul.f32.gmra.mxu0 %v838
    %v860 = vpop.f32.mrf.mxu0
    %v861 = vadd.f32 %v836, %v860
    %862 = vmatmul.f32.gmra.mxu0 %v841
    %v863 = vpop.f32.mrf.mxu0
    %v864 = vadd.f32 %v836, %v863
    %865 = vdwg.mxu0
    %v866 = vmul.f32 %v861, %v861
    %v867 = vmul.f32 %v864, %v864
    %v868 = vmul.f32 %v861, %v866
    %v869 = vmul.f32 %v864, %v867
    %v870 = vmul.f32 %v868, 0.044715
    %v871 = vmul.f32 %v869, 0.044715
    %v872 = vadd.f32 %v861, %v870
    %v873 = vadd.f32 %v864, %v871
    %v874 = vmul.f32 %v872, 0.7978846
    %v875 = vmul.f32 %v873, 0.7978846
    %v876 = vtanh.pop %v874
    %v877 = vtanh.pop %v875
    %v878 = vadd.f32 %v876, 1.0
    %v879 = vadd.f32 %v877, 1.0
    %v880 = vmul.f32 %v878, 0.5
    %v881 = vmul.f32 %v879, 0.5
    %v882 = vmul.f32 %v861, %v880
    %v883 = vmul.f32 %v864, %v881
    %v884 = vld [vmem:[%s12] sm:$0xff]
    %v885 = vld [vmem:[%s12 + $0x8] sm:$0xff]
    %v886 = vld [vmem:[%s12 + $0x10] sm:$0xff]
    %v887 = vld [vmem:[%s12 + $0x18] sm:$0xff]
    %v888 = vld [vmem:[%s12 + $0x20] sm:$0xff]
    %v889 = vld [vmem:[%s12 + $0x28] sm:$0xff]
    %v890 = vld [vmem:[%s12 + $0x30] sm:$0xff]
    %v891 = vld [vmem:[%s12 + $0x38] sm:$0xff]
    %v892 = vld [vmem:[%s13] sm:$0x1]
    %v893 = vperm.slane %v892, 0
    %vm894 = vcmask 523264
    %v896 = vsel %vm894, %v882, 0
    %v899 = vsel %vm894, %v883, 0
    %901 = vmatpush.msra.mxu0 0.0
    %902 = vmatpush.msra.mxu0 0.0
    %903 = vmatpush.msra.mxu0 0.0
    %904 = vmatpush.msra.mxu0 0.0
    %905 = vmatpush.msra.mxu0 0.0
    %906 = vmatpush.msra.mxu0 0.0
    %907 = vmatpush.msra.mxu0 0.0
    %908 = vmatpush.msra.mxu0 0.0
    %909 = vmatpush.msra.mxu0 %v891
    %910 = vmatpush.msra.mxu0 %v890
    %911 = vmatpush.msra.mxu0 %v889
    %912 = vmatpush.msra.mxu0 %v888
    %913 = vmatpush.msra.mxu0 %v887
    %914 = vmatpush.msra.mxu0 %v886
    %915 = vmatpush.msra.mxu0 %v885
    %916 = vmatpush.msra.mxu0 %v884
    %917 = vmatmul.f32.gmra.mxu0 %v896
    %v918 = vpop.f32.mrf.mxu0
    %v919 = vadd.f32 %v893, %v918
    %920 = vmatmul.f32.gmra.mxu0 %v899
    %v921 = vpop.f32.mrf.mxu0
    %v922 = vadd.f32 %v893, %v921
    %923 = vdwg.mxu0
    %v924 = vadd.f32 %v829, %v919
    %v925 = vadd.f32 %v830, %v922
    %v926 = vld [vmem:[%s14] sm:$0x1]
    %v927 = vld [vmem:[%s15] sm:$0x1]
    %v928 = vsel %vm71, %v924, 0.0
    %929 = vadd.xlane.f32.xlu0 %v928
    %v930 = vpop.xlane.xlu0 %929
    %v931 = vsel %vm71, %v925, 0.0
    %932 = vadd.xlane.f32.xlu0 %v931
    %v933 = vpop.xlane.xlu0 %932
    %v934 = vmul.f32 %v930, %v84
    %v935 = vmul.f32 %v933, %v84
    %v936 = vsub.f32 %v924, %v934
    %v937 = vsub.f32 %v925, %v935
    %v938 = vmul.f32 %v936, %v936
    %v939 = vmul.f32 %v937, %v937
    %v940 = vsel %vm71, %v938, 0.0
    %941 = vadd.xlane.f32.xlu0 %v940
    %v942 = vpop.xlane.xlu0 %941
    %v943 = vsel %vm71, %v939, 0.0
    %944 = vadd.xlane.f32.xlu0 %v943
    %v945 = vpop.xlane.xlu0 %944
    %v946 = vmul.f32 %v942, %v84
    %v947 = vmul.f32 %v945, %v84
    %v948 = vadd.f32 %v946, 1e-12
    %v949 = vadd.f32 %v947, 1e-12
    %v950 = vrsqrt.pop %v948
    %v951 = vmul.f32 %v950, %v948
    %v952 = vmul.f32 %v951, %v950
    %v953 = vmul.f32 0.5, %v952
    %v954 = vsub.f32 1.5, %v953
    %v955 = vmul.f32 %v950, %v954
    %vm956 = vweird.f32 %v948
    %vm957 = vweird.f32 %v950
    %vm958 = vmor %vm956, %vm957
    %v959 = vsel %vm958, %v950, %v955
    %v960 = vrsqrt.pop %v949
    %v961 = vmul.f32 %v960, %v949
    %v962 = vmul.f32 %v961, %v960
    %v963 = vmul.f32 0.5, %v962
    %v964 = vsub.f32 1.5, %v963
    %v965 = vmul.f32 %v960, %v964
    %vm966 = vweird.f32 %v949
    %vm967 = vweird.f32 %v960
    %vm968 = vmor %vm966, %vm967
    %v969 = vsel %vm968, %v960, %v965
    %v970 = vmul.f32 %v936, %v959
    %v971 = vmul.f32 %v937, %v969
    %v972 = vperm.slane %v926, 0
    %v973 = vmul.f32 %v970, %v972
    %v974 = vmul.f32 %v971, %v972
    %v975 = vperm.slane %v927, 0
    %v976 = vadd.f32 %v973, %v975
    %v977 = vadd.f32 %v974, %v975
    %s978 = scalar_lea.vmem %s4, 32
    %v979 = vld [vmem:[%s978] sm:$0xff]
    %v980 = vld [vmem:[%s978 + $0x8] sm:$0xff]
    %v981 = vld [vmem:[%s978 + $0x10] sm:$0xff]
    %v982 = vld [vmem:[%s978 + $0x18] sm:$0xff]
    %v983 = vld [vmem:[%s5 + $0x1] sm:$0x1]
    %v984 = vperm.slane %v983, 0
    %v986 = vsel %vm71, %v976, 0
    %v989 = vsel %vm71, %v977, 0
    %991 = vmatpush.msra.mxu0 0.0
    %992 = vmatpush.msra.mxu0 0.0
    %993 = vmatpush.msra.mxu0 0.0
    %994 = vmatpush.msra.mxu0 0.0
    %995 = vmatpush.msra.mxu0 0.0
    %996 = vmatpush.msra.mxu0 0.0
    %997 = vmatpush.msra.mxu0 0.0
    %998 = vmatpush.msra.mxu0 0.0
    %999 = vmatpush.msra.mxu0 0.0
    %1000 = vmatpush.msra.mxu0 0.0
    %1001 = vmatpush.msra.mxu0 0.0
    %1002 = vmatpush.msra.mxu0 0.0
    %1003 = vmatpush.msra.mxu0 %v982
    %1004 = vmatpush.msra.mxu0 %v981
    %1005 = vmatpush.msra.mxu0 %v980
    %1006 = vmatpush.msra.mxu0 %v979
    %1007 = vmatmul.f32.gmra.mxu0 %v986
    %v1008 = vpop.f32.mrf.mxu0
    %v1009 = vadd.f32 %v984, %v1008
    %1010 = vmatmul.f32.gmra.mxu0 %v989
    %v1011 = vpop.f32.mrf.mxu0
    %v1012 = vadd.f32 %v984, %v1011
    %1013 = vdwg.mxu0
    %1015 = vrot.lane.b32.xlu0 %v1009, 96
    %v1016 = vpop.permute.xlu0 %1015
    %v1017 = vsel %vm171, %v1009, 0
    %v1019 = vsel %vm171, %v1016, 0
    %1021 = vmatpush.xpose.msra.mxu0 0.0
    %1022 = vmatpush.xpose.msra.mxu0 0.0
    %1023 = vmatpush.xpose.msra.mxu0 0.0
    %1024 = vmatpush.xpose.msra.mxu0 0.0
    %1025 = vmatpush.xpose.msra.mxu0 0.0
    %1026 = vmatpush.xpose.msra.mxu0 0.0
    %1027 = vmatpush.xpose.msra.mxu0 0.0
    %1028 = vmatpush.xpose.msra.mxu0 0.0
    %1029 = vmatpush.xpose.msra.mxu0 0.0
    %1030 = vmatpush.xpose.msra.mxu0 0.0
    %1031 = vmatpush.xpose.msra.mxu0 0.0
    %1032 = vmatpush.xpose.msra.mxu0 0.0
    %1033 = vmatpush.xpose.msra.mxu0 0.0
    %1034 = vmatpush.xpose.msra.mxu0 0.0
    %1035 = vmatpush.xpose.msra.mxu0 0.0
    %1036 = vmatpush.xpose.msra.mxu0 %v1019
    %1037 = vmatmul.f32.gmra.mxu0 %v1017
    %v1038 = vpop.f32.mrf.mxu0
    %v1039 = vadd.f32 0.0, %v1038
    %1040 = vdwg.mxu0
    %v1041 = vmul.f32 %v1039, 0.35355338
    %v1042 = vadd.f32 %v1041, %v197
    %v1043 = vsel %vm171, %v1042, -inf
    %1044 = vmax.xlane.f32.xlu0 %v1043
    %v1045 = vpop.xlane.xlu0 %1044
    %v1046 = vsub.f32 %v1042, %v1045
    %v1047 = vmul.f32 %v1046, 1.442695
    %v1048 = vpow.pop %v1047
    %v1049 = vsel %vm171, %v1048, 0.0
    %1050 = vadd.xlane.f32.xlu0 %v1049
    %v1051 = vpop.xlane.xlu0 %1050
    %v1052 = vrcp.pop %v1051
    %v1053 = vmul.f32 %v1048, %v1052
    %1054 = vrot.lane.b32.xlu0 %v1009, 64
    %v1055 = vpop.permute.xlu0 %1054
    %v1058 = vsel %vm171, %v1053, 0
    %1060 = vmatpush.msra.mxu0 0.0
    %1061 = vmatpush.msra.mxu0 0.0
    %1062 = vmatpush.msra.mxu0 0.0
    %1063 = vmatpush.msra.mxu0 0.0
    %1064 = vmatpush.msra.mxu0 0.0
    %1065 = vmatpush.msra.mxu0 0.0
    %1066 = vmatpush.msra.mxu0 0.0
    %1067 = vmatpush.msra.mxu0 0.0
    %1068 = vmatpush.msra.mxu0 0.0
    %1069 = vmatpush.msra.mxu0 0.0
    %1070 = vmatpush.msra.mxu0 0.0
    %1071 = vmatpush.msra.mxu0 0.0
    %1072 = vmatpush.msra.mxu0 0.0
    %1073 = vmatpush.msra.mxu0 0.0
    %1074 = vmatpush.msra.mxu0 0.0
    %1075 = vmatpush.msra.mxu0 %v1055
    %1076 = vmatmul.f32.gmra.mxu0 %v1058
    %v1077 = vpop.f32.mrf.mxu0
    %v1078 = vadd.f32 0.0, %v1077
    %1079 = vdwg.mxu0
    %1080 = vst.msk [vmem:[#allocation2] sm:$0xff] %vm171, %v1078
    %1081 = vrot.lane.b32.xlu0 %v1009, 120
    %v1082 = vpop.permute.xlu0 %1081
    %1083 = vrot.lane.b32.xlu0 %v1009, 88
    %v1084 = vpop.permute.xlu0 %1083
    %v1085 = vsel %vm171, %v1082, 0
    %v1087 = vsel %vm171, %v1084, 0
    %1089 = vmatpush.xpose.msra.mxu0 0.0
    %1090 = vmatpush.xpose.msra.mxu0 0.0
    %1091 = vmatpush.xpose.msra.mxu0 0.0
    %1092 = vmatpush.xpose.msra.mxu0 0.0
    %1093 = vmatpush.xpose.msra.mxu0 0.0
    %1094 = vmatpush.xpose.msra.mxu0 0.0
    %1095 = vmatpush.xpose.msra.mxu0 0.0
    %1096 = vmatpush.xpose.msra.mxu0 0.0
    %1097 = vmatpush.xpose.msra.mxu0 0.0
    %1098 = vmatpush.xpose.msra.mxu0 0.0
    %1099 = vmatpush.xpose.msra.mxu0 0.0
    %1100 = vmatpush.xpose.msra.mxu0 0.0
    %1101 = vmatpush.xpose.msra.mxu0 0.0
    %1102 = vmatpush.xpose.msra.mxu0 0.0
    %1103 = vmatpush.xpose.msra.mxu0 0.0
    %1104 = vmatpush.xpose.msra.mxu0 %v1087
    %1105 = vmatmul.f32.gmra.mxu0 %v1085
    %v1106 = vpop.f32.mrf.mxu0
    %v1107 = vadd.f32 0.0, %v1106
    %1108 = vdwg.mxu0
    %v1109 = vmul.f32 %v1107, 0.35355338
    %v1110 = vadd.f32 %v1109, %v197
    %v1111 = vsel %vm171, %v1110, -inf
    %1112 = vmax.xlane.f32.xlu0 %v1111
    %v1113 = vpop.xlane.xlu0 %1112
    %v1114 = vsub.f32 %v1110, %v1113
    %v1115 = vmul.f32 %v1114, 1.442695
    %v1116 = vpow.pop %v1115
    %v1117 = vsel %vm171, %v1116, 0.0
    %1118 = vadd.xlane.f32.xlu0 %v1117
    %v1119 = vpop.xlane.xlu0 %1118
    %v1120 = vrcp.pop %v1119
    %v1121 = vmul.f32 %v1116, %v1120
    %1122 = vrot.lane.b32.xlu0 %v1009, 56
    %v1123 = vpop.permute.xlu0 %1122
    %v1126 = vsel %vm171, %v1121, 0
    %1128 = vmatpush.msra.mxu0 0.0
    %1129 = vmatpush.msra.mxu0 0.0
    %1130 = vmatpush.msra.mxu0 0.0
    %1131 = vmatpush.msra.mxu0 0.0
    %1132 = vmatpush.msra.mxu0 0.0
    %1133 = vmatpush.msra.mxu0 0.0
    %1134 = vmatpush.msra.mxu0 0.0
    %1135 = vmatpush.msra.mxu0 0.0
    %1136 = vmatpush.msra.mxu0 0.0
    %1137 = vmatpush.msra.mxu0 0.0
    %1138 = vmatpush.msra.mxu0 0.0
    %1139 = vmatpush.msra.mxu0 0.0
    %1140 = vmatpush.msra.mxu0 0.0
    %1141 = vmatpush.msra.mxu0 0.0
    %1142 = vmatpush.msra.mxu0 0.0
    %1143 = vmatpush.msra.mxu0 %v1123
    %1144 = vmatmul.f32.gmra.mxu0 %v1126
    %v1145 = vpop.f32.mrf.mxu0
    %v1146 = vadd.f32 0.0, %v1145
    %1147 = vdwg.mxu0
    %1149 = vrot.lane.b32.xlu0 %v1146, 8
    %v1150 = vpop.permute.xlu0 %1149
    %1152 = vst.msk [vmem:[#allocation2] sm:$0xff] %vm308, %v1150
    %1153 = vrot.lane.b32.xlu0 %v1009, 112
    %v1154 = vpop.permute.xlu0 %1153
    %1155 = vrot.lane.b32.xlu0 %v1009, 80
    %v1156 = vpop.permute.xlu0 %1155
    %v1157 = vsel %vm171, %v1154, 0
    %v1159 = vsel %vm171, %v1156, 0
    %1161 = vmatpush.xpose.msra.mxu0 0.0
    %1162 = vmatpush.xpose.msra.mxu0 0.0
    %1163 = vmatpush.xpose.msra.mxu0 0.0
    %1164 = vmatpush.xpose.msra.mxu0 0.0
    %1165 = vmatpush.xpose.msra.mxu0 0.0
    %1166 = vmatpush.xpose.msra.mxu0 0.0
    %1167 = vmatpush.xpose.msra.mxu0 0.0
    %1168 = vmatpush.xpose.msra.mxu0 0.0
    %1169 = vmatpush.xpose.msra.mxu0 0.0
    %1170 = vmatpush.xpose.msra.mxu0 0.0
    %1171 = vmatpush.xpose.msra.mxu0 0.0
    %1172 = vmatpush.xpose.msra.mxu0 0.0
    %1173 = vmatpush.xpose.msra.mxu0 0.0
    %1174 = vmatpush.xpose.msra.mxu0 0.0
    %1175 = vmatpush.xpose.msra.mxu0 0.0
    %1176 = vmatpush.xpose.msra.mxu0 %v1159
    %1177 = vmatmul.f32.gmra.mxu0 %v1157
    %v1178 = vpop.f32.mrf.mxu0
    %v1179 = vadd.f32 0.0, %v1178
    %1180 = vdwg.mxu0
    %v1181 = vmul.f32 %v1179, 0.35355338
    %v1182 = vadd.f32 %v1181, %v197
    %v1183 = vsel %vm171, %v1182, -inf
    %1184 = vmax.xlane.f32.xlu0 %v1183
    %v1185 = vpop.xlane.xlu0 %1184
    %v1186 = vsub.f32 %v1182, %v1185
    %v1187 = vmul.f32 %v1186, 1.442695
    %v1188 = vpow.pop %v1187
    %v1189 = vsel %vm171, %v1188, 0.0
    %1190 = vadd.xlane.f32.xlu0 %v1189
    %v1191 = vpop.xlane.xlu0 %1190
    %v1192 = vrcp.pop %v1191
    %v1193 = vmul.f32 %v1188, %v1192
    %1194 = vrot.lane.b32.xlu0 %v1009, 48
    %v1195 = vpop.permute.xlu0 %1194
    %v1198 = vsel %vm171, %v1193, 0
    %1200 = vmatpush.msra.mxu0 0.0
    %1201 = vmatpush.msra.mxu0 0.0
    %1202 = vmatpush.msra.mxu0 0.0
    %1203 = vmatpush.msra.mxu0 0.0
    %1204 = vmatpush.msra.mxu0 0.0
    %1205 = vmatpush.msra.mxu0 0.0
    %1206 = vmatpush.msra.mxu0 0.0
    %1207 = vmatpush.msra.mxu0 0.0
    %1208 = vmatpush.msra.mxu0 0.0
    %1209 = vmatpush.msra.mxu0 0.0
    %1210 = vmatpush.msra.mxu0 0.0
    %1211 = vmatpush.msra.mxu0 0.0
    %1212 = vmatpush.msra.mxu0 0.0
    %1213 = vmatpush.msra.mxu0 0.0
    %1214 = vmatpush.msra.mxu0 0.0
    %1215 = vmatpush.msra.mxu0 %v1195
    %1216 = vmatmul.f32.gmra.mxu0 %v1198
    %v1217 = vpop.f32.mrf.mxu0
    %v1218 = vadd.f32 0.0, %v1217
    %1219 = vdwg.mxu0
    %1221 = vrot.lane.b32.xlu0 %v1218, 16
    %v1222 = vpop.permute.xlu0 %1221
    %1224 = vst.msk [vmem:[#allocation2] sm:$0xff] %vm381, %v1222
    %1225 = vrot.lane.b32.xlu0 %v1009, 104
    %v1226 = vpop.permute.xlu0 %1225
    %1227 = vrot.lane.b32.xlu0 %v1009, 72
    %v1228 = vpop.permute.xlu0 %1227
    %v1229 = vsel %vm171, %v1226, 0
    %v1231 = vsel %vm171, %v1228, 0
    %1233 = vmatpush.xpose.msra.mxu0 0.0
    %1234 = vmatpush.xpose.msra.mxu0 0.0
    %1235 = vmatpush.xpose.msra.mxu0 0.0
    %1236 = vmatpush.xpose.msra.mxu0 0.0
    %1237 = vmatpush.xpose.msra.mxu0 0.0
    %1238 = vmatpush.xpose.msra.mxu0 0.0
    %1239 = vmatpush.xpose.msra.mxu0 0.0
    %1240 = vmatpush.xpose.msra.mxu0 0.0
    %1241 = vmatpush.xpose.msra.mxu0 0.0
    %1242 = vmatpush.xpose.msra.mxu0 0.0
    %1243 = vmatpush.xpose.msra.mxu0 0.0
    %1244 = vmatpush.xpose.msra.mxu0 0.0
    %1245 = vmatpush.xpose.msra.mxu0 0.0
    %1246 = vmatpush.xpose.msra.mxu0 0.0
    %1247 = vmatpush.xpose.msra.mxu0 0.0
    %1248 = vmatpush.xpose.msra.mxu0 %v1231
    %1249 = vmatmul.f32.gmra.mxu0 %v1229
    %v1250 = vpop.f32.mrf.mxu0
    %v1251 = vadd.f32 0.0, %v1250
    %1252 = vdwg.mxu0
    %v1253 = vmul.f32 %v1251, 0.35355338
    %v1254 = vadd.f32 %v1253, %v197
    %v1255 = vsel %vm171, %v1254, -inf
    %1256 = vmax.xlane.f32.xlu0 %v1255
    %v1257 = vpop.xlane.xlu0 %1256
    %v1258 = vsub.f32 %v1254, %v1257
    %v1259 = vmul.f32 %v1258, 1.442695
    %v1260 = vpow.pop %v1259
    %v1261 = vsel %vm171, %v1260, 0.0
    %1262 = vadd.xlane.f32.xlu0 %v1261
    %v1263 = vpop.xlane.xlu0 %1262
    %v1264 = vrcp.pop %v1263
    %v1265 = vmul.f32 %v1260, %v1264
    %1266 = vrot.lane.b32.xlu0 %v1009, 40
    %v1267 = vpop.permute.xlu0 %1266
    %v1270 = vsel %vm171, %v1265, 0
    %1272 = vmatpush.msra.mxu0 0.0
    %1273 = vmatpush.msra.mxu0 0.0
    %1274 = vmatpush.msra.mxu0 0.0
    %1275 = vmatpush.msra.mxu0 0.0
    %1276 = vmatpush.msra.mxu0 0.0
    %1277 = vmatpush.msra.mxu0 0.0
    %1278 = vmatpush.msra.mxu0 0.0
    %1279 = vmatpush.msra.mxu0 0.0
    %1280 = vmatpush.msra.mxu0 0.0
    %1281 = vmatpush.msra.mxu0 0.0
    %1282 = vmatpush.msra.mxu0 0.0
    %1283 = vmatpush.msra.mxu0 0.0
    %1284 = vmatpush.msra.mxu0 0.0
    %1285 = vmatpush.msra.mxu0 0.0
    %1286 = vmatpush.msra.mxu0 0.0
    %1287 = vmatpush.msra.mxu0 %v1267
    %1288 = vmatmul.f32.gmra.mxu0 %v1270
    %v1289 = vpop.f32.mrf.mxu0
    %v1290 = vadd.f32 0.0, %v1289
    %1291 = vdwg.mxu0
    %1293 = vrot.lane.b32.xlu0 %v1290, 24
    %v1294 = vpop.permute.xlu0 %1293
    %1296 = vst.msk [vmem:[#allocation2] sm:$0xff] %vm454, %v1294
    %1298 = vrot.lane.b32.xlu0 %v1012, 96
    %v1299 = vpop.permute.xlu0 %1298
    %v1300 = vsel %vm171, %v1012, 0
    %v1302 = vsel %vm171, %v1299, 0
    %1304 = vmatpush.xpose.msra.mxu0 0.0
    %1305 = vmatpush.xpose.msra.mxu0 0.0
    %1306 = vmatpush.xpose.msra.mxu0 0.0
    %1307 = vmatpush.xpose.msra.mxu0 0.0
    %1308 = vmatpush.xpose.msra.mxu0 0.0
    %1309 = vmatpush.xpose.msra.mxu0 0.0
    %1310 = vmatpush.xpose.msra.mxu0 0.0
    %1311 = vmatpush.xpose.msra.mxu0 0.0
    %1312 = vmatpush.xpose.msra.mxu0 0.0
    %1313 = vmatpush.xpose.msra.mxu0 0.0
    %1314 = vmatpush.xpose.msra.mxu0 0.0
    %1315 = vmatpush.xpose.msra.mxu0 0.0
    %1316 = vmatpush.xpose.msra.mxu0 0.0
    %1317 = vmatpush.xpose.msra.mxu0 0.0
    %1318 = vmatpush.xpose.msra.mxu0 0.0
    %1319 = vmatpush.xpose.msra.mxu0 %v1302
    %1320 = vmatmul.f32.gmra.mxu0 %v1300
    %v1321 = vpop.f32.mrf.mxu0
    %v1322 = vadd.f32 0.0, %v1321
    %1323 = vdwg.mxu0
    %v1324 = vmul.f32 %v1322, 0.35355338
    %v1325 = vadd.f32 %v1324, %v484
    %v1326 = vsel %vm171, %v1325, -inf
    %1327 = vmax.xlane.f32.xlu0 %v1326
    %v1328 = vpop.xlane.xlu0 %1327
    %v1329 = vsub.f32 %v1325, %v1328
    %v1330 = vmul.f32 %v1329, 1.442695
    %v1331 = vpow.pop %v1330
    %v1332 = vsel %vm171, %v1331, 0.0
    %1333 = vadd.xlane.f32.xlu0 %v1332
    %v1334 = vpop.xlane.xlu0 %1333
    %v1335 = vrcp.pop %v1334
    %v1336 = vmul.f32 %v1331, %v1335
    %1337 = vrot.lane.b32.xlu0 %v1012, 64
    %v1338 = vpop.permute.xlu0 %1337
    %v1341 = vsel %vm171, %v1336, 0
    %1343 = vmatpush.msra.mxu0 0.0
    %1344 = vmatpush.msra.mxu0 0.0
    %1345 = vmatpush.msra.mxu0 0.0
    %1346 = vmatpush.msra.mxu0 0.0
    %1347 = vmatpush.msra.mxu0 0.0
    %1348 = vmatpush.msra.mxu0 0.0
    %1349 = vmatpush.msra.mxu0 0.0
    %1350 = vmatpush.msra.mxu0 0.0
    %1351 = vmatpush.msra.mxu0 0.0
    %1352 = vmatpush.msra.mxu0 0.0
    %1353 = vmatpush.msra.mxu0 0.0
    %1354 = vmatpush.msra.mxu0 0.0
    %1355 = vmatpush.msra.mxu0 0.0
    %1356 = vmatpush.msra.mxu0 0.0
    %1357 = vmatpush.msra.mxu0 0.0
    %1358 = vmatpush.msra.mxu0 %v1338
    %1359 = vmatmul.f32.gmra.mxu0 %v1341
    %v1360 = vpop.f32.mrf.mxu0
    %v1361 = vadd.f32 0.0, %v1360
    %1362 = vdwg.mxu0
    %1363 = vst.msk [vmem:[#allocation2 + $0x8] sm:$0xff] %vm171, %v1361
    %1364 = vrot.lane.b32.xlu0 %v1012, 120
    %v1365 = vpop.permute.xlu0 %1364
    %1366 = vrot.lane.b32.xlu0 %v1012, 88
    %v1367 = vpop.permute.xlu0 %1366
    %v1368 = vsel %vm171, %v1365, 0
    %v1370 = vsel %vm171, %v1367, 0
    %1372 = vmatpush.xpose.msra.mxu0 0.0
    %1373 = vmatpush.xpose.msra.mxu0 0.0
    %1374 = vmatpush.xpose.msra.mxu0 0.0
    %1375 = vmatpush.xpose.msra.mxu0 0.0
    %1376 = vmatpush.xpose.msra.mxu0 0.0
    %1377 = vmatpush.xpose.msra.mxu0 0.0
    %1378 = vmatpush.xpose.msra.mxu0 0.0
    %1379 = vmatpush.xpose.msra.mxu0 0.0
    %1380 = vmatpush.xpose.msra.mxu0 0.0
    %1381 = vmatpush.xpose.msra.mxu0 0.0
    %1382 = vmatpush.xpose.msra.mxu0 0.0
    %1383 = vmatpush.xpose.msra.mxu0 0.0
    %1384 = vmatpush.xpose.msra.mxu0 0.0
    %1385 = vmatpush.xpose.msra.mxu0 0.0
    %1386 = vmatpush.xpose.msra.mxu0 0.0
    %1387 = vmatpush.xpose.msra.mxu0 %v1370
    %1388 = vmatmul.f32.gmra.mxu0 %v1368
    %v1389 = vpop.f32.mrf.mxu0
    %v1390 = vadd.f32 0.0, %v1389
    %1391 = vdwg.mxu0
    %v1392 = vmul.f32 %v1390, 0.35355338
    %v1393 = vadd.f32 %v1392, %v484
    %v1394 = vsel %vm171, %v1393, -inf
    %1395 = vmax.xlane.f32.xlu0 %v1394
    %v1396 = vpop.xlane.xlu0 %1395
    %v1397 = vsub.f32 %v1393, %v1396
    %v1398 = vmul.f32 %v1397, 1.442695
    %v1399 = vpow.pop %v1398
    %v1400 = vsel %vm171, %v1399, 0.0
    %1401 = vadd.xlane.f32.xlu0 %v1400
    %v1402 = vpop.xlane.xlu0 %1401
    %v1403 = vrcp.pop %v1402
    %v1404 = vmul.f32 %v1399, %v1403
    %1405 = vrot.lane.b32.xlu0 %v1012, 56
    %v1406 = vpop.permute.xlu0 %1405
    %v1409 = vsel %vm171, %v1404, 0
    %1411 = vmatpush.msra.mxu0 0.0
    %1412 = vmatpush.msra.mxu0 0.0
    %1413 = vmatpush.msra.mxu0 0.0
    %1414 = vmatpush.msra.mxu0 0.0
    %1415 = vmatpush.msra.mxu0 0.0
    %1416 = vmatpush.msra.mxu0 0.0
    %1417 = vmatpush.msra.mxu0 0.0
    %1418 = vmatpush.msra.mxu0 0.0
    %1419 = vmatpush.msra.mxu0 0.0
    %1420 = vmatpush.msra.mxu0 0.0
    %1421 = vmatpush.msra.mxu0 0.0
    %1422 = vmatpush.msra.mxu0 0.0
    %1423 = vmatpush.msra.mxu0 0.0
    %1424 = vmatpush.msra.mxu0 0.0
    %1425 = vmatpush.msra.mxu0 0.0
    %1426 = vmatpush.msra.mxu0 %v1406
    %1427 = vmatmul.f32.gmra.mxu0 %v1409
    %v1428 = vpop.f32.mrf.mxu0
    %v1429 = vadd.f32 0.0, %v1428
    %1430 = vdwg.mxu0
    %1432 = vrot.lane.b32.xlu0 %v1429, 8
    %v1433 = vpop.permute.xlu0 %1432
    %1435 = vst.msk [vmem:[#allocation2 + $0x8] sm:$0xff] %vm308, %v1433
    %1436 = vrot.lane.b32.xlu0 %v1012, 112
    %v1437 = vpop.permute.xlu0 %1436
    %1438 = vrot.lane.b32.xlu0 %v1012, 80
    %v1439 = vpop.permute.xlu0 %1438
    %v1440 = vsel %vm171, %v1437, 0
    %v1442 = vsel %vm171, %v1439, 0
    %1444 = vmatpush.xpose.msra.mxu0 0.0
    %1445 = vmatpush.xpose.msra.mxu0 0.0
    %1446 = vmatpush.xpose.msra.mxu0 0.0
    %1447 = vmatpush.xpose.msra.mxu0 0.0
    %1448 = vmatpush.xpose.msra.mxu0 0.0
    %1449 = vmatpush.xpose.msra.mxu0 0.0
    %1450 = vmatpush.xpose.msra.mxu0 0.0
    %1451 = vmatpush.xpose.msra.mxu0 0.0
    %1452 = vmatpush.xpose.msra.mxu0 0.0
    %1453 = vmatpush.xpose.msra.mxu0 0.0
    %1454 = vmatpush.xpose.msra.mxu0 0.0
    %1455 = vmatpush.xpose.msra.mxu0 0.0
    %1456 = vmatpush.xpose.msra.mxu0 0.0
    %1457 = vmatpush.xpose.msra.mxu0 0.0
    %1458 = vmatpush.xpose.msra.mxu0 0.0
    %1459 = vmatpush.xpose.msra.mxu0 %v1442
    %1460 = vmatmul.f32.gmra.mxu0 %v1440
    %v1461 = vpop.f32.mrf.mxu0
    %v1462 = vadd.f32 0.0, %v1461
    %1463 = vdwg.mxu0
    %v1464 = vmul.f32 %v1462, 0.35355338
    %v1465 = vadd.f32 %v1464, %v484
    %v1466 = vsel %vm171, %v1465, -inf
    %1467 = vmax.xlane.f32.xlu0 %v1466
    %v1468 = vpop.xlane.xlu0 %1467
    %v1469 = vsub.f32 %v1465, %v1468
    %v1470 = vmul.f32 %v1469, 1.442695
    %v1471 = vpow.pop %v1470
    %v1472 = vsel %vm171, %v1471, 0.0
    %1473 = vadd.xlane.f32.xlu0 %v1472
    %v1474 = vpop.xlane.xlu0 %1473
    %v1475 = vrcp.pop %v1474
    %v1476 = vmul.f32 %v1471, %v1475
    %1477 = vrot.lane.b32.xlu0 %v1012, 48
    %v1478 = vpop.permute.xlu0 %1477
    %v1481 = vsel %vm171, %v1476, 0
    %1483 = vmatpush.msra.mxu0 0.0
    %1484 = vmatpush.msra.mxu0 0.0
    %1485 = vmatpush.msra.mxu0 0.0
    %1486 = vmatpush.msra.mxu0 0.0
    %1487 = vmatpush.msra.mxu0 0.0
    %1488 = vmatpush.msra.mxu0 0.0
    %1489 = vmatpush.msra.mxu0 0.0
    %1490 = vmatpush.msra.mxu0 0.0
    %1491 = vmatpush.msra.mxu0 0.0
    %1492 = vmatpush.msra.mxu0 0.0
    %1493 = vmatpush.msra.mxu0 0.0
    %1494 = vmatpush.msra.mxu0 0.0
    %1495 = vmatpush.msra.mxu0 0.0
    %1496 = vmatpush.msra.mxu0 0.0
    %1497 = vmatpush.msra.mxu0 0.0
    %1498 = vmatpush.msra.mxu0 %v1478
    %1499 = vmatmul.f32.gmra.mxu0 %v1481
    %v1500 = vpop.f32.mrf.mxu0
    %v1501 = vadd.f32 0.0, %v1500
    %1502 = vdwg.mxu0
    %1504 = vrot.lane.b32.xlu0 %v1501, 16
    %v1505 = vpop.permute.xlu0 %1504
    %1507 = vst.msk [vmem:[#allocation2 + $0x8] sm:$0xff] %vm381, %v1505
    %1508 = vrot.lane.b32.xlu0 %v1012, 104
    %v1509 = vpop.permute.xlu0 %1508
    %1510 = vrot.lane.b32.xlu0 %v1012, 72
    %v1511 = vpop.permute.xlu0 %1510
    %v1512 = vsel %vm171, %v1509, 0
    %v1514 = vsel %vm171, %v1511, 0
    %1516 = vmatpush.xpose.msra.mxu0 0.0
    %1517 = vmatpush.xpose.msra.mxu0 0.0
    %1518 = vmatpush.xpose.msra.mxu0 0.0
    %1519 = vmatpush.xpose.msra.mxu0 0.0
    %1520 = vmatpush.xpose.msra.mxu0 0.0
    %1521 = vmatpush.xpose.msra.mxu0 0.0
    %1522 = vmatpush.xpose.msra.mxu0 0.0
    %1523 = vmatpush.xpose.msra.mxu0 0.0
    %1524 = vmatpush.xpose.msra.mxu0 0.0
    %1525 = vmatpush.xpose.msra.mxu0 0.0
    %1526 = vmatpush.xpose.msra.mxu0 0.0
    %1527 = vmatpush.xpose.msra.mxu0 0.0
    %1528 = vmatpush.xpose.msra.mxu0 0.0
    %1529 = vmatpush.xpose.msra.mxu0 0.0
    %1530 = vmatpush.xpose.msra.mxu0 0.0
    %1531 = vmatpush.xpose.msra.mxu0 %v1514
    %1532 = vmatmul.f32.gmra.mxu0 %v1512
    %v1533 = vpop.f32.mrf.mxu0
    %v1534 = vadd.f32 0.0, %v1533
    %1535 = vdwg.mxu0
    %v1536 = vmul.f32 %v1534, 0.35355338
    %v1537 = vadd.f32 %v1536, %v484
    %v1538 = vsel %vm171, %v1537, -inf
    %1539 = vmax.xlane.f32.xlu0 %v1538
    %v1540 = vpop.xlane.xlu0 %1539
    %v1541 = vsub.f32 %v1537, %v1540
    %v1542 = vmul.f32 %v1541, 1.442695
    %v1543 = vpow.pop %v1542
    %v1544 = vsel %vm171, %v1543, 0.0
    %1545 = vadd.xlane.f32.xlu0 %v1544
    %v1546 = vpop.xlane.xlu0 %1545
    %v1547 = vrcp.pop %v1546
    %v1548 = vmul.f32 %v1543, %v1547
    %1549 = vrot.lane.b32.xlu0 %v1012, 40
    %v1550 = vpop.permute.xlu0 %1549
    %v1553 = vsel %vm171, %v1548, 0
    %1555 = vmatpush.msra.mxu0 0.0
    %1556 = vmatpush.msra.mxu0 0.0
    %1557 = vmatpush.msra.mxu0 0.0
    %1558 = vmatpush.msra.mxu0 0.0
    %1559 = vmatpush.msra.mxu0 0.0
    %1560 = vmatpush.msra.mxu0 0.0
    %1561 = vmatpush.msra.mxu0 0.0
    %1562 = vmatpush.msra.mxu0 0.0
    %1563 = vmatpush.msra.mxu0 0.0
    %1564 = vmatpush.msra.mxu0 0.0
    %1565 = vmatpush.msra.mxu0 0.0
    %1566 = vmatpush.msra.mxu0 0.0
    %1567 = vmatpush.msra.mxu0 0.0
    %1568 = vmatpush.msra.mxu0 0.0
    %1569 = vmatpush.msra.mxu0 0.0
    %1570 = vmatpush.msra.mxu0 %v1550
    %1571 = vmatmul.f32.gmra.mxu0 %v1553
    %v1572 = vpop.f32.mrf.mxu0
    %v1573 = vadd.f32 0.0, %v1572
    %1574 = vdwg.mxu0
    %1576 = vrot.lane.b32.xlu0 %v1573, 24
    %v1577 = vpop.permute.xlu0 %1576
    %1579 = vst.msk [vmem:[#allocation2 + $0x8] sm:$0xff] %vm454, %v1577
    %v1580 = vld [vmem:[#allocation2] sm:$0xff]
    %v1581 = vld [vmem:[#allocation2 + $0x8] sm:$0xff]
    %s1582 = scalar_lea.vmem %s6, 32
    %v1583 = vld [vmem:[%s1582] sm:$0xff]
    %v1584 = vld [vmem:[%s1582 + $0x8] sm:$0xff]
    %v1585 = vld [vmem:[%s1582 + $0x10] sm:$0xff]
    %v1586 = vld [vmem:[%s1582 + $0x18] sm:$0xff]
    %v1587 = vld [vmem:[%s7 + $0x1] sm:$0x1]
    %v1588 = vperm.slane %v1587, 0
    %v1590 = vsel %vm71, %v1580, 0
    %v1593 = vsel %vm71, %v1581, 0
    %1595 = vmatpush.msra.mxu0 0.0
    %1596 = vmatpush.msra.mxu0 0.0
    %1597 = vmatpush.msra.mxu0 0.0
    %1598 = vmatpush.msra.mxu0 0.0
    %1599 = vmatpush.msra.mxu0 0.0
    %1600 = vmatpush.msra.mxu0 0.0
    %1601 = vmatpush.msra.mxu0 0.0
    %1602 = vmatpush.msra.mxu0 0.0
    %1603 = vmatpush.msra.mxu0 0.0
    %1604 = vmatpush.msra.mxu0 0.0
    %1605 = vmatpush.msra.mxu0 0.0
    %1606 = vmatpush.msra.mxu0 0.0
    %1607 = vmatpush.msra.mxu0 %v1586
    %1608 = vmatpush.msra.mxu0 %v1585
    %1609 = vmatpush.msra.mxu0 %v1584
    %1610 = vmatpush.msra.mxu0 %v1583
    %1611 = vmatmul.f32.gmra.mxu0 %v1590
    %v1612 = vpop.f32.mrf.mxu0
    %v1613 = vadd.f32 %v1588, %v1612
    %1614 = vmatmul.f32.gmra.mxu0 %v1593
    %v1615 = vpop.f32.mrf.mxu0
    %v1616 = vadd.f32 %v1588, %v1615
    %1617 = vdwg.mxu0
    %v1618 = vadd.f32 %v976, %v1613
    %v1619 = vadd.f32 %v977, %v1616
    %v1620 = vld [vmem:[%s8 + $0x1] sm:$0x1]
    %v1621 = vld [vmem:[%s9 + $0x1] sm:$0x1]
    %v1622 = vsel %vm71, %v1618, 0.0
    %1623 = vadd.xlane.f32.xlu0 %v1622
    %v1624 = vpop.xlane.xlu0 %1623
    %v1625 = vsel %vm71, %v1619, 0.0
    %1626 = vadd.xlane.f32.xlu0 %v1625
    %v1627 = vpop.xlane.xlu0 %1626
    %v1628 = vmul.f32 %v1624, %v84
    %v1629 = vmul.f32 %v1627, %v84
    %v1630 = vsub.f32 %v1618, %v1628
    %v1631 = vsub.f32 %v1619, %v1629
    %v1632 = vmul.f32 %v1630, %v1630
    %v1633 = vmul.f32 %v1631, %v1631
    %v1634 = vsel %vm71, %v1632, 0.0
    %1635 = vadd.xlane.f32.xlu0 %v1634
    %v1636 = vpop.xlane.xlu0 %1635
    %v1637 = vsel %vm71, %v1633, 0.0
    %1638 = vadd.xlane.f32.xlu0 %v1637
    %v1639 = vpop.xlane.xlu0 %1638
    %v1640 = vmul.f32 %v1636, %v84
    %v1641 = vmul.f32 %v1639, %v84
    %v1642 = vadd.f32 %v1640, 1e-12
    %v1643 = vadd.f32 %v1641, 1e-12
    %v1644 = vrsqrt.pop %v1642
    %v1645 = vmul.f32 %v1644, %v1642
    %v1646 = vmul.f32 %v1645, %v1644
    %v1647 = vmul.f32 0.5, %v1646
    %v1648 = vsub.f32 1.5, %v1647
    %v1649 = vmul.f32 %v1644, %v1648
    %vm1650 = vweird.f32 %v1642
    %vm1651 = vweird.f32 %v1644
    %vm1652 = vmor %vm1650, %vm1651
    %v1653 = vsel %vm1652, %v1644, %v1649
    %v1654 = vrsqrt.pop %v1643
    %v1655 = vmul.f32 %v1654, %v1643
    %v1656 = vmul.f32 %v1655, %v1654
    %v1657 = vmul.f32 0.5, %v1656
    %v1658 = vsub.f32 1.5, %v1657
    %v1659 = vmul.f32 %v1654, %v1658
    %vm1660 = vweird.f32 %v1643
    %vm1661 = vweird.f32 %v1654
    %vm1662 = vmor %vm1660, %vm1661
    %v1663 = vsel %vm1662, %v1654, %v1659
    %v1664 = vmul.f32 %v1630, %v1653
    %v1665 = vmul.f32 %v1631, %v1663
    %v1666 = vperm.slane %v1620, 0
    %v1667 = vmul.f32 %v1664, %v1666
    %v1668 = vmul.f32 %v1665, %v1666
    %v1669 = vperm.slane %v1621, 0
    %v1670 = vadd.f32 %v1667, %v1669
    %v1671 = vadd.f32 %v1668, %v1669
    %s1672 = scalar_lea.vmem %s10, 32
    %v1673 = vld [vmem:[%s1672] sm:$0xff]
    %v1674 = vld [vmem:[%s1672 + $0x8] sm:$0xff]
    %v1675 = vld [vmem:[%s1672 + $0x10] sm:$0xff]
    %v1676 = vld [vmem:[%s1672 + $0x18] sm:$0xff]
    %v1677 = vld [vmem:[%s11 + $0x1] sm:$0x1]
    %v1678 = vperm.slane %v1677, 0
    %v1680 = vsel %vm71, %v1670, 0
    %v1683 = vsel %vm71, %v1671, 0
    %1685 = vmatpush.msra.mxu0 0.0
    %1686 = vmatpush.msra.mxu0 0.0
    %1687 = vmatpush.msra.mxu0 0.0
    %1688 = vmatpush.msra.mxu0 0.0
    %1689 = vmatpush.msra.mxu0 0.0
    %1690 = vmatpush.msra.mxu0 0.0
    %1691 = vmatpush.msra.mxu0 0.0
    %1692 = vmatpush.msra.mxu0 0.0
    %1693 = vmatpush.msra.mxu0 0.0
    %1694 = vmatpush.msra.mxu0 0.0
    %1695 = vmatpush.msra.mxu0 0.0
    %1696 = vmatpush.msra.mxu0 0.0
    %1697 = vmatpush.msra.mxu0 %v1676
    %1698 = vmatpush.msra.mxu0 %v1675
    %1699 = vmatpush.msra.mxu0 %v1674
    %1700 = vmatpush.msra.mxu0 %v1673
    %1701 = vmatmul.f32.gmra.mxu0 %v1680
    %v1702 = vpop.f32.mrf.mxu0
    %v1703 = vadd.f32 %v1678, %v1702
    %1704 = vmatmul.f32.gmra.mxu0 %v1683
    %v1705 = vpop.f32.mrf.mxu0
    %v1706 = vadd.f32 %v1678, %v1705
    %1707 = vdwg.mxu0
    %v1708 = vmul.f32 %v1703, %v1703
    %v1709 = vmul.f32 %v1706, %v1706
    %v1710 = vmul.f32 %v1703, %v1708
    %v1711 = vmul.f32 %v1706, %v1709
    %v1712 = vmul.f32 %v1710, 0.044715
    %v1713 = vmul.f32 %v1711, 0.044715
    %v1714 = vadd.f32 %v1703, %v1712
    %v1715 = vadd.f32 %v1706, %v1713
    %v1716 = vmul.f32 %v1714, 0.7978846
    %v1717 = vmul.f32 %v1715, 0.7978846
    %v1718 = vtanh.pop %v1716
    %v1719 = vtanh.pop %v1717
    %v1720 = vadd.f32 %v1718, 1.0
    %v1721 = vadd.f32 %v1719, 1.0
    %v1722 = vmul.f32 %v1720, 0.5
    %v1723 = vmul.f32 %v1721, 0.5
    %v1724 = vmul.f32 %v1703, %v1722
    %v1725 = vmul.f32 %v1706, %v1723
    %s1726 = scalar_lea.vmem %s12, 64
    %v1727 = vld [vmem:[%s1726] sm:$0xff]
    %v1728 = vld [vmem:[%s1726 + $0x8] sm:$0xff]
    %v1729 = vld [vmem:[%s1726 + $0x10] sm:$0xff]
    %v1730 = vld [vmem:[%s1726 + $0x18] sm:$0xff]
    %v1731 = vld [vmem:[%s1726 + $0x20] sm:$0xff]
    %v1732 = vld [vmem:[%s1726 + $0x28] sm:$0xff]
    %v1733 = vld [vmem:[%s1726 + $0x30] sm:$0xff]
    %v1734 = vld [vmem:[%s1726 + $0x38] sm:$0xff]
    %v1735 = vld [vmem:[%s13 + $0x1] sm:$0x1]
    %v1736 = vperm.slane %v1735, 0
    %v1738 = vsel %vm894, %v1724, 0
    %v1741 = vsel %vm894, %v1725, 0
    %1743 = vmatpush.msra.mxu0 0.0
    %1744 = vmatpush.msra.mxu0 0.0
    %1745 = vmatpush.msra.mxu0 0.0
    %1746 = vmatpush.msra.mxu0 0.0
    %1747 = vmatpush.msra.mxu0 0.0
    %1748 = vmatpush.msra.mxu0 0.0
    %1749 = vmatpush.msra.mxu0 0.0
    %1750 = vmatpush.msra.mxu0 0.0
    %1751 = vmatpush.msra.mxu0 %v1734
    %1752 = vmatpush.msra.mxu0 %v1733
    %1753 = vmatpush.msra.mxu0 %v1732
    %1754 = vmatpush.msra.mxu0 %v1731
    %1755 = vmatpush.msra.mxu0 %v1730
    %1756 = vmatpush.msra.mxu0 %v1729
    %1757 = vmatpush.msra.mxu0 %v1728
    %1758 = vmatpush.msra.mxu0 %v1727
    %1759 = vmatmul.f32.gmra.mxu0 %v1738
    %v1760 = vpop.f32.mrf.mxu0
    %v1761 = vadd.f32 %v1736, %v1760
    %1762 = vmatmul.f32.gmra.mxu0 %v1741
    %v1763 = vpop.f32.mrf.mxu0
    %v1764 = vadd.f32 %v1736, %v1763
    %1765 = vdwg.mxu0
    %v1766 = vadd.f32 %v1670, %v1761
    %v1767 = vadd.f32 %v1671, %v1764
    %v1768 = vld [vmem:[%s14 + $0x1] sm:$0x1]
    %v1769 = vld [vmem:[%s15 + $0x1] sm:$0x1]
    %v1770 = vsel %vm71, %v1766, 0.0
    %1771 = vadd.xlane.f32.xlu0 %v1770
    %v1772 = vpop.xlane.xlu0 %1771
    %v1773 = vsel %vm71, %v1767, 0.0
    %1774 = vadd.xlane.f32.xlu0 %v1773
    %v1775 = vpop.xlane.xlu0 %1774
    %v1776 = vmul.f32 %v1772, %v84
    %v1777 = vmul.f32 %v1775, %v84
    %v1778 = vsub.f32 %v1766, %v1776
    %v1779 = vsub.f32 %v1767, %v1777
    %v1780 = vmul.f32 %v1778, %v1778
    %v1781 = vmul.f32 %v1779, %v1779
    %v1782 = vsel %vm71, %v1780, 0.0
    %1783 = vadd.xlane.f32.xlu0 %v1782
    %v1784 = vpop.xlane.xlu0 %1783
    %v1785 = vsel %vm71, %v1781, 0.0
    %1786 = vadd.xlane.f32.xlu0 %v1785
    %v1787 = vpop.xlane.xlu0 %1786
    %v1788 = vmul.f32 %v1784, %v84
    %v1789 = vmul.f32 %v1787, %v84
    %v1790 = vadd.f32 %v1788, 1e-12
    %v1791 = vadd.f32 %v1789, 1e-12
    %v1792 = vrsqrt.pop %v1790
    %v1793 = vmul.f32 %v1792, %v1790
    %v1794 = vmul.f32 %v1793, %v1792
    %v1795 = vmul.f32 0.5, %v1794
    %v1796 = vsub.f32 1.5, %v1795
    %v1797 = vmul.f32 %v1792, %v1796
    %vm1798 = vweird.f32 %v1790
    %vm1799 = vweird.f32 %v1792
    %vm1800 = vmor %vm1798, %vm1799
    %v1801 = vsel %vm1800, %v1792, %v1797
    %v1802 = vrsqrt.pop %v1791
    %v1803 = vmul.f32 %v1802, %v1791
    %v1804 = vmul.f32 %v1803, %v1802
    %v1805 = vmul.f32 0.5, %v1804
    %v1806 = vsub.f32 1.5, %v1805
    %v1807 = vmul.f32 %v1802, %v1806
    %vm1808 = vweird.f32 %v1791
    %vm1809 = vweird.f32 %v1802
    %vm1810 = vmor %vm1808, %vm1809
    %v1811 = vsel %vm1810, %v1802, %v1807
    %v1812 = vmul.f32 %v1778, %v1801
    %v1813 = vmul.f32 %v1779, %v1811
    %v1814 = vperm.slane %v1768, 0
    %v1815 = vmul.f32 %v1812, %v1814
    %v1816 = vmul.f32 %v1813, %v1814
    %v1817 = vperm.slane %v1769, 0
    %v1818 = vadd.f32 %v1815, %v1817
    %v1819 = vadd.f32 %v1816, %v1817
    %vm1820 = vcmask 253952
    %1821 = vst.msk [vmem:[#allocation3] sm:$0x1] %vm1820, %v1818
    %1822 = vst.msk [vmem:[#allocation3 + $0x1] sm:$0x1] %vm1820, %v1819
    %v1823 = vld [vmem:[#allocation3] sm:$0x3]
    %v1824 = vld [vmem:[%s16] sm:$0xff]
    %v1825 = vld [vmem:[%s16 + $0x8] sm:$0xff]
    %v1826 = vld [vmem:[%s16 + $0x10] sm:$0xff]
    %v1827 = vld [vmem:[%s16 + $0x18] sm:$0xff]
    %v1828 = vld [vmem:[%s17] sm:$0x1]
    %v1830 = vperm.slane %v1828, 0
    %v1833 = vsel %vm71, %v1823, 0
    %1835 = vmatpush.msra.mxu0 0.0
    %1836 = vmatpush.msra.mxu0 0.0
    %1837 = vmatpush.msra.mxu0 0.0
    %1838 = vmatpush.msra.mxu0 0.0
    %1839 = vmatpush.msra.mxu0 0.0
    %1840 = vmatpush.msra.mxu0 0.0
    %1841 = vmatpush.msra.mxu0 0.0
    %1842 = vmatpush.msra.mxu0 0.0
    %1843 = vmatpush.msra.mxu0 0.0
    %1844 = vmatpush.msra.mxu0 0.0
    %1845 = vmatpush.msra.mxu0 0.0
    %1846 = vmatpush.msra.mxu0 0.0
    %1847 = vmatpush.msra.mxu0 %v1827
    %1848 = vmatpush.msra.mxu0 %v1826
    %1849 = vmatpush.msra.mxu0 %v1825
    %1850 = vmatpush.msra.mxu0 %v1824
    %1851 = vmatmul.f32.gmra.mxu0 %v1833
    %v1852 = vpop.f32.mrf.mxu0
    %v1853 = vadd.f32 %v1830, %v1852
    %1854 = vdwg.mxu0
    %v1855 = vtanh.pop %v1853
    %v1856 = vld [vmem:[%s18] sm:$0xff]
    %v1857 = vld [vmem:[%s18 + $0x8] sm:$0xff]
    %v1858 = vld [vmem:[%s18 + $0x10] sm:$0xff]
    %v1859 = vld [vmem:[%s18 + $0x18] sm:$0xff]
    %v1860 = vld [vmem:[%s19] sm:$0x1]
    %v1862 = vperm.slane %v1860, 0
    %v1865 = vsel %vm71, %v1855, 0
    %1867 = vmatpush.msra.mxu0 0.0
    %1868 = vmatpush.msra.mxu0 0.0
    %1869 = vmatpush.msra.mxu0 0.0
    %1870 = vmatpush.msra.mxu0 0.0
    %1871 = vmatpush.msra.mxu0 0.0
    %1872 = vmatpush.msra.mxu0 0.0
    %1873 = vmatpush.msra.mxu0 0.0
    %1874 = vmatpush.msra.mxu0 0.0
    %1875 = vmatpush.msra.mxu0 0.0
    %1876 = vmatpush.msra.mxu0 0.0
    %1877 = vmatpush.msra.mxu0 0.0
    %1878 = vmatpush.msra.mxu0 0.0
    %1879 = vmatpush.msra.mxu0 %v1859
    %1880 = vmatpush.msra.mxu0 %v1858
    %1881 = vmatpush.msra.mxu0 %v1857
    %1882 = vmatpush.msra.mxu0 %v1856
    %1883 = vmatmul.f32.gmra.mxu0 %v1865
    %v1884 = vpop.f32.mrf.mxu0
    %v1885 = vadd.f32 %v1862, %v1884
    %1886 = vdwg.mxu0
    %vm1887 = vcmask 9216
    %v1888 = vsel %vm1887, %v1885, -inf
    %1889 = vmax.xlane.f32.xlu0 %v1888
    %v1890 = vpop.xlane.xlu0 %1889
    %v1891 = vsub.f32 %v1885, %v1890
    %v1892 = vmul.f32 %v1891, 1.442695
    %v1893 = vpow.pop %v1892
    %v1894 = vsel %vm1887, %v1893, 0.0
    %1895 = vadd.xlane.f32.xlu0 %v1894
    %v1896 = vpop.xlane.xlu0 %1895
    %v1897 = vrcp.pop %v1896
    %v1898 = vmul.f32 %v1896, %v1897
    %v1899 = vsub.f32 1.0, %v1898
    %v1900 = vmul.f32 %v1897, %v1899
    %v1901 = vadd.f32 %v1897, %v1900
    %vm1902 = vweird.f32 %v1896
    %vm1903 = vweird.f32 %v1897
    %vm1904 = vmor %vm1902, %vm1903
    %v1905 = vsel %vm1904, %v1897, %v1901
    %v1906 = vand.u32 2147483647, %v1896
    %vm1907 = vcmp.eq.f32.partialorder %v1906, 8.507059e+37
    %v1908 = vand.u32 %v1896, 2147483648
    %v1909 = vor.u32 1.1754944e-38, %v1908
    %v1910 = vsel %vm1907, %v1909, %v1905
    %v1911 = vmul.f32 %v1893, %v1910
    %1912 = vst.msk [vmem:[#allocation4] sm:$0x3] %vm1887, %v1911
    // Predicated region
    $region82: #{fine_tune_classifier_forward.1} parent=1 // pred_check
      _
    $region83: #{fine_tune_classifier_forward.1} parent=1 // pred_check_branch
      %1914 = sbr.rel (0) target = $region85
    $region84: #{fine_tune_classifier_forward.1} parent=1 // pred_region
      %1916 = vsyncadd [#allocation5], 0
      %s1918 = sshll.u32 [#allocation4], 4
      %s1919 = int_to_ptr.vmem [resolvable:$true] %s1918
      %s1920 = sshll.u32 %s20, 4
      %s1921 = int_to_ptr.hbm [resolvable:$true] %s1920
      %1923 = dma.vmem_to_hbm [thread:$0]  %s1919, 32, %s1921, [#allocation5]
    $region85: #{fine_tune_classifier_forward.1} parent=1 // pred_fallthru
      _
    // Predicated region
    $region86: #{fine_tune_classifier_forward.1} parent=1 // pred_check
      _
    $region87: #{fine_tune_classifier_forward.1} parent=1 // pred_check_branch
      %1925 = sbr.rel (0) target = $region89
    $region88: #{fine_tune_classifier_forward.1} parent=1 // pred_region
      %1927 = dma.done [#allocation5], 32
    $region89: #{fine_tune_classifier_forward.1} parent=1 // pred_fallthru
      _
    %1928 = vsyncpa [#allocation5], 1

</llo_original>
